<compile_context>
chip_gen: v7x
topology: tpu7x:2x2x1
jax: 0.10.0
libtpu: 0.0.40
codegen_flags: <defaults>
</compile_context>

<pallas_src>
import functools

import jax
import jax.numpy as jnp
from jax.experimental import pallas as pl
from jax.experimental.pallas import tpu as pltpu  # noqa: F401 (kept for parity)

# ----------------------------- ModelArgs (tiny) -----------------------------
VOCAB      = 64
D_MODEL    = 32
N_LAYERS   = 2
N_HEADS    = 4
N_KV_HEADS = 2
D_HEAD     = 8          # n_heads * d_head == d_model
N_EXPERTS  = 4
TOP_K      = 2
D_FF       = 64
MAX_SEQ    = 16
WINDOW     = 16
NORM_EPS   = 1e-5
ATTN_EPS   = 1e-5
FFN_EPS    = 1e-5
ROPE_THETA = 10000.0

Q_DIM  = N_HEADS * D_HEAD        # 32
KV_DIM = N_KV_HEADS * D_HEAD     # 16


# --------------------------- Fused decoder layer ----------------------------

def _decoder_layer_kernel(h_ref, cos_ref, sin_ref, rot_ref,
                          attn_norm_ref, wqkv_ref, wo_ref,
                          ffn_norm_ref, gate_ref, w13_ref, w2_ref,
                          o_ref, *, batch, seq):
    """One full Mixtral-style decoder layer on a (T=batch*seq, D) hidden slab."""
    Dh   = D_HEAD
    rep  = N_HEADS // N_KV_HEADS
    scale = 1.0 / (Dh ** 0.5)

    h = h_ref[...]                                               # (T, D)

    # ---- attention block: pre-RMSNorm ----
    ms = jnp.mean(h * h, axis=-1, keepdims=True)
    hn = h * jax.lax.rsqrt(ms + ATTN_EPS) * attn_norm_ref[...]

    # ---- fused QKV projection (single matmul, 64-wide output) ----
    qkv = jnp.dot(hn, wqkv_ref[...], preferred_element_type=jnp.float32)
    q = qkv[:, :Q_DIM]                                           # (T, 32)
    k = qkv[:, Q_DIM:Q_DIM + KV_DIM]                             # (T, 16)
    v = qkv[:, Q_DIM + KV_DIM:]                                  # (T, 16)

    # ---- RoPE: interleaved-pair complex rotation via rotation-matrix matmul ----
    # out[2i] = x[2i]*cos_i - x[2i+1]*sin_i ; out[2i+1] = x[2i+1]*cos_i + x[2i]*sin_i
    cos_q = cos_ref[...]                                         # (T, Q_DIM)
    sin_q = sin_ref[...]
    rot   = rot_ref[...]                                         # (Q_DIM, Q_DIM)
    q = q * cos_q + jnp.dot(q, rot, preferred_element_type=jnp.float32) * sin_q
    k = (k * cos_q[:, :KV_DIM]
         + jnp.dot(k, rot[:KV_DIM, :KV_DIM],
                   preferred_element_type=jnp.float32) * sin_q[:, :KV_DIM])

    # ---- GQA attention, causal + sliding window (relative positions) ----
    # TODO(synk): KV-cache for incremental decoding (start_pos > 0) not
    # materialized; this is the full-sequence forward.
    qpos = jax.lax.broadcasted_iota(jnp.int32, (seq, seq), 0)
    kpos = jax.lax.broadcasted_iota(jnp.int32, (seq, seq), 1)
    mask = (kpos <= qpos) & (qpos - kpos < WINDOW)

    wo = wo_ref[...]                                             # (Q_DIM, D)
    for b in range(batch):
        r0 = b * seq
        acc_b = jnp.zeros((seq, D_MODEL), jnp.float32)
        for hh in range(N_HEADS):
            kvh = hh // rep                                      # GQA head share
            qh = q[r0:r0 + seq, hh * Dh:(hh + 1) * Dh]           # (S, Dh)
            kh = k[r0:r0 + seq, kvh * Dh:(kvh + 1) * Dh]
            vh = v[r0:r0 + seq, kvh * Dh:(kvh + 1) * Dh]
            s = jax.lax.dot_general(qh, kh, (((1,), (1,)), ((), ())),
                                    preferred_element_type=jnp.float32) * scale
            s = jnp.where(mask, s, -1e30)
            m = jnp.max(s, axis=-1, keepdims=True)
            p = jnp.exp(s - m)
            l = jnp.sum(p, axis=-1, keepdims=True)
            p = p * pl.reciprocal(l, approx=True)
            oh = jnp.dot(p, vh, preferred_element_type=jnp.float32)   # (S, Dh)
            # Fold the Wo projection in per-head (no concat needed).
            acc_b = acc_b + jnp.dot(oh, wo[hh * Dh:(hh + 1) * Dh, :],
                                    preferred_element_type=jnp.float32)
        o_ref[r0:r0 + seq, :] = acc_b          # o_ref reused as VMEM accumulator

    h1 = h + o_ref[...]                        # residual

    # ---- MoE block: pre-RMSNorm ----
    ms2 = jnp.mean(h1 * h1, axis=-1, keepdims=True)
    hn2 = h1 * jax.lax.rsqrt(ms2 + FFN_EPS) * ffn_norm_ref[...]

    # ---- fused router: gate matmul + softmax + top-2 renormalized weights ----
    logits = jnp.dot(hn2, gate_ref[...], preferred_element_type=jnp.float32)
    lm = jnp.max(logits, axis=-1, keepdims=True)
    pe = jnp.exp(logits - lm)
    probs = pe / jnp.sum(pe, axis=-1, keepdims=True)             # (T, E)

    e_idx = jax.lax.broadcasted_iota(jnp.int32, probs.shape, 1)
    m1 = jnp.max(probs, axis=-1, keepdims=True)
    i1 = jnp.min(jnp.where(probs >= m1, e_idx, N_EXPERTS), axis=-1, keepdims=True)
    first = (e_idx == i1)                                        # top-1 one-hot
    probs2 = jnp.where(first, -1.0, probs)
    m2 = jnp.max(probs2, axis=-1, keepdims=True)
    i2 = jnp.min(jnp.where(probs2 >= m2, e_idx, N_EXPERTS), axis=-1, keepdims=True)
    second = (e_idx == i2)                                       # top-2 one-hot
    rw = (jnp.where(first, m1, 0.0) + jnp.where(second, m2, 0.0)) / (m1 + m2)

    # ---- experts: fused w1|w3 gate/up (128-wide lane-dense matmul) + SwiGLU ----
    moe = jnp.zeros_like(h1)
    for e in range(N_EXPERTS):
        gu = jnp.dot(hn2, w13_ref[e], preferred_element_type=jnp.float32)  # (T, 2*D_FF)
        a = gu[:, :D_FF]
        g = gu[:, D_FF:]
        act = a * jax.nn.sigmoid(a) * g                          # SwiGLU
        oe = jnp.dot(act, w2_ref[e], preferred_element_type=jnp.float32)   # (T, D)
        moe = moe + oe * rw[:, e:e + 1]

    o_ref[...] = h1 + moe                                        # residual


def pallas_decoder_layer(h2d, cos_t, sin_t, rot, lp, *, batch, seq):
    T, D = h2d.shape
    kernel = functools.partial(_decoder_layer_kernel, batch=batch, seq=seq)
    return pl.pallas_call(
        kernel,
        out_shape=jax.ShapeDtypeStruct((T, D), jnp.float32),
    )(h2d, cos_t, sin_t, rot,
      lp["attn_norm"].reshape(1, -1), lp["wqkv"], lp["wo"],
      lp["ffn_norm"].reshape(1, -1), lp["gate"], lp["w13"], lp["w2"])


# ----------------------- Fused final norm + LM head --------------------------

def _head_kernel(x_ref, norm_ref, w_ref, b_ref, o_ref):
    x = x_ref[...]
    ms = jnp.mean(x * x, axis=-1, keepdims=True)
    xn = x * jax.lax.rsqrt(ms + NORM_EPS) * norm_ref[...]
    o_ref[...] = (jnp.dot(xn, w_ref[...], preferred_element_type=jnp.float32)
                  + b_ref[...])


def pallas_head(h2d, norm_w, out_w, out_b):
    T, _ = h2d.shape
    return pl.pallas_call(
        _head_kernel,
        out_shape=jax.ShapeDtypeStruct((T, VOCAB), jnp.float32),
    )(h2d, norm_w.reshape(1, -1), out_w, out_b.reshape(1, -1))


# ------------------------------ RoPE tables ----------------------------------

def precompute_rope(d_head, n_heads, seq_len, theta=ROPE_THETA):
    inv = 1.0 / (theta ** (jnp.arange(0, d_head, 2, dtype=jnp.float32) / d_head))
    t = jnp.arange(seq_len, dtype=jnp.float32)
    freqs = jnp.outer(t, inv)                               # (seq_len, d_head//2)
    cos = jnp.repeat(jnp.cos(freqs), 2, axis=-1)            # interleaved pairs
    sin = jnp.repeat(jnp.sin(freqs), 2, axis=-1)
    cos_hd = jnp.tile(cos, (1, n_heads))                    # (seq_len, Q_DIM)
    sin_hd = jnp.tile(sin, (1, n_heads))
    # Block-diagonal pair-swap matrix: (x @ R)[2i] = -x[2i+1], (x @ R)[2i+1] = x[2i]
    dim = n_heads * d_head
    even = jnp.arange(0, dim, 2)
    odd = even + 1
    R = jnp.zeros((dim, dim), jnp.float32)
    R = R.at[odd, even].set(-1.0)
    R = R.at[even, odd].set(1.0)
    return cos_hd, sin_hd, R


# ------------------------------- Parameters ----------------------------------

def init_params(key):
    keys = jax.random.split(key, 3 + N_LAYERS)

    def nrm(k, shape, scale=0.02):
        return (scale * jax.random.normal(k, shape)).astype(jnp.float32)

    params = {
        "tok_emb": nrm(keys[0], (VOCAB, D_MODEL)),
        "out_w": nrm(keys[1], (D_MODEL, VOCAB)),
        "out_b": jnp.zeros((VOCAB,), jnp.float32),
        "final_norm": jnp.ones((D_MODEL,), jnp.float32),
        "layers": [],
    }
    for l in range(N_LAYERS):
        lk = jax.random.split(keys[3 + l], 8)
        # wq|wk|wv concatenated; w1|w3 concatenated per expert (lane-dense).
        wqkv = jnp.concatenate([nrm(lk[0], (D_MODEL, Q_DIM)),
                                nrm(lk[1], (D_MODEL, KV_DIM)),
                                nrm(lk[2], (D_MODEL, KV_DIM))], axis=1)
        w13 = jnp.concatenate([nrm(lk[5], (N_EXPERTS, D_MODEL, D_FF)),
                               nrm(lk[6], (N_EXPERTS, D_MODEL, D_FF))], axis=-1)
        params["layers"].append({
            "attn_norm": jnp.ones((D_MODEL,), jnp.float32),
            "ffn_norm": jnp.ones((D_MODEL,), jnp.float32),
            "wqkv": wqkv,                                   # (D, Q_DIM + 2*KV_DIM)
            "wo": nrm(lk[3], (Q_DIM, D_MODEL)),
            "gate": nrm(lk[4], (D_MODEL, N_EXPERTS)),
            "w13": w13,                                     # (E, D, 2*D_FF)
            "w2": nrm(lk[7], (N_EXPERTS, D_FF, D_MODEL)),
        })
    return params


# -------------------------------- Forward ------------------------------------

def tiny_mixtral_forward(params, tokens, start_pos, cos_hd, sin_hd, rot):
    B, S = tokens.shape
    # Embedding gather stays in plain JAX.
    h = jnp.take(params["tok_emb"], tokens.reshape(-1), axis=0)     # (B*S, D)

    cos_s = jax.lax.dynamic_slice_in_dim(cos_hd, start_pos, S, axis=0)
    sin_s = jax.lax.dynamic_slice_in_dim(sin_hd, start_pos, S, axis=0)
    cos_t = jnp.tile(cos_s, (B, 1))                                 # (B*S, Q_DIM)
    sin_t = jnp.tile(sin_s, (B, 1))

    for lp in params["layers"]:
        h = pallas_decoder_layer(h, cos_t, sin_t, rot, lp, batch=B, seq=S)

    logits = pallas_head(h, params["final_norm"], params["out_w"], params["out_b"])
    # NOTE: attention dropout is identity at inference (deterministic forward).
    return logits.reshape(B, S, VOCAB).astype(jnp.float32)


# --------------------------------- Driver ------------------------------------

if __name__ == "__main__":
    key = jax.random.PRNGKey(0)
    pkey, tkey = jax.random.split(key)

    params = init_params(pkey)
    cos_hd, sin_hd, rot = precompute_rope(D_HEAD, N_HEADS, MAX_SEQ)

    B, S = 2, 8
    tokens = jax.random.randint(tkey, (B, S), 0, VOCAB, dtype=jnp.int32)
    start_pos = 0

    fwd = jax.jit(functools.partial(tiny_mixtral_forward,
                                    cos_hd=cos_hd, sin_hd=sin_hd, rot=rot),
                  static_argnums=(2,))
    out = jax.block_until_ready(fwd(params, tokens, start_pos))

    assert out.shape == (B, S, VOCAB) and out.dtype == jnp.float32
    print("KERNEL_OK")
</pallas_src>

<mosaic_0001>
module attributes {stable_mosaic.version = 11 : i64} {
  func.func @_head_kernel(%arg0: memref<16x32xf32, #tpu.memory_space<vmem>>, %arg1: memref<1x32xf32, #tpu.memory_space<vmem>>, %arg2: memref<32x64xf32, #tpu.memory_space<vmem>>, %arg3: memref<1x64xf32, #tpu.memory_space<vmem>>, %arg4: memref<16x64xf32, #tpu.memory_space<vmem>>) attributes {dimension_semantics = [], scalar_prefetch = 0 : i64, scratch_operands = 0 : i64, tpu.core_type = #tpu.core_type<tc>} {
    %c0 = arith.constant 0 : index
    %c0_0 = arith.constant 0 : index
    %0 = vector.load %arg0[%c0, %c0_0] : memref<16x32xf32, #tpu.memory_space<vmem>>, vector<16x32xf32>
    %1 = arith.mulf %0, %0 : vector<16x32xf32>
    %cst = arith.constant dense<0.000000e+00> : vector<16xf32>
    %2 = vector.multi_reduction <add>, %1, %cst [1] : vector<16x32xf32> to vector<16xf32>
    %3 = vector.shape_cast %2 : vector<16xf32> to vector<16x1xf32>
    %cst_1 = arith.constant 3.200000e+01 : f32
    %4 = vector.broadcast %cst_1 : f32 to vector<16x1xf32>
    %5 = arith.divf %3, %4 : vector<16x1xf32>
    %cst_2 = arith.constant 9.99999974E-6 : f32
    %6 = vector.broadcast %cst_2 : f32 to vector<16x1xf32>
    %7 = arith.addf %5, %6 : vector<16x1xf32>
    %8 = math.rsqrt %7 : vector<16x1xf32>
    %9 = vector.broadcast %8 : vector<16x1xf32> to vector<16x32xf32>
    %10 = arith.mulf %0, %9 : vector<16x32xf32>
    %c0_3 = arith.constant 0 : index
    %c0_4 = arith.constant 0 : index
    %11 = vector.load %arg1[%c0_3, %c0_4] : memref<1x32xf32, #tpu.memory_space<vmem>>, vector<1x32xf32>
    %12 = vector.broadcast %11 : vector<1x32xf32> to vector<16x32xf32>
    %13 = arith.mulf %10, %12 : vector<16x32xf32>
    %c0_5 = arith.constant 0 : index
    %c0_6 = arith.constant 0 : index
    %14 = vector.load %arg2[%c0_5, %c0_6] : memref<32x64xf32, #tpu.memory_space<vmem>>, vector<32x64xf32>
    %cst_7 = arith.constant dense<0.000000e+00> : vector<16x64xf32>
    %15 = tpu.matmul %13, %14, %cst_7 {dimension_numbers = #tpu.dot_dimension_numbers<[1], [0], [0], [1], [0, 0, 1, 1], [], []>} : vector<16x32xf32>, vector<32x64xf32>, vector<16x64xf32> -> vector<16x64xf32>
    %c0_8 = arith.constant 0 : index
    %c0_9 = arith.constant 0 : index
    %16 = vector.load %arg3[%c0_8, %c0_9] : memref<1x64xf32, #tpu.memory_space<vmem>>, vector<1x64xf32>
    %17 = vector.broadcast %16 : vector<1x64xf32> to vector<16x64xf32>
    %18 = arith.addf %15, %17 : vector<16x64xf32>
    %c0_10 = arith.constant 0 : index
    %c0_11 = arith.constant 0 : index
    %19 = vector.load %arg4[%c0_10, %c0_11] : memref<16x64xf32, #tpu.memory_space<vmem>>, vector<16x64xf32>
    tpu.vector_store %arg4[%c0_10, %c0_11], %18 {strides = array<i32>} : memref<16x64xf32, #tpu.memory_space<vmem>>, vector<16x64xf32>,
    return
  }
}

module attributes {stable_mosaic.version = 11 : i64} {
  func.func @_decoder_layer_kernel(%arg0: memref<16x32xf32, #tpu.memory_space<vmem>>, %arg1: memref<16x32xf32, #tpu.memory_space<vmem>>, %arg2: memref<16x32xf32, #tpu.memory_space<vmem>>, %arg3: memref<32x32xf32, #tpu.memory_space<vmem>>, %arg4: memref<1x32xf32, #tpu.memory_space<vmem>>, %arg5: memref<32x64xf32, #tpu.memory_space<vmem>>, %arg6: memref<32x32xf32, #tpu.memory_space<vmem>>, %arg7: memref<1x32xf32, #tpu.memory_space<vmem>>, %arg8: memref<32x4xf32, #tpu.memory_space<vmem>>, %arg9: memref<4x32x128xf32, #tpu.memory_space<vmem>>, %arg10: memref<4x64x32xf32, #tpu.memory_space<vmem>>, %arg11: memref<16x32xf32, #tpu.memory_space<vmem>>) attributes {dimension_semantics = [], scalar_prefetch = 0 : i64, scratch_operands = 0 : i64, tpu.core_type = #tpu.core_type<tc>} {
    %c0 = arith.constant 0 : index
    %c0_0 = arith.constant 0 : index
    %0 = vector.load %arg0[%c0, %c0_0] : memref<16x32xf32, #tpu.memory_space<vmem>>, vector<16x32xf32>
    %1 = arith.mulf %0, %0 : vector<16x32xf32>
    %cst = arith.constant dense<0.000000e+00> : vector<16xf32>
    %2 = vector.multi_reduction <add>, %1, %cst [1] : vector<16x32xf32> to vector<16xf32>
    %3 = vector.shape_cast %2 : vector<16xf32> to vector<16x1xf32>
    %cst_1 = arith.constant 3.200000e+01 : f32
    %4 = vector.broadcast %cst_1 : f32 to vector<16x1xf32>
    %5 = arith.divf %3, %4 : vector<16x1xf32>
    %cst_2 = arith.constant 9.99999974E-6 : f32
    %6 = vector.broadcast %cst_2 : f32 to vector<16x1xf32>
    %7 = arith.addf %5, %6 : vector<16x1xf32>
    %8 = math.rsqrt %7 : vector<16x1xf32>
    %9 = vector.broadcast %8 : vector<16x1xf32> to vector<16x32xf32>
    %10 = arith.mulf %0, %9 : vector<16x32xf32>
    %c0_3 = arith.constant 0 : index
    %c0_4 = arith.constant 0 : index
    %11 = vector.load %arg4[%c0_3, %c0_4] : memref<1x32xf32, #tpu.memory_space<vmem>>, vector<1x32xf32>
    %12 = vector.broadcast %11 : vector<1x32xf32> to vector<16x32xf32>
    %13 = arith.mulf %10, %12 : vector<16x32xf32>
    %c0_5 = arith.constant 0 : index
    %c0_6 = arith.constant 0 : index
    %14 = vector.load %arg5[%c0_5, %c0_6] : memref<32x64xf32, #tpu.memory_space<vmem>>, vector<32x64xf32>
    %cst_7 = arith.constant dense<0.000000e+00> : vector<16x64xf32>
    %15 = tpu.matmul %13, %14, %cst_7 {dimension_numbers = #tpu.dot_dimension_numbers<[1], [0], [0], [1], [0, 0, 1, 1], [], []>} : vector<16x32xf32>, vector<32x64xf32>, vector<16x64xf32> -> vector<16x64xf32>
    %16 = vector.extract_strided_slice %15 {offsets = [0, 0], sizes = [16, 32], strides = [1, 1]} : vector<16x64xf32> to vector<16x32xf32>
    %17 = vector.extract_strided_slice %15 {offsets = [0, 32], sizes = [16, 16], strides = [1, 1]} : vector<16x64xf32> to vector<16x16xf32>
    %18 = vector.extract_strided_slice %15 {offsets = [0, 48], sizes = [16, 16], strides = [1, 1]} : vector<16x64xf32> to vector<16x16xf32>
    %c0_8 = arith.constant 0 : index
    %c0_9 = arith.constant 0 : index
    %19 = vector.load %arg1[%c0_8, %c0_9] : memref<16x32xf32, #tpu.memory_space<vmem>>, vector<16x32xf32>
    %c0_10 = arith.constant 0 : index
    %c0_11 = arith.constant 0 : index
    %20 = vector.load %arg2[%c0_10, %c0_11] : memref<16x32xf32, #tpu.memory_space<vmem>>, vector<16x32xf32>
    %c0_12 = arith.constant 0 : index
    %c0_13 = arith.constant 0 : index
    %21 = vector.load %arg3[%c0_12, %c0_13] : memref<32x32xf32, #tpu.memory_space<vmem>>, vector<32x32xf32>
    %22 = arith.mulf %16, %19 : vector<16x32xf32>
    %cst_14 = arith.constant dense<0.000000e+00> : vector<16x32xf32>
    %23 = tpu.matmul %16, %21, %cst_14 {dimension_numbers = #tpu.dot_dimension_numbers<[1], [0], [0], [1], [0, 0, 1, 1], [], []>} : vector<16x32xf32>, vector<32x32xf32>, vector<16x32xf32> -> vector<16x32xf32>
    %24 = arith.mulf %23, %20 : vector<16x32xf32>
    %25 = arith.addf %22, %24 : vector<16x32xf32>
    %26 = vector.extract_strided_slice %19 {offsets = [0, 0], sizes = [16, 16], strides = [1, 1]} : vector<16x32xf32> to vector<16x16xf32>
    %27 = arith.mulf %17, %26 : vector<16x16xf32>
    %28 = vector.extract_strided_slice %21 {offsets = [0, 0], sizes = [16, 16], strides = [1, 1]} : vector<32x32xf32> to vector<16x16xf32>
    %cst_15 = arith.constant dense<0.000000e+00> : vector<16x16xf32>
    %29 = tpu.matmul %17, %28, %cst_15 {dimension_numbers = #tpu.dot_dimension_numbers<[1], [0], [0], [1], [0, 0, 1, 1], [], []>} : vector<16x16xf32>, vector<16x16xf32>, vector<16x16xf32> -> vector<16x16xf32>
    %30 = vector.extract_strided_slice %20 {offsets = [0, 0], sizes = [16, 16], strides = [1, 1]} : vector<16x32xf32> to vector<16x16xf32>
    %31 = arith.mulf %29, %30 : vector<16x16xf32>
    %32 = arith.addf %27, %31 : vector<16x16xf32>
    %33 = tpu.iota {dimensions = array<i32: 0>} : vector<8x8xi32>
    %34 = tpu.iota {dimensions = array<i32: 1>} : vector<8x8xi32>
    %35 = arith.cmpi sle, %34, %33 : vector<8x8xi32>
    %36 = arith.subi %33, %34 : vector<8x8xi32>
    %c16_i32 = arith.constant 16 : i32
    %37 = vector.broadcast %c16_i32 : i32 to vector<8x8xi32>
    %38 = arith.cmpi slt, %36, %37 : vector<8x8xi32>
    %39 = arith.andi %35, %38 : vector<8x8xi1>
    %c0_16 = arith.constant 0 : index
    %c0_17 = arith.constant 0 : index
    %40 = vector.load %arg6[%c0_16, %c0_17] : memref<32x32xf32, #tpu.memory_space<vmem>>, vector<32x32xf32>
    %cst_18 = arith.constant 0.000000e+00 : f32
    %41 = vector.broadcast %cst_18 : f32 to vector<8x32xf32>
    %42 = vector.extract_strided_slice %25 {offsets = [0, 0], sizes = [8, 8], strides = [1, 1]} : vector<16x32xf32> to vector<8x8xf32>
    %43 = vector.extract_strided_slice %32 {offsets = [0, 0], sizes = [8, 8], strides = [1, 1]} : vector<16x16xf32> to vector<8x8xf32>
    %44 = vector.extract_strided_slice %18 {offsets = [0, 0], sizes = [8, 8], strides = [1, 1]} : vector<16x16xf32> to vector<8x8xf32>
    %cst_19 = arith.constant dense<0.000000e+00> : vector<8x8xf32>
    %45 = tpu.matmul %42, %43, %cst_19 {dimension_numbers = #tpu.dot_dimension_numbers<[1], [1], [0], [0], [0, 0, 1, 0], [], []>} : vector<8x8xf32>, vector<8x8xf32>, vector<8x8xf32> -> vector<8x8xf32>
    %cst_20 = arith.constant 0.353553385 : f32
    %46 = vector.broadcast %cst_20 : f32 to vector<8x8xf32>
    %47 = arith.mulf %45, %46 : vector<8x8xf32>
    %cst_21 = arith.constant -1.000000e+30 : f32
    %48 = vector.broadcast %cst_21 : f32 to vector<8x8xf32>
    %49 = arith.select %39, %47, %48 : vector<8x8xi1>, vector<8x8xf32>
    %cst_22 = arith.constant dense<0xFF800000> : vector<8xf32>
    %50 = vector.multi_reduction <maximumf>, %49, %cst_22 [1] : vector<8x8xf32> to vector<8xf32>
    %51 = vector.shape_cast %50 : vector<8xf32> to vector<8x1xf32>
    %52 = vector.broadcast %51 : vector<8x1xf32> to vector<8x8xf32>
    %53 = arith.subf %49, %52 : vector<8x8xf32>
    %54 = math.exp %53 : vector<8x8xf32>
    %cst_23 = arith.constant dense<0.000000e+00> : vector<8xf32>
    %55 = vector.multi_reduction <add>, %54, %cst_23 [1] : vector<8x8xf32> to vector<8xf32>
    %56 = vector.shape_cast %55 : vector<8xf32> to vector<8x1xf32>
    %57 = tpu.reciprocal %56 {approx = true} : vector<8x1xf32> -> vector<8x1xf32>
    %58 = vector.broadcast %57 : vector<8x1xf32> to vector<8x8xf32>
    %59 = arith.mulf %54, %58 : vector<8x8xf32>
    %cst_24 = arith.constant dense<0.000000e+00> : vector<8x8xf32>
    %60 = tpu.matmul %59, %44, %cst_24 {dimension_numbers = #tpu.dot_dimension_numbers<[1], [0], [0], [1], [0, 0, 1, 1], [], []>} : vector<8x8xf32>, vector<8x8xf32>, vector<8x8xf32> -> vector<8x8xf32>
    %61 = vector.extract_strided_slice %40 {offsets = [0, 0], sizes = [8, 32], strides = [1, 1]} : vector<32x32xf32> to vector<8x32xf32>
    %cst_25 = arith.constant dense<0.000000e+00> : vector<8x32xf32>
    %62 = tpu.matmul %60, %61, %cst_25 {dimension_numbers = #tpu.dot_dimension_numbers<[1], [0], [0], [1], [0, 0, 1, 1], [], []>} : vector<8x8xf32>, vector<8x32xf32>, vector<8x32xf32> -> vector<8x32xf32>
    %63 = arith.addf %41, %62 : vector<8x32xf32>
    %64 = vector.extract_strided_slice %25 {offsets = [0, 8], sizes = [8, 8], strides = [1, 1]} : vector<16x32xf32> to vector<8x8xf32>
    %65 = vector.extract_strided_slice %32 {offsets = [0, 0], sizes = [8, 8], strides = [1, 1]} : vector<16x16xf32> to vector<8x8xf32>
    %66 = vector.extract_strided_slice %18 {offsets = [0, 0], sizes = [8, 8], strides = [1, 1]} : vector<16x16xf32> to vector<8x8xf32>
    %cst_26 = arith.constant dense<0.000000e+00> : vector<8x8xf32>
    %67 = tpu.matmul %64, %65, %cst_26 {dimension_numbers = #tpu.dot_dimension_numbers<[1], [1], [0], [0], [0, 0, 1, 0], [], []>} : vector<8x8xf32>, vector<8x8xf32>, vector<8x8xf32> -> vector<8x8xf32>
    %cst_27 = arith.constant 0.353553385 : f32
    %68 = vector.broadcast %cst_27 : f32 to vector<8x8xf32>
    %69 = arith.mulf %67, %68 : vector<8x8xf32>
    %cst_28 = arith.constant -1.000000e+30 : f32
    %70 = vector.broadcast %cst_28 : f32 to vector<8x8xf32>
    %71 = arith.select %39, %69, %70 : vector<8x8xi1>, vector<8x8xf32>
    %cst_29 = arith.constant dense<0xFF800000> : vector<8xf32>
    %72 = vector.multi_reduction <maximumf>, %71, %cst_29 [1] : vector<8x8xf32> to vector<8xf32>
    %73 = vector.shape_cast %72 : vector<8xf32> to vector<8x1xf32>
    %74 = vector.broadcast %73 : vector<8x1xf32> to vector<8x8xf32>
    %75 = arith.subf %71, %74 : vector<8x8xf32>
    %76 = math.exp %75 : vector<8x8xf32>
    %cst_30 = arith.constant dense<0.000000e+00> : vector<8xf32>
    %77 = vector.multi_reduction <add>, %76, %cst_30 [1] : vector<8x8xf32> to vector<8xf32>
    %78 = vector.shape_cast %77 : vector<8xf32> to vector<8x1xf32>
    %79 = tpu.reciprocal %78 {approx = true} : vector<8x1xf32> -> vector<8x1xf32>
    %80 = vector.broadcast %79 : vector<8x1xf32> to vector<8x8xf32>
    %81 = arith.mulf %76, %80 : vector<8x8xf32>
    %cst_31 = arith.constant dense<0.000000e+00> : vector<8x8xf32>
    %82 = tpu.matmul %81, %66, %cst_31 {dimension_numbers = #tpu.dot_dimension_numbers<[1], [0], [0], [1], [0, 0, 1, 1], [], []>} : vector<8x8xf32>, vector<8x8xf32>, vector<8x8xf32> -> vector<8x8xf32>
    %83 = vector.extract_strided_slice %40 {offsets = [8, 0], sizes = [8, 32], strides = [1, 1]} : vector<32x32xf32> to vector<8x32xf32>
    %cst_32 = arith.constant dense<0.000000e+00> : vector<8x32xf32>
    %84 = tpu.matmul %82, %83, %cst_32 {dimension_numbers = #tpu.dot_dimension_numbers<[1], [0], [0], [1], [0, 0, 1, 1], [], []>} : vector<8x8xf32>, vector<8x32xf32>, vector<8x32xf32> -> vector<8x32xf32>
    %85 = arith.addf %63, %84 : vector<8x32xf32>
    %86 = vector.extract_strided_slice %25 {offsets = [0, 16], sizes = [8, 8], strides = [1, 1]} : vector<16x32xf32> to vector<8x8xf32>
    %87 = vector.extract_strided_slice %32 {offsets = [0, 8], sizes = [8, 8], strides = [1, 1]} : vector<16x16xf32> to vector<8x8xf32>
    %88 = vector.extract_strided_slice %18 {offsets = [0, 8], sizes = [8, 8], strides = [1, 1]} : vector<16x16xf32> to vector<8x8xf32>
    %cst_33 = arith.constant dense<0.000000e+00> : vector<8x8xf32>
    %89 = tpu.matmul %86, %87, %cst_33 {dimension_numbers = #tpu.dot_dimension_numbers<[1], [1], [0], [0], [0, 0, 1, 0], [], []>} : vector<8x8xf32>, vector<8x8xf32>, vector<8x8xf32> -> vector<8x8xf32>
    %cst_34 = arith.constant 0.353553385 : f32
    %90 = vector.broadcast %cst_34 : f32 to vector<8x8xf32>
    %91 = arith.mulf %89, %90 : vector<8x8xf32>
    %cst_35 = arith.constant -1.000000e+30 : f32
    %92 = vector.broadcast %cst_35 : f32 to vector<8x8xf32>
    %93 = arith.select %39, %91, %92 : vector<8x8xi1>, vector<8x8xf32>
    %cst_36 = arith.constant dense<0xFF800000> : vector<8xf32>
    %94 = vector.multi_reduction <maximumf>, %93, %cst_36 [1] : vector<8x8xf32> to vector<8xf32>
    %95 = vector.shape_cast %94 : vector<8xf32> to vector<8x1xf32>
    %96 = vector.broadcast %95 : vector<8x1xf32> to vector<8x8xf32>
    %97 = arith.subf %93, %96 : vector<8x8xf32>
    %98 = math.exp %97 : vector<8x8xf32>
    %cst_37 = arith.constant dense<0.000000e+00> : vector<8xf32>
    %99 = vector.multi_reduction <add>, %98, %cst_37 [1] : vector<8x8xf32> to vector<8xf32>
    %100 = vector.shape_cast %99 : vector<8xf32> to vector<8x1xf32>
    %101 = tpu.reciprocal %100 {approx = true} : vector<8x1xf32> -> vector<8x1xf32>
    %102 = vector.broadcast %101 : vector<8x1xf32> to vector<8x8xf32>
    %103 = arith.mulf %98, %102 : vector<8x8xf32>
    %cst_38 = arith.constant dense<0.000000e+00> : vector<8x8xf32>
    %104 = tpu.matmul %103, %88, %cst_38 {dimension_numbers = #tpu.dot_dimension_numbers<[1], [0], [0], [1], [0, 0, 1, 1], [], []>} : vector<8x8xf32>, vector<8x8xf32>, vector<8x8xf32> -> vector<8x8xf32>
    %105 = vector.extract_strided_slice %40 {offsets = [16, 0], sizes = [8, 32], strides = [1, 1]} : vector<32x32xf32> to vector<8x32xf32>
    %cst_39 = arith.constant dense<0.000000e+00> : vector<8x32xf32>
    %106 = tpu.matmul %104, %105, %cst_39 {dimension_numbers = #tpu.dot_dimension_numbers<[1], [0], [0], [1], [0, 0, 1, 1], [], []>} : vector<8x8xf32>, vector<8x32xf32>, vector<8x32xf32> -> vector<8x32xf32>
    %107 = arith.addf %85, %106 : vector<8x32xf32>
    %108 = vector.extract_strided_slice %25 {offsets = [0, 24], sizes = [8, 8], strides = [1, 1]} : vector<16x32xf32> to vector<8x8xf32>
    %109 = vector.extract_strided_slice %32 {offsets = [0, 8], sizes = [8, 8], strides = [1, 1]} : vector<16x16xf32> to vector<8x8xf32>
    %110 = vector.extract_strided_slice %18 {offsets = [0, 8], sizes = [8, 8], strides = [1, 1]} : vector<16x16xf32> to vector<8x8xf32>
    %cst_40 = arith.constant dense<0.000000e+00> : vector<8x8xf32>
    %111 = tpu.matmul %108, %109, %cst_40 {dimension_numbers = #tpu.dot_dimension_numbers<[1], [1], [0], [0], [0, 0, 1, 0], [], []>} : vector<8x8xf32>, vector<8x8xf32>, vector<8x8xf32> -> vector<8x8xf32>
    %cst_41 = arith.constant 0.353553385 : f32
    %112 = vector.broadcast %cst_41 : f32 to vector<8x8xf32>
    %113 = arith.mulf %111, %112 : vector<8x8xf32>
    %cst_42 = arith.constant -1.000000e+30 : f32
    %114 = vector.broadcast %cst_42 : f32 to vector<8x8xf32>
    %115 = arith.select %39, %113, %114 : vector<8x8xi1>, vector<8x8xf32>
    %cst_43 = arith.constant dense<0xFF800000> : vector<8xf32>
    %116 = vector.multi_reduction <maximumf>, %115, %cst_43 [1] : vector<8x8xf32> to vector<8xf32>
    %117 = vector.shape_cast %116 : vector<8xf32> to vector<8x1xf32>
    %118 = vector.broadcast %117 : vector<8x1xf32> to vector<8x8xf32>
    %119 = arith.subf %115, %118 : vector<8x8xf32>
    %120 = math.exp %119 : vector<8x8xf32>
    %cst_44 = arith.constant dense<0.000000e+00> : vector<8xf32>
    %121 = vector.multi_reduction <add>, %120, %cst_44 [1] : vector<8x8xf32> to vector<8xf32>
    %122 = vector.shape_cast %121 : vector<8xf32> to vector<8x1xf32>
    %123 = tpu.reciprocal %122 {approx = true} : vector<8x1xf32> -> vector<8x1xf32>
    %124 = vector.broadcast %123 : vector<8x1xf32> to vector<8x8xf32>
    %125 = arith.mulf %120, %124 : vector<8x8xf32>
    %cst_45 = arith.constant dense<0.000000e+00> : vector<8x8xf32>
    %126 = tpu.matmul %125, %110, %cst_45 {dimension_numbers = #tpu.dot_dimension_numbers<[1], [0], [0], [1], [0, 0, 1, 1], [], []>} : vector<8x8xf32>, vector<8x8xf32>, vector<8x8xf32> -> vector<8x8xf32>
    %127 = vector.extract_strided_slice %40 {offsets = [24, 0], sizes = [8, 32], strides = [1, 1]} : vector<32x32xf32> to vector<8x32xf32>
    %cst_46 = arith.constant dense<0.000000e+00> : vector<8x32xf32>
    %128 = tpu.matmul %126, %127, %cst_46 {dimension_numbers = #tpu.dot_dimension_numbers<[1], [0], [0], [1], [0, 0, 1, 1], [], []>} : vector<8x8xf32>, vector<8x32xf32>, vector<8x32xf32> -> vector<8x32xf32>
    %129 = arith.addf %107, %128 : vector<8x32xf32>
    %c0_47 = arith.constant 0 : index
    %c0_48 = arith.constant 0 : index
    %130 = vector.load %arg11[%c0_47, %c0_48] : memref<16x32xf32, #tpu.memory_space<vmem>>, vector<8x32xf32>
    tpu.vector_store %arg11[%c0_47, %c0_48], %129 {strides = array<i32>} : memref<16x32xf32, #tpu.memory_space<vmem>>, vector<8x32xf32>,
    %cst_49 = arith.constant 0.000000e+00 : f32
    %131 = vector.broadcast %cst_49 : f32 to vector<8x32xf32>
    %132 = vector.extract_strided_slice %25 {offsets = [8, 0], sizes = [8, 8], strides = [1, 1]} : vector<16x32xf32> to vector<8x8xf32>
    %133 = vector.extract_strided_slice %32 {offsets = [8, 0], sizes = [8, 8], strides = [1, 1]} : vector<16x16xf32> to vector<8x8xf32>
    %134 = vector.extract_strided_slice %18 {offsets = [8, 0], sizes = [8, 8], strides = [1, 1]} : vector<16x16xf32> to vector<8x8xf32>
    %cst_50 = arith.constant dense<0.000000e+00> : vector<8x8xf32>
    %135 = tpu.matmul %132, %133, %cst_50 {dimension_numbers = #tpu.dot_dimension_numbers<[1], [1], [0], [0], [0, 0, 1, 0], [], []>} : vector<8x8xf32>, vector<8x8xf32>, vector<8x8xf32> -> vector<8x8xf32>
    %cst_51 = arith.constant 0.353553385 : f32
    %136 = vector.broadcast %cst_51 : f32 to vector<8x8xf32>
    %137 = arith.mulf %135, %136 : vector<8x8xf32>
    %cst_52 = arith.constant -1.000000e+30 : f32
    %138 = vector.broadcast %cst_52 : f32 to vector<8x8xf32>
    %139 = arith.select %39, %137, %138 : vector<8x8xi1>, vector<8x8xf32>
    %cst_53 = arith.constant dense<0xFF800000> : vector<8xf32>
    %140 = vector.multi_reduction <maximumf>, %139, %cst_53 [1] : vector<8x8xf32> to vector<8xf32>
    %141 = vector.shape_cast %140 : vector<8xf32> to vector<8x1xf32>
    %142 = vector.broadcast %141 : vector<8x1xf32> to vector<8x8xf32>
    %143 = arith.subf %139, %142 : vector<8x8xf32>
    %144 = math.exp %143 : vector<8x8xf32>
    %cst_54 = arith.constant dense<0.000000e+00> : vector<8xf32>
    %145 = vector.multi_reduction <add>, %144, %cst_54 [1] : vector<8x8xf32> to vector<8xf32>
    %146 = vector.shape_cast %145 : vector<8xf32> to vector<8x1xf32>
    %147 = tpu.reciprocal %146 {approx = true} : vector<8x1xf32> -> vector<8x1xf32>
    %148 = vector.broadcast %147 : vector<8x1xf32> to vector<8x8xf32>
    %149 = arith.mulf %144, %148 : vector<8x8xf32>
    %cst_55 = arith.constant dense<0.000000e+00> : vector<8x8xf32>
    %150 = tpu.matmul %149, %134, %cst_55 {dimension_numbers = #tpu.dot_dimension_numbers<[1], [0], [0], [1], [0, 0, 1, 1], [], []>} : vector<8x8xf32>, vector<8x8xf32>, vector<8x8xf32> -> vector<8x8xf32>
    %151 = vector.extract_strided_slice %40 {offsets = [0, 0], sizes = [8, 32], strides = [1, 1]} : vector<32x32xf32> to vector<8x32xf32>
    %cst_56 = arith.constant dense<0.000000e+00> : vector<8x32xf32>
    %152 = tpu.matmul %150, %151, %cst_56 {dimension_numbers = #tpu.dot_dimension_numbers<[1], [0], [0], [1], [0, 0, 1, 1], [], []>} : vector<8x8xf32>, vector<8x32xf32>, vector<8x32xf32> -> vector<8x32xf32>
    %153 = arith.addf %131, %152 : vector<8x32xf32>
    %154 = vector.extract_strided_slice %25 {offsets = [8, 8], sizes = [8, 8], strides = [1, 1]} : vector<16x32xf32> to vector<8x8xf32>
    %155 = vector.extract_strided_slice %32 {offsets = [8, 0], sizes = [8, 8], strides = [1, 1]} : vector<16x16xf32> to vector<8x8xf32>
    %156 = vector.extract_strided_slice %18 {offsets = [8, 0], sizes = [8, 8], strides = [1, 1]} : vector<16x16xf32> to vector<8x8xf32>
    %cst_57 = arith.constant dense<0.000000e+00> : vector<8x8xf32>
    %157 = tpu.matmul %154, %155, %cst_57 {dimension_numbers = #tpu.dot_dimension_numbers<[1], [1], [0], [0], [0, 0, 1, 0], [], []>} : vector<8x8xf32>, vector<8x8xf32>, vector<8x8xf32> -> vector<8x8xf32>
    %cst_58 = arith.constant 0.353553385 : f32
    %158 = vector.broadcast %cst_58 : f32 to vector<8x8xf32>
    %159 = arith.mulf %157, %158 : vector<8x8xf32>
    %cst_59 = arith.constant -1.000000e+30 : f32
    %160 = vector.broadcast %cst_59 : f32 to vector<8x8xf32>
    %161 = arith.select %39, %159, %160 : vector<8x8xi1>, vector<8x8xf32>
    %cst_60 = arith.constant dense<0xFF800000> : vector<8xf32>
    %162 = vector.multi_reduction <maximumf>, %161, %cst_60 [1] : vector<8x8xf32> to vector<8xf32>
    %163 = vector.shape_cast %162 : vector<8xf32> to vector<8x1xf32>
    %164 = vector.broadcast %163 : vector<8x1xf32> to vector<8x8xf32>
    %165 = arith.subf %161, %164 : vector<8x8xf32>
    %166 = math.exp %165 : vector<8x8xf32>
    %cst_61 = arith.constant dense<0.000000e+00> : vector<8xf32>
    %167 = vector.multi_reduction <add>, %166, %cst_61 [1] : vector<8x8xf32> to vector<8xf32>
    %168 = vector.shape_cast %167 : vector<8xf32> to vector<8x1xf32>
    %169 = tpu.reciprocal %168 {approx = true} : vector<8x1xf32> -> vector<8x1xf32>
    %170 = vector.broadcast %169 : vector<8x1xf32> to vector<8x8xf32>
    %171 = arith.mulf %166, %170 : vector<8x8xf32>
    %cst_62 = arith.constant dense<0.000000e+00> : vector<8x8xf32>
    %172 = tpu.matmul %171, %156, %cst_62 {dimension_numbers = #tpu.dot_dimension_numbers<[1], [0], [0], [1], [0, 0, 1, 1], [], []>} : vector<8x8xf32>, vector<8x8xf32>, vector<8x8xf32> -> vector<8x8xf32>
    %173 = vector.extract_strided_slice %40 {offsets = [8, 0], sizes = [8, 32], strides = [1, 1]} : vector<32x32xf32> to vector<8x32xf32>
    %cst_63 = arith.constant dense<0.000000e+00> : vector<8x32xf32>
    %174 = tpu.matmul %172, %173, %cst_63 {dimension_numbers = #tpu.dot_dimension_numbers<[1], [0], [0], [1], [0, 0, 1, 1], [], []>} : vector<8x8xf32>, vector<8x32xf32>, vector<8x32xf32> -> vector<8x32xf32>
    %175 = arith.addf %153, %174 : vector<8x32xf32>
    %176 = vector.extract_strided_slice %25 {offsets = [8, 16], sizes = [8, 8], strides = [1, 1]} : vector<16x32xf32> to vector<8x8xf32>
    %177 = vector.extract_strided_slice %32 {offsets = [8, 8], sizes = [8, 8], strides = [1, 1]} : vector<16x16xf32> to vector<8x8xf32>
    %178 = vector.extract_strided_slice %18 {offsets = [8, 8], sizes = [8, 8], strides = [1, 1]} : vector<16x16xf32> to vector<8x8xf32>
    %cst_64 = arith.constant dense<0.000000e+00> : vector<8x8xf32>
    %179 = tpu.matmul %176, %177, %cst_64 {dimension_numbers = #tpu.dot_dimension_numbers<[1], [1], [0], [0], [0, 0, 1, 0], [], []>} : vector<8x8xf32>, vector<8x8xf32>, vector<8x8xf32> -> vector<8x8xf32>
    %cst_65 = arith.constant 0.353553385 : f32
    %180 = vector.broadcast %cst_65 : f32 to vector<8x8xf32>
    %181 = arith.mulf %179, %180 : vector<8x8xf32>
    %cst_66 = arith.constant -1.000000e+30 : f32
    %182 = vector.broadcast %cst_66 : f32 to vector<8x8xf32>
    %183 = arith.select %39, %181, %182 : vector<8x8xi1>, vector<8x8xf32>
    %cst_67 = arith.constant dense<0xFF800000> : vector<8xf32>
    %184 = vector.multi_reduction <maximumf>, %183, %cst_67 [1] : vector<8x8xf32> to vector<8xf32>
    %185 = vector.shape_cast %184 : vector<8xf32> to vector<8x1xf32>
    %186 = vector.broadcast %185 : vector<8x1xf32> to vector<8x8xf32>
    %187 = arith.subf %183, %186 : vector<8x8xf32>
    %188 = math.exp %187 : vector<8x8xf32>
    %cst_68 = arith.constant dense<0.000000e+00> : vector<8xf32>
    %189 = vector.multi_reduction <add>, %188, %cst_68 [1] : vector<8x8xf32> to vector<8xf32>
    %190 = vector.shape_cast %189 : vector<8xf32> to vector<8x1xf32>
    %191 = tpu.reciprocal %190 {approx = true} : vector<8x1xf32> -> vector<8x1xf32>
    %192 = vector.broadcast %191 : vector<8x1xf32> to vector<8x8xf32>
    %193 = arith.mulf %188, %192 : vector<8x8xf32>
    %cst_69 = arith.constant dense<0.000000e+00> : vector<8x8xf32>
    %194 = tpu.matmul %193, %178, %cst_69 {dimension_numbers = #tpu.dot_dimension_numbers<[1], [0], [0], [1], [0, 0, 1, 1], [], []>} : vector<8x8xf32>, vector<8x8xf32>, vector<8x8xf32> -> vector<8x8xf32>
    %195 = vector.extract_strided_slice %40 {offsets = [16, 0], sizes = [8, 32], strides = [1, 1]} : vector<32x32xf32> to vector<8x32xf32>
    %cst_70 = arith.constant dense<0.000000e+00> : vector<8x32xf32>
    %196 = tpu.matmul %194, %195, %cst_70 {dimension_numbers = #tpu.dot_dimension_numbers<[1], [0], [0], [1], [0, 0, 1, 1], [], []>} : vector<8x8xf32>, vector<8x32xf32>, vector<8x32xf32> -> vector<8x32xf32>
    %197 = arith.addf %175, %196 : vector<8x32xf32>
    %198 = vector.extract_strided_slice %25 {offsets = [8, 24], sizes = [8, 8], strides = [1, 1]} : vector<16x32xf32> to vector<8x8xf32>
    %199 = vector.extract_strided_slice %32 {offsets = [8, 8], sizes = [8, 8], strides = [1, 1]} : vector<16x16xf32> to vector<8x8xf32>
    %200 = vector.extract_strided_slice %18 {offsets = [8, 8], sizes = [8, 8], strides = [1, 1]} : vector<16x16xf32> to vector<8x8xf32>
    %cst_71 = arith.constant dense<0.000000e+00> : vector<8x8xf32>
    %201 = tpu.matmul %198, %199, %cst_71 {dimension_numbers = #tpu.dot_dimension_numbers<[1], [1], [0], [0], [0, 0, 1, 0], [], []>} : vector<8x8xf32>, vector<8x8xf32>, vector<8x8xf32> -> vector<8x8xf32>
    %cst_72 = arith.constant 0.353553385 : f32
    %202 = vector.broadcast %cst_72 : f32 to vector<8x8xf32>
    %203 = arith.mulf %201, %202 : vector<8x8xf32>
    %cst_73 = arith.constant -1.000000e+30 : f32
    %204 = vector.broadcast %cst_73 : f32 to vector<8x8xf32>
    %205 = arith.select %39, %203, %204 : vector<8x8xi1>, vector<8x8xf32>
    %cst_74 = arith.constant dense<0xFF800000> : vector<8xf32>
    %206 = vector.multi_reduction <maximumf>, %205, %cst_74 [1] : vector<8x8xf32> to vector<8xf32>
    %207 = vector.shape_cast %206 : vector<8xf32> to vector<8x1xf32>
    %208 = vector.broadcast %207 : vector<8x1xf32> to vector<8x8xf32>
    %209 = arith.subf %205, %208 : vector<8x8xf32>
    %210 = math.exp %209 : vector<8x8xf32>
    %cst_75 = arith.constant dense<0.000000e+00> : vector<8xf32>
    %211 = vector.multi_reduction <add>, %210, %cst_75 [1] : vector<8x8xf32> to vector<8xf32>
    %212 = vector.shape_cast %211 : vector<8xf32> to vector<8x1xf32>
    %213 = tpu.reciprocal %212 {approx = true} : vector<8x1xf32> -> vector<8x1xf32>
    %214 = vector.broadcast %213 : vector<8x1xf32> to vector<8x8xf32>
    %215 = arith.mulf %210, %214 : vector<8x8xf32>
    %cst_76 = arith.constant dense<0.000000e+00> : vector<8x8xf32>
    %216 = tpu.matmul %215, %200, %cst_76 {dimension_numbers = #tpu.dot_dimension_numbers<[1], [0], [0], [1], [0, 0, 1, 1], [], []>} : vector<8x8xf32>, vector<8x8xf32>, vector<8x8xf32> -> vector<8x8xf32>
    %217 = vector.extract_strided_slice %40 {offsets = [24, 0], sizes = [8, 32], strides = [1, 1]} : vector<32x32xf32> to vector<8x32xf32>
    %cst_77 = arith.constant dense<0.000000e+00> : vector<8x32xf32>
    %218 = tpu.matmul %216, %217, %cst_77 {dimension_numbers = #tpu.dot_dimension_numbers<[1], [0], [0], [1], [0, 0, 1, 1], [], []>} : vector<8x8xf32>, vector<8x32xf32>, vector<8x32xf32> -> vector<8x32xf32>
    %219 = arith.addf %197, %218 : vector<8x32xf32>
    %c8 = arith.constant 8 : index
    %c0_78 = arith.constant 0 : index
    %220 = vector.load %arg11[%c8, %c0_78] : memref<16x32xf32, #tpu.memory_space<vmem>>, vector<8x32xf32>
    tpu.vector_store %arg11[%c8, %c0_78], %219 {strides = array<i32>} : memref<16x32xf32, #tpu.memory_space<vmem>>, vector<8x32xf32>,
    %c0_79 = arith.constant 0 : index
    %c0_80 = arith.constant 0 : index
    %221 = vector.load %arg11[%c0_79, %c0_80] : memref<16x32xf32, #tpu.memory_space<vmem>>, vector<16x32xf32>
    %222 = arith.addf %0, %221 : vector<16x32xf32>
    %223 = arith.mulf %222, %222 : vector<16x32xf32>
    %cst_81 = arith.constant dense<0.000000e+00> : vector<16xf32>
    %224 = vector.multi_reduction <add>, %223, %cst_81 [1] : vector<16x32xf32> to vector<16xf32>
    %225 = vector.shape_cast %224 : vector<16xf32> to vector<16x1xf32>
    %cst_82 = arith.constant 3.200000e+01 : f32
    %226 = vector.broadcast %cst_82 : f32 to vector<16x1xf32>
    %227 = arith.divf %225, %226 : vector<16x1xf32>
    %cst_83 = arith.constant 9.99999974E-6 : f32
    %228 = vector.broadcast %cst_83 : f32 to vector<16x1xf32>
    %229 = arith.addf %227, %228 : vector<16x1xf32>
    %230 = math.rsqrt %229 : vector<16x1xf32>
    %231 = vector.broadcast %230 : vector<16x1xf32> to vector<16x32xf32>
    %232 = arith.mulf %222, %231 : vector<16x32xf32>
    %c0_84 = arith.constant 0 : index
    %c0_85 = arith.constant 0 : index
    %233 = vector.load %arg7[%c0_84, %c0_85] : memref<1x32xf32, #tpu.memory_space<vmem>>, vector<1x32xf32>
    %234 = vector.broadcast %233 : vector<1x32xf32> to vector<16x32xf32>
    %235 = arith.mulf %232, %234 : vector<16x32xf32>
    %c0_86 = arith.constant 0 : index
    %c0_87 = arith.constant 0 : index
    %236 = vector.load %arg8[%c0_86, %c0_87] : memref<32x4xf32, #tpu.memory_space<vmem>>, vector<32x4xf32>
    %cst_88 = arith.constant dense<0.000000e+00> : vector<16x4xf32>
    %237 = tpu.matmul %235, %236, %cst_88 {dimension_numbers = #tpu.dot_dimension_numbers<[1], [0], [0], [1], [0, 0, 1, 1], [], []>} : vector<16x32xf32>, vector<32x4xf32>, vector<16x4xf32> -> vector<16x4xf32>
    %cst_89 = arith.constant dense<0xFF800000> : vector<16xf32>
    %238 = vector.multi_reduction <maximumf>, %237, %cst_89 [1] : vector<16x4xf32> to vector<16xf32>
    %239 = vector.shape_cast %238 : vector<16xf32> to vector<16x1xf32>
    %240 = vector.broadcast %239 : vector<16x1xf32> to vector<16x4xf32>
    %241 = arith.subf %237, %240 : vector<16x4xf32>
    %242 = math.exp %241 : vector<16x4xf32>
    %cst_90 = arith.constant dense<0.000000e+00> : vector<16xf32>
    %243 = vector.multi_reduction <add>, %242, %cst_90 [1] : vector<16x4xf32> to vector<16xf32>
    %244 = vector.shape_cast %243 : vector<16xf32> to vector<16x1xf32>
    %245 = vector.broadcast %244 : vector<16x1xf32> to vector<16x4xf32>
    %246 = arith.divf %242, %245 : vector<16x4xf32>
    %247 = tpu.iota {dimensions = array<i32: 1>} : vector<16x4xi32>
    %cst_91 = arith.constant dense<0xFF800000> : vector<16xf32>
    %248 = vector.multi_reduction <maximumf>, %246, %cst_91 [1] : vector<16x4xf32> to vector<16xf32>
    %249 = vector.shape_cast %248 : vector<16xf32> to vector<16x1xf32>
    %250 = vector.broadcast %249 : vector<16x1xf32> to vector<16x4xf32>
    %251 = arith.cmpf oge, %246, %250 : vector<16x4xf32>
    %c4_i32 = arith.constant 4 : i32
    %252 = vector.broadcast %c4_i32 : i32 to vector<16x4xi32>
    %253 = arith.select %251, %247, %252 : vector<16x4xi1>, vector<16x4xi32>
    %cst_92 = arith.constant dense<2147483647> : vector<16xi32>
    %254 = vector.multi_reduction <minsi>, %253, %cst_92 [1] : vector<16x4xi32> to vector<16xi32>
    %255 = vector.shape_cast %254 : vector<16xi32> to vector<16x1xi32>
    %256 = vector.broadcast %255 : vector<16x1xi32> to vector<16x4xi32>
    %257 = arith.cmpi eq, %247, %256 : vector<16x4xi32>
    %cst_93 = arith.constant -1.000000e+00 : f32
    %258 = vector.broadcast %cst_93 : f32 to vector<16x4xf32>
    %259 = arith.select %257, %258, %246 : vector<16x4xi1>, vector<16x4xf32>
    %cst_94 = arith.constant dense<0xFF800000> : vector<16xf32>
    %260 = vector.multi_reduction <maximumf>, %259, %cst_94 [1] : vector<16x4xf32> to vector<16xf32>
    %261 = vector.shape_cast %260 : vector<16xf32> to vector<16x1xf32>
    %262 = vector.broadcast %261 : vector<16x1xf32> to vector<16x4xf32>
    %263 = arith.cmpf oge, %259, %262 : vector<16x4xf32>
    %c4_i32_95 = arith.constant 4 : i32
    %264 = vector.broadcast %c4_i32_95 : i32 to vector<16x4xi32>
    %265 = arith.select %263, %247, %264 : vector<16x4xi1>, vector<16x4xi32>
    %cst_96 = arith.constant dense<2147483647> : vector<16xi32>
    %266 = vector.multi_reduction <minsi>, %265, %cst_96 [1] : vector<16x4xi32> to vector<16xi32>
    %267 = vector.shape_cast %266 : vector<16xi32> to vector<16x1xi32>
    %268 = vector.broadcast %267 : vector<16x1xi32> to vector<16x4xi32>
    %269 = arith.cmpi eq, %247, %268 : vector<16x4xi32>
    %cst_97 = arith.constant 0.000000e+00 : f32
    %270 = vector.shape_cast %249 : vector<16x1xf32> to vector<16x1xf32>
    %271 = vector.broadcast %270 : vector<16x1xf32> to vector<16x4xf32>
    %272 = vector.broadcast %cst_97 : f32 to vector<16x4xf32>
    %273 = arith.select %257, %271, %272 : vector<16x4xi1>, vector<16x4xf32>
    %cst_98 = arith.constant 0.000000e+00 : f32
    %274 = vector.shape_cast %261 : vector<16x1xf32> to vector<16x1xf32>
    %275 = vector.broadcast %274 : vector<16x1xf32> to vector<16x4xf32>
    %276 = vector.broadcast %cst_98 : f32 to vector<16x4xf32>
    %277 = arith.select %269, %275, %276 : vector<16x4xi1>, vector<16x4xf32>
    %278 = arith.addf %273, %277 : vector<16x4xf32>
    %279 = arith.addf %249, %261 : vector<16x1xf32>
    %280 = vector.broadcast %279 : vector<16x1xf32> to vector<16x4xf32>
    %281 = arith.divf %278, %280 : vector<16x4xf32>
    %cst_99 = arith.constant 0.000000e+00 : f32
    %282 = vector.broadcast %cst_99 : f32 to vector<16x32xf32>
    %c0_100 = arith.constant 0 : index
    %c0_101 = arith.constant 0 : index
    %c0_102 = arith.constant 0 : index
    %283 = vector.load %arg9[%c0_100, %c0_101, %c0_102] : memref<4x32x128xf32, #tpu.memory_space<vmem>>, vector<1x32x128xf32>
    %284 = vector.shape_cast %283 : vector<1x32x128xf32> to vector<32x128xf32>
    %cst_103 = arith.constant dense<0.000000e+00> : vector<16x128xf32>
    %285 = tpu.matmul %235, %284, %cst_103 {dimension_numbers = #tpu.dot_dimension_numbers<[1], [0], [0], [1], [0, 0, 1, 1], [], []>} : vector<16x32xf32>, vector<32x128xf32>, vector<16x128xf32> -> vector<16x128xf32>
    %286 = vector.extract_strided_slice %285 {offsets = [0, 0], sizes = [16, 64], strides = [1, 1]} : vector<16x128xf32> to vector<16x64xf32>
    %287 = vector.extract_strided_slice %285 {offsets = [0, 64], sizes = [16, 64], strides = [1, 1]} : vector<16x128xf32> to vector<16x64xf32>
    %288 = arith.negf %286 : vector<16x64xf32>
    %289 = math.exp %288 : vector<16x64xf32>
    %cst_104 = arith.constant 1.000000e+00 : f32
    %290 = vector.broadcast %cst_104 : f32 to vector<16x64xf32>
    %291 = arith.addf %290, %289 : vector<16x64xf32>
    %292 = arith.divf %290, %291 : vector<16x64xf32>
    %293 = arith.mulf %286, %292 : vector<16x64xf32>
    %294 = arith.mulf %293, %287 : vector<16x64xf32>
    %c0_105 = arith.constant 0 : index
    %c0_106 = arith.constant 0 : index
    %c0_107 = arith.constant 0 : index
    %295 = vector.load %arg10[%c0_105, %c0_106, %c0_107] : memref<4x64x32xf32, #tpu.memory_space<vmem>>, vector<1x64x32xf32>
    %296 = vector.shape_cast %295 : vector<1x64x32xf32> to vector<64x32xf32>
    %cst_108 = arith.constant dense<0.000000e+00> : vector<16x32xf32>
    %297 = tpu.matmul %294, %296, %cst_108 {dimension_numbers = #tpu.dot_dimension_numbers<[1], [0], [0], [1], [0, 0, 1, 1], [], []>} : vector<16x64xf32>, vector<64x32xf32>, vector<16x32xf32> -> vector<16x32xf32>
    %298 = vector.extract_strided_slice %281 {offsets = [0, 0], sizes = [16, 1], strides = [1, 1]} : vector<16x4xf32> to vector<16x1xf32>
    %299 = vector.broadcast %298 : vector<16x1xf32> to vector<16x32xf32>
    %300 = arith.mulf %297, %299 : vector<16x32xf32>
    %301 = arith.addf %282, %300 : vector<16x32xf32>
    %c1 = arith.constant 1 : index
    %c0_109 = arith.constant 0 : index
    %c0_110 = arith.constant 0 : index
    %302 = vector.load %arg9[%c1, %c0_109, %c0_110] : memref<4x32x128xf32, #tpu.memory_space<vmem>>, vector<1x32x128xf32>
    %303 = vector.shape_cast %302 : vector<1x32x128xf32> to vector<32x128xf32>
    %cst_111 = arith.constant dense<0.000000e+00> : vector<16x128xf32>
    %304 = tpu.matmul %235, %303, %cst_111 {dimension_numbers = #tpu.dot_dimension_numbers<[1], [0], [0], [1], [0, 0, 1, 1], [], []>} : vector<16x32xf32>, vector<32x128xf32>, vector<16x128xf32> -> vector<16x128xf32>
    %305 = vector.extract_strided_slice %304 {offsets = [0, 0], sizes = [16, 64], strides = [1, 1]} : vector<16x128xf32> to vector<16x64xf32>
    %306 = vector.extract_strided_slice %304 {offsets = [0, 64], sizes = [16, 64], strides = [1, 1]} : vector<16x128xf32> to vector<16x64xf32>
    %307 = arith.negf %305 : vector<16x64xf32>
    %308 = math.exp %307 : vector<16x64xf32>
    %cst_112 = arith.constant 1.000000e+00 : f32
    %309 = vector.broadcast %cst_112 : f32 to vector<16x64xf32>
    %310 = arith.addf %309, %308 : vector<16x64xf32>
    %311 = arith.divf %309, %310 : vector<16x64xf32>
    %312 = arith.mulf %305, %311 : vector<16x64xf32>
    %313 = arith.mulf %312, %306 : vector<16x64xf32>
    %c1_113 = arith.constant 1 : index
    %c0_114 = arith.constant 0 : index
    %c0_115 = arith.constant 0 : index
    %314 = vector.load %arg10[%c1_113, %c0_114, %c0_115] : memref<4x64x32xf32, #tpu.memory_space<vmem>>, vector<1x64x32xf32>
    %315 = vector.shape_cast %314 : vector<1x64x32xf32> to vector<64x32xf32>
    %cst_116 = arith.constant dense<0.000000e+00> : vector<16x32xf32>
    %316 = tpu.matmul %313, %315, %cst_116 {dimension_numbers = #tpu.dot_dimension_numbers<[1], [0], [0], [1], [0, 0, 1, 1], [], []>} : vector<16x64xf32>, vector<64x32xf32>, vector<16x32xf32> -> vector<16x32xf32>
    %317 = vector.extract_strided_slice %281 {offsets = [0, 1], sizes = [16, 1], strides = [1, 1]} : vector<16x4xf32> to vector<16x1xf32>
    %318 = vector.broadcast %317 : vector<16x1xf32> to vector<16x32xf32>
    %319 = arith.mulf %316, %318 : vector<16x32xf32>
    %320 = arith.addf %301, %319 : vector<16x32xf32>
    %c2 = arith.constant 2 : index
    %c0_117 = arith.constant 0 : index
    %c0_118 = arith.constant 0 : index
    %321 = vector.load %arg9[%c2, %c0_117, %c0_118] : memref<4x32x128xf32, #tpu.memory_space<vmem>>, vector<1x32x128xf32>
    %322 = vector.shape_cast %321 : vector<1x32x128xf32> to vector<32x128xf32>
    %cst_119 = arith.constant dense<0.000000e+00> : vector<16x128xf32>
    %323 = tpu.matmul %235, %322, %cst_119 {dimension_numbers = #tpu.dot_dimension_numbers<[1], [0], [0], [1], [0, 0, 1, 1], [], []>} : vector<16x32xf32>, vector<32x128xf32>, vector<16x128xf32> -> vector<16x128xf32>
    %324 = vector.extract_strided_slice %323 {offsets = [0, 0], sizes = [16, 64], strides = [1, 1]} : vector<16x128xf32> to vector<16x64xf32>
    %325 = vector.extract_strided_slice %323 {offsets = [0, 64], sizes = [16, 64], strides = [1, 1]} : vector<16x128xf32> to vector<16x64xf32>
    %326 = arith.negf %324 : vector<16x64xf32>
    %327 = math.exp %326 : vector<16x64xf32>
    %cst_120 = arith.constant 1.000000e+00 : f32
    %328 = vector.broadcast %cst_120 : f32 to vector<16x64xf32>
    %329 = arith.addf %328, %327 : vector<16x64xf32>
    %330 = arith.divf %328, %329 : vector<16x64xf32>
    %331 = arith.mulf %324, %330 : vector<16x64xf32>
    %332 = arith.mulf %331, %325 : vector<16x64xf32>
    %c2_121 = arith.constant 2 : index
    %c0_122 = arith.constant 0 : index
    %c0_123 = arith.constant 0 : index
    %333 = vector.load %arg10[%c2_121, %c0_122, %c0_123] : memref<4x64x32xf32, #tpu.memory_space<vmem>>, vector<1x64x32xf32>
    %334 = vector.shape_cast %333 : vector<1x64x32xf32> to vector<64x32xf32>
    %cst_124 = arith.constant dense<0.000000e+00> : vector<16x32xf32>
    %335 = tpu.matmul %332, %334, %cst_124 {dimension_numbers = #tpu.dot_dimension_numbers<[1], [0], [0], [1], [0, 0, 1, 1], [], []>} : vector<16x64xf32>, vector<64x32xf32>, vector<16x32xf32> -> vector<16x32xf32>
    %336 = vector.extract_strided_slice %281 {offsets = [0, 2], sizes = [16, 1], strides = [1, 1]} : vector<16x4xf32> to vector<16x1xf32>
    %337 = vector.broadcast %336 : vector<16x1xf32> to vector<16x32xf32>
    %338 = arith.mulf %335, %337 : vector<16x32xf32>
    %339 = arith.addf %320, %338 : vector<16x32xf32>
    %c3 = arith.constant 3 : index
    %c0_125 = arith.constant 0 : index
    %c0_126 = arith.constant 0 : index
    %340 = vector.load %arg9[%c3, %c0_125, %c0_126] : memref<4x32x128xf32, #tpu.memory_space<vmem>>, vector<1x32x128xf32>
    %341 = vector.shape_cast %340 : vector<1x32x128xf32> to vector<32x128xf32>
    %cst_127 = arith.constant dense<0.000000e+00> : vector<16x128xf32>
    %342 = tpu.matmul %235, %341, %cst_127 {dimension_numbers = #tpu.dot_dimension_numbers<[1], [0], [0], [1], [0, 0, 1, 1], [], []>} : vector<16x32xf32>, vector<32x128xf32>, vector<16x128xf32> -> vector<16x128xf32>
    %343 = vector.extract_strided_slice %342 {offsets = [0, 0], sizes = [16, 64], strides = [1, 1]} : vector<16x128xf32> to vector<16x64xf32>
    %344 = vector.extract_strided_slice %342 {offsets = [0, 64], sizes = [16, 64], strides = [1, 1]} : vector<16x128xf32> to vector<16x64xf32>
    %345 = arith.negf %343 : vector<16x64xf32>
    %346 = math.exp %345 : vector<16x64xf32>
    %cst_128 = arith.constant 1.000000e+00 : f32
    %347 = vector.broadcast %cst_128 : f32 to vector<16x64xf32>
    %348 = arith.addf %347, %346 : vector<16x64xf32>
    %349 = arith.divf %347, %348 : vector<16x64xf32>
    %350 = arith.mulf %343, %349 : vector<16x64xf32>
    %351 = arith.mulf %350, %344 : vector<16x64xf32>
    %c3_129 = arith.constant 3 : index
    %c0_130 = arith.constant 0 : index
    %c0_131 = arith.constant 0 : index
    %352 = vector.load %arg10[%c3_129, %c0_130, %c0_131] : memref<4x64x32xf32, #tpu.memory_space<vmem>>, vector<1x64x32xf32>
    %353 = vector.shape_cast %352 : vector<1x64x32xf32> to vector<64x32xf32>
    %cst_132 = arith.constant dense<0.000000e+00> : vector<16x32xf32>
    %354 = tpu.matmul %351, %353, %cst_132 {dimension_numbers = #tpu.dot_dimension_numbers<[1], [0], [0], [1], [0, 0, 1, 1], [], []>} : vector<16x64xf32>, vector<64x32xf32>, vector<16x32xf32> -> vector<16x32xf32>
    %355 = vector.extract_strided_slice %281 {offsets = [0, 3], sizes = [16, 1], strides = [1, 1]} : vector<16x4xf32> to vector<16x1xf32>
    %356 = vector.broadcast %355 : vector<16x1xf32> to vector<16x32xf32>
    %357 = arith.mulf %354, %356 : vector<16x32xf32>
    %358 = arith.addf %339, %357 : vector<16x32xf32>
    %359 = arith.addf %222, %358 : vector<16x32xf32>
    %c0_133 = arith.constant 0 : index
    %c0_134 = arith.constant 0 : index
    %360 = vector.load %arg11[%c0_133, %c0_134] : memref<16x32xf32, #tpu.memory_space<vmem>>, vector<16x32xf32>
    tpu.vector_store %arg11[%c0_133, %c0_134], %359 {strides = array<i32>} : memref<16x32xf32, #tpu.memory_space<vmem>>, vector<16x32xf32>,
    return
  }
}

</mosaic_0001>

<llo_original>
// kernel: tiny_mixtral_forward.5
$region0: #{tiny_mixtral_forward.5}
  #allocation0 [shape = 'u32[]', space=smem, size = 0x4, offset = 0x4, fixed_abs, tag = 'smem constant byte address 0x4 - core index']
  #allocation1 [shape = 'u32[144,128]{1,0:T(1,128)}', space=vmem, size = 0x12000, scoped, tag = 'internal scratch']
  %s0 = inlined_call_operand.vmem [shape: f32[16,32], index: 0, kind: input, shape index: {}]
  %s1 = inlined_call_operand.vmem [shape: f32[1,32], index: 1, kind: input, shape index: {}]
  %s2 = inlined_call_operand.vmem [shape: f32[32,64], index: 2, kind: input, shape index: {}]
  %s3 = inlined_call_operand.vmem [shape: f32[1,64], index: 3, kind: input, shape index: {}]
  %s4 = inlined_call_operand.hbm [shape: f32[16,64], index: 4, kind: output, shape index: {}]
  %s5 = sld [smem:[#allocation0]]
  $region26: #{tiny_mixtral_forward.5} parent=0
    _
  %s7 = ssub.s32 1, %s5
  %s8 = scalar_select 0, %s7, %s5
  $region1: #{tiny_mixtral_forward.5} parent=0
    #allocation2 [shape = 'u8[8192]{0}', space=vmem, size = 0x2000, scoped, tag = 'output window, operand 0, single buffered']
    #allocation3 [shape = 's32[1]{0}', space=sflag, size = 0x4, scoped, tag = 'scoped memory for tiny_mixtral_forward.5']
    %9 = vsyncpa [#allocation3], 0
    // Predicated region
    $region2: #{tiny_mixtral_forward.5} parent=1 // pred_check
      _
    $region3: #{tiny_mixtral_forward.5} parent=1 // pred_check_branch
      %11 = sbr.rel (0) target = $region5
    $region4: #{tiny_mixtral_forward.5} parent=1 // pred_region
      _
    $region5: #{tiny_mixtral_forward.5} parent=1 // pred_fallthru
      _
    // Predicated region
    $region6: #{tiny_mixtral_forward.5} parent=1 // pred_check
      _
    $region7: #{tiny_mixtral_forward.5} parent=1 // pred_check_branch
      %13 = sbr.rel (0) target = $region9
    $region8: #{tiny_mixtral_forward.5} parent=1 // pred_region
      _
    $region9: #{tiny_mixtral_forward.5} parent=1 // pred_fallthru
      _
    // Predicated region
    $region10: #{tiny_mixtral_forward.5} parent=1 // pred_check
      _
    $region11: #{tiny_mixtral_forward.5} parent=1 // pred_check_branch
      %15 = sbr.rel (0) target = $region13
    $region12: #{tiny_mixtral_forward.5} parent=1 // pred_region
      _
    $region13: #{tiny_mixtral_forward.5} parent=1 // pred_fallthru
      _
    // Predicated region
    $region14: #{tiny_mixtral_forward.5} parent=1 // pred_check
      _
    $region15: #{tiny_mixtral_forward.5} parent=1 // pred_check_branch
      %17 = sbr.rel (0) target = $region17
    $region16: #{tiny_mixtral_forward.5} parent=1 // pred_region
      _
    $region17: #{tiny_mixtral_forward.5} parent=1 // pred_fallthru
      _
    %v18 = vld [vmem:[%s0] sm:$0xff]
    %v19 = vld [vmem:[%s0 + $0x8] sm:$0xff]
    %v20 = vmul.f32 %v18, %v18
    %v21 = vmul.f32 %v19, %v19
    %vm22 = vcmask 261120
    %v23 = vsel %vm22, %v20, 0.0
    %24 = vadd.xlane.f32.xlu0 %v23
    %v25 = vpop.xlane.xlu0 %24
    %v26 = vsel %vm22, %v21, 0.0
    %27 = vadd.xlane.f32.xlu0 %v26
    %v28 = vpop.xlane.xlu0 %27
    %v29 = vrcp.pop 32.0
    %v30 = vmul.f32 %v25, %v29
    %v31 = vmul.f32 %v28, %v29
    %v32 = vadd.f32 %v30, 1e-05
    %v33 = vadd.f32 %v31, 1e-05
    %v34 = vrsqrt.pop %v32
    %v35 = vrsqrt.pop %v33
    %v36 = vmul.f32 %v18, %v34
    %v37 = vmul.f32 %v19, %v35
    %v38 = vld [vmem:[%s1] sm:$0x1]
    %v40 = vlaneseq
    %v41 = vshrl.u32 %v40, 7
    %v42 = vsub.s32 0, %v41
    %v43 = vrot.slane %v38, %v42
    %v45 = vmul.f32 %v36, %v43
    %v46 = vmul.f32 %v37, %v43
    %v47 = vld [vmem:[%s2] sm:$0xff]
    %v48 = vld [vmem:[%s2 + $0x8] sm:$0xff]
    %v49 = vld [vmem:[%s2 + $0x10] sm:$0xff]
    %v50 = vld [vmem:[%s2 + $0x18] sm:$0xff]
    %v51 = vld [vmem:[%s3] sm:$0x1]
    %v53 = vlaneseq
    %v54 = vshrl.u32 %v53, 7
    %v55 = vsub.s32 0, %v54
    %v56 = vrot.slane %v51, %v55
    %v59 = vsel %vm22, %v45, 0
    %v62 = vsel %vm22, %v46, 0
    %64 = vmatprep.subr.mxu0 0.0
    %65 = vmatpush1.msra.mxu0 %v47
    %66 = vmatprep.subr.mxu0 0.0
    %67 = vmatpush1.msra.mxu0 %v48
    %68 = vmatprep.subr.mxu0 0.0
    %69 = vmatpush1.msra.mxu0 %v49
    %70 = vmatprep.subr.mxu0 0.0
    %71 = vmatpush1.msra.mxu0 %v50
    %72 = vmatprep.subr.mxu0 0.0
    %73 = vmatpush1.msra.mxu0 0.0
    %74 = vmatprep.subr.mxu0 0.0
    %75 = vmatpush1.msra.mxu0 0.0
    %76 = vmatprep.subr.mxu0 0.0
    %77 = vmatpush1.msra.mxu0 0.0
    %78 = vmatprep.subr.mxu0 0.0
    %79 = vmatpush1.msra.mxu0 0.0
    %80 = vmatprep.subr.mxu0 0.0
    %81 = vmatpush1.msra.mxu0 0.0
    %82 = vmatprep.subr.mxu0 0.0
    %83 = vmatpush1.msra.mxu0 0.0
    %84 = vmatprep.subr.mxu0 0.0
    %85 = vmatpush1.msra.mxu0 0.0
    %86 = vmatprep.subr.mxu0 0.0
    %87 = vmatpush1.msra.mxu0 0.0
    %88 = vmatprep.subr.mxu0 0.0
    %89 = vmatpush1.msra.mxu0 0.0
    %90 = vmatprep.subr.mxu0 0.0
    %91 = vmatpush1.msra.mxu0 0.0
    %92 = vmatprep.subr.mxu0 0.0
    %93 = vmatpush1.msra.mxu0 0.0
    %94 = vmatprep.subr.mxu0 0.0
    %95 = vmatpush1.msra.mxu0 0.0
    %96 = vmatprep.subr.mxu0 0.0
    %97 = vmatpush1.msra.mxu0 0.0
    %98 = vmatprep.subr.mxu0 0.0
    %99 = vmatpush1.msra.mxu0 0.0
    %100 = vmatprep.subr.mxu0 0.0
    %101 = vmatpush1.msra.mxu0 0.0
    %102 = vmatprep.subr.mxu0 0.0
    %103 = vmatpush1.msra.mxu0 0.0
    %104 = vmatprep.subr.mxu0 0.0
    %105 = vmatpush1.msra.mxu0 0.0
    %106 = vmatprep.subr.mxu0 0.0
    %107 = vmatpush1.msra.mxu0 0.0
    %108 = vmatprep.subr.mxu0 0.0
    %109 = vmatpush1.msra.mxu0 0.0
    %110 = vmatprep.subr.mxu0 0.0
    %111 = vmatpush1.msra.mxu0 0.0
    %112 = vmatprep.subr.mxu0 0.0
    %113 = vmatpush1.msra.mxu0 0.0
    %114 = vmatprep.subr.mxu0 0.0
    %115 = vmatpush1.msra.mxu0 0.0
    %116 = vmatprep.subr.mxu0 0.0
    %117 = vmatpush1.msra.mxu0 0.0
    %118 = vmatprep.subr.mxu0 0.0
    %119 = vmatpush1.msra.mxu0 0.0
    %120 = vmatprep.subr.mxu0 0.0
    %121 = vmatpush1.msra.mxu0 0.0
    %122 = vmatprep.subr.mxu0 0.0
    %123 = vmatpush1.msra.mxu0 0.0
    %124 = vmatprep.subr.mxu0 0.0
    %125 = vmatpush1.msra.mxu0 0.0
    %126 = vmatprep.subr.mxu0 0.0
    %127 = vmatpush1.msra.mxu0 0.0
    %128 = vmatprep.mubr.f32.mxu0 0.0
    %129 = vmatmul.mubr.f32.gmra.mrb[0].mxu0 %v59
    %v130 = vpop.f32.mrb[0].mxu0
    %v131 = vadd.f32 %v56, %v130
    %v132 = vpop.f32.mrb[0].mxu0
    %133 = vmatprep.mubr.f32.mxu0 0.0
    %134 = vmatmul.mubr.f32.gmra.mrb[0].mxu0 %v62
    %v135 = vpop.f32.mrb[0].mxu0
    %v136 = vadd.f32 %v56, %v135
    %v137 = vpop.f32.mrb[0].mxu0
    %138 = vdwg.mxu0
    %vm139 = vcmask 523264
    %140 = vst.msk [vmem:[#allocation2] sm:$0xff] %vm139, %v131
    %141 = vst.msk [vmem:[#allocation2 + $0x8] sm:$0xff] %vm139, %v136
    // Predicated region
    $region18: #{tiny_mixtral_forward.5} parent=1 // pred_check
      _
    $region19: #{tiny_mixtral_forward.5} parent=1 // pred_check_branch
      %143 = sbr.rel (0) target = $region21
    $region20: #{tiny_mixtral_forward.5} parent=1 // pred_region
      %s145 = ssub.s32 256, 256
      %146 = vsyncadd [#allocation3], %s145
      %s147 = sshll.u32 [#allocation2], 4
      %s148 = int_to_ptr.vmem [resolvable:$true] %s147
      %153 = dma.vmem_to_hbm [thread:$0]  %s148, 256, %s4, [#allocation3], 128, 128, 8
    $region21: #{tiny_mixtral_forward.5} parent=1 // pred_fallthru
      _
    // Predicated region
    $region22: #{tiny_mixtral_forward.5} parent=1 // pred_check
      _
    $region23: #{tiny_mixtral_forward.5} parent=1 // pred_check_branch
      %155 = sbr.rel (0) target = $region25
    $region24: #{tiny_mixtral_forward.5} parent=1 // pred_region
      %156 = dma.done [#allocation3], 256
    $region25: #{tiny_mixtral_forward.5} parent=1 // pred_fallthru
      _
    %157 = vsyncpa [#allocation3], 1

// kernel: tiny_mixtral_forward.3
$region0: #{tiny_mixtral_forward.3}
  #allocation0 [shape = 'u32[]', space=smem, size = 0x4, offset = 0x4, fixed_abs, tag = 'smem constant byte address 0x4 - core index']
  #allocation1 [shape = 'u32[144,128]{1,0:T(1,128)}', space=vmem, size = 0x12000, scoped, tag = 'internal scratch']
  %s0 = inlined_call_operand.vmem [shape: f32[16,32], index: 0, kind: input, shape index: {}]
  %s1 = inlined_call_operand.vmem [shape: f32[16,32], index: 1, kind: input, shape index: {}]
  %s2 = inlined_call_operand.vmem [shape: f32[16,32], index: 2, kind: input, shape index: {}]
  %s3 = inlined_call_operand.vmem [shape: f32[32,32], index: 3, kind: input, shape index: {}]
  %s4 = inlined_call_operand.vmem [shape: f32[1,32], index: 4, kind: input, shape index: {}]
  %s5 = inlined_call_operand.vmem [shape: f32[32,64], index: 5, kind: input, shape index: {}]
  %s6 = inlined_call_operand.vmem [shape: f32[32,32], index: 6, kind: input, shape index: {}]
  %s7 = inlined_call_operand.vmem [shape: f32[1,32], index: 7, kind: input, shape index: {}]
  %s8 = inlined_call_operand.vmem [shape: f32[32,4], index: 8, kind: input, shape index: {}]
  %s9 = inlined_call_operand.vmem [shape: f32[4,32,128], index: 9, kind: input, shape index: {}]
  %s10 = inlined_call_operand.vmem [shape: f32[4,64,32], index: 10, kind: input, shape index: {}]
  %s11 = inlined_call_operand.vmem [shape: f32[16,32], index: 11, kind: output, shape index: {}]
  %s12 = sld [smem:[#allocation0]]
  $region54: #{tiny_mixtral_forward.3} parent=0
    _
  %s14 = ssub.s32 1, %s12
  %s15 = scalar_select 0, %s14, %s12
  // Predicated region
  $region2: #{tiny_mixtral_forward.3} parent=0 // pred_check
    _
  $region3: #{tiny_mixtral_forward.3} parent=0 // pred_check_branch
    %17 = sbr.rel (0) target = $region5
  $region4: #{tiny_mixtral_forward.3} parent=0 // pred_region
    _
  $region5: #{tiny_mixtral_forward.3} parent=0 // pred_fallthru
    _
  // Predicated region
  $region6: #{tiny_mixtral_forward.3} parent=0 // pred_check
    _
  $region7: #{tiny_mixtral_forward.3} parent=0 // pred_check_branch
    %19 = sbr.rel (0) target = $region9
  $region8: #{tiny_mixtral_forward.3} parent=0 // pred_region
    _
  $region9: #{tiny_mixtral_forward.3} parent=0 // pred_fallthru
    _
  // Predicated region
  $region10: #{tiny_mixtral_forward.3} parent=0 // pred_check
    _
  $region11: #{tiny_mixtral_forward.3} parent=0 // pred_check_branch
    %21 = sbr.rel (0) target = $region13
  $region12: #{tiny_mixtral_forward.3} parent=0 // pred_region
    _
  $region13: #{tiny_mixtral_forward.3} parent=0 // pred_fallthru
    _
  // Predicated region
  $region14: #{tiny_mixtral_forward.3} parent=0 // pred_check
    _
  $region15: #{tiny_mixtral_forward.3} parent=0 // pred_check_branch
    %23 = sbr.rel (0) target = $region17
  $region16: #{tiny_mixtral_forward.3} parent=0 // pred_region
    _
  $region17: #{tiny_mixtral_forward.3} parent=0 // pred_fallthru
    _
  // Predicated region
  $region18: #{tiny_mixtral_forward.3} parent=0 // pred_check
    _
  $region19: #{tiny_mixtral_forward.3} parent=0 // pred_check_branch
    %25 = sbr.rel (0) target = $region21
  $region20: #{tiny_mixtral_forward.3} parent=0 // pred_region
    _
  $region21: #{tiny_mixtral_forward.3} parent=0 // pred_fallthru
    _
  // Predicated region
  $region22: #{tiny_mixtral_forward.3} parent=0 // pred_check
    _
  $region23: #{tiny_mixtral_forward.3} parent=0 // pred_check_branch
    %27 = sbr.rel (0) target = $region25
  $region24: #{tiny_mixtral_forward.3} parent=0 // pred_region
    _
  $region25: #{tiny_mixtral_forward.3} parent=0 // pred_fallthru
    _
  // Predicated region
  $region26: #{tiny_mixtral_forward.3} parent=0 // pred_check
    _
  $region27: #{tiny_mixtral_forward.3} parent=0 // pred_check_branch
    %29 = sbr.rel (0) target = $region29
  $region28: #{tiny_mixtral_forward.3} parent=0 // pred_region
    _
  $region29: #{tiny_mixtral_forward.3} parent=0 // pred_fallthru
    _
  // Predicated region
  $region30: #{tiny_mixtral_forward.3} parent=0 // pred_check
    _
  $region31: #{tiny_mixtral_forward.3} parent=0 // pred_check_branch
    %31 = sbr.rel (0) target = $region33
  $region32: #{tiny_mixtral_forward.3} parent=0 // pred_region
    _
  $region33: #{tiny_mixtral_forward.3} parent=0 // pred_fallthru
    _
  // Predicated region
  $region34: #{tiny_mixtral_forward.3} parent=0 // pred_check
    _
  $region35: #{tiny_mixtral_forward.3} parent=0 // pred_check_branch
    %33 = sbr.rel (0) target = $region37
  $region36: #{tiny_mixtral_forward.3} parent=0 // pred_region
    _
  $region37: #{tiny_mixtral_forward.3} parent=0 // pred_fallthru
    _
  // Predicated region
  $region38: #{tiny_mixtral_forward.3} parent=0 // pred_check
    _
  $region39: #{tiny_mixtral_forward.3} parent=0 // pred_check_branch
    %35 = sbr.rel (0) target = $region41
  $region40: #{tiny_mixtral_forward.3} parent=0 // pred_region
    _
  $region41: #{tiny_mixtral_forward.3} parent=0 // pred_fallthru
    _
  // Predicated region
  $region42: #{tiny_mixtral_forward.3} parent=0 // pred_check
    _
  $region43: #{tiny_mixtral_forward.3} parent=0 // pred_check_branch
    %37 = sbr.rel (0) target = $region45
  $region44: #{tiny_mixtral_forward.3} parent=0 // pred_region
    _
  $region45: #{tiny_mixtral_forward.3} parent=0 // pred_fallthru
    _
  %v38 = vld [vmem:[%s0] sm:$0xff]
  %v39 = vld [vmem:[%s0 + $0x8] sm:$0xff]
  %v40 = vmul.f32 %v38, %v38
  %v41 = vmul.f32 %v39, %v39
  %vm42 = vcmask 261120
  %v43 = vsel %vm42, %v40, 0.0
  %44 = vadd.xlane.f32.xlu0 %v43
  %v45 = vpop.xlane.xlu0 %44
  %v46 = vsel %vm42, %v41, 0.0
  %47 = vadd.xlane.f32.xlu0 %v46
  %v48 = vpop.xlane.xlu0 %47
  %v49 = vrcp.pop 32.0
  %v50 = vmul.f32 %v45, %v49
  %v51 = vmul.f32 %v48, %v49
  %v52 = vadd.f32 %v50, 1e-05
  %v53 = vadd.f32 %v51, 1e-05
  %v54 = vrsqrt.pop %v52
  %v55 = vrsqrt.pop %v53
  %v56 = vmul.f32 %v38, %v54
  %v57 = vmul.f32 %v39, %v55
  %v58 = vld [vmem:[%s4] sm:$0x1]
  %v60 = vlaneseq
  %v61 = vshrl.u32 %v60, 7
  %v62 = vsub.s32 0, %v61
  %v63 = vrot.slane %v58, %v62
  %v65 = vmul.f32 %v56, %v63
  %v66 = vmul.f32 %v57, %v63
  %v67 = vld [vmem:[%s5] sm:$0xff]
  %v68 = vld [vmem:[%s5 + $0x8] sm:$0xff]
  %v69 = vld [vmem:[%s5 + $0x10] sm:$0xff]
  %v70 = vld [vmem:[%s5 + $0x18] sm:$0xff]
  %v72 = vsel %vm42, %v65, 0
  %v75 = vsel %vm42, %v66, 0
  %77 = vmatprep.subr.mxu0 0.0
  %78 = vmatpush1.msra.mxu0 %v67
  %79 = vmatprep.subr.mxu0 0.0
  %80 = vmatpush1.msra.mxu0 %v68
  %81 = vmatprep.subr.mxu0 0.0
  %82 = vmatpush1.msra.mxu0 %v69
  %83 = vmatprep.subr.mxu0 0.0
  %84 = vmatpush1.msra.mxu0 %v70
  %85 = vmatprep.subr.mxu0 0.0
  %86 = vmatpush1.msra.mxu0 0.0
  %87 = vmatprep.subr.mxu0 0.0
  %88 = vmatpush1.msra.mxu0 0.0
  %89 = vmatprep.subr.mxu0 0.0
  %90 = vmatpush1.msra.mxu0 0.0
  %91 = vmatprep.subr.mxu0 0.0
  %92 = vmatpush1.msra.mxu0 0.0
  %93 = vmatprep.subr.mxu0 0.0
  %94 = vmatpush1.msra.mxu0 0.0
  %95 = vmatprep.subr.mxu0 0.0
  %96 = vmatpush1.msra.mxu0 0.0
  %97 = vmatprep.subr.mxu0 0.0
  %98 = vmatpush1.msra.mxu0 0.0
  %99 = vmatprep.subr.mxu0 0.0
  %100 = vmatpush1.msra.mxu0 0.0
  %101 = vmatprep.subr.mxu0 0.0
  %102 = vmatpush1.msra.mxu0 0.0
  %103 = vmatprep.subr.mxu0 0.0
  %104 = vmatpush1.msra.mxu0 0.0
  %105 = vmatprep.subr.mxu0 0.0
  %106 = vmatpush1.msra.mxu0 0.0
  %107 = vmatprep.subr.mxu0 0.0
  %108 = vmatpush1.msra.mxu0 0.0
  %109 = vmatprep.subr.mxu0 0.0
  %110 = vmatpush1.msra.mxu0 0.0
  %111 = vmatprep.subr.mxu0 0.0
  %112 = vmatpush1.msra.mxu0 0.0
  %113 = vmatprep.subr.mxu0 0.0
  %114 = vmatpush1.msra.mxu0 0.0
  %115 = vmatprep.subr.mxu0 0.0
  %116 = vmatpush1.msra.mxu0 0.0
  %117 = vmatprep.subr.mxu0 0.0
  %118 = vmatpush1.msra.mxu0 0.0
  %119 = vmatprep.subr.mxu0 0.0
  %120 = vmatpush1.msra.mxu0 0.0
  %121 = vmatprep.subr.mxu0 0.0
  %122 = vmatpush1.msra.mxu0 0.0
  %123 = vmatprep.subr.mxu0 0.0
  %124 = vmatpush1.msra.mxu0 0.0
  %125 = vmatprep.subr.mxu0 0.0
  %126 = vmatpush1.msra.mxu0 0.0
  %127 = vmatprep.subr.mxu0 0.0
  %128 = vmatpush1.msra.mxu0 0.0
  %129 = vmatprep.subr.mxu0 0.0
  %130 = vmatpush1.msra.mxu0 0.0
  %131 = vmatprep.subr.mxu0 0.0
  %132 = vmatpush1.msra.mxu0 0.0
  %133 = vmatprep.subr.mxu0 0.0
  %134 = vmatpush1.msra.mxu0 0.0
  %135 = vmatprep.subr.mxu0 0.0
  %136 = vmatpush1.msra.mxu0 0.0
  %137 = vmatprep.subr.mxu0 0.0
  %138 = vmatpush1.msra.mxu0 0.0
  %139 = vmatprep.subr.mxu0 0.0
  %140 = vmatpush1.msra.mxu0 0.0
  %141 = vmatprep.mubr.f32.mxu0 0.0
  %142 = vmatmul.mubr.f32.gmra.mrb[0].mxu0 %v72
  %v143 = vpop.f32.mrb[0].mxu0
  %v144 = vadd.f32 0.0, %v143
  %v145 = vpop.f32.mrb[0].mxu0
  %146 = vmatprep.mubr.f32.mxu0 0.0
  %147 = vmatmul.mubr.f32.gmra.mrb[0].mxu0 %v75
  %v148 = vpop.f32.mrb[0].mxu0
  %v149 = vadd.f32 0.0, %v148
  %v150 = vpop.f32.mrb[0].mxu0
  %151 = vdwg.mxu0
  %v152 = vld [vmem:[%s1] sm:$0xff]
  %v153 = vld [vmem:[%s1 + $0x8] sm:$0xff]
  %v154 = vld [vmem:[%s2] sm:$0xff]
  %v155 = vld [vmem:[%s2 + $0x8] sm:$0xff]
  %v156 = vld [vmem:[%s3] sm:$0xff]
  %v157 = vld [vmem:[%s3 + $0x8] sm:$0xff]
  %v158 = vld [vmem:[%s3 + $0x10] sm:$0xff]
  %v159 = vld [vmem:[%s3 + $0x18] sm:$0xff]
  %v160 = vmul.f32 %v144, %v152
  %v161 = vmul.f32 %v149, %v153
  %v163 = vsel %vm42, %v144, 0
  %v166 = vsel %vm42, %v149, 0
  %168 = vmatprep.subr.mxu0 0.0
  %169 = vmatpush1.msra.mxu0 %v156
  %170 = vmatprep.subr.mxu0 0.0
  %171 = vmatpush1.msra.mxu0 %v157
  %172 = vmatprep.subr.mxu0 0.0
  %173 = vmatpush1.msra.mxu0 %v158
  %174 = vmatprep.subr.mxu0 0.0
  %175 = vmatpush1.msra.mxu0 %v159
  %176 = vmatprep.subr.mxu0 0.0
  %177 = vmatpush1.msra.mxu0 0.0
  %178 = vmatprep.subr.mxu0 0.0
  %179 = vmatpush1.msra.mxu0 0.0
  %180 = vmatprep.subr.mxu0 0.0
  %181 = vmatpush1.msra.mxu0 0.0
  %182 = vmatprep.subr.mxu0 0.0
  %183 = vmatpush1.msra.mxu0 0.0
  %184 = vmatprep.subr.mxu0 0.0
  %185 = vmatpush1.msra.mxu0 0.0
  %186 = vmatprep.subr.mxu0 0.0
  %187 = vmatpush1.msra.mxu0 0.0
  %188 = vmatprep.subr.mxu0 0.0
  %189 = vmatpush1.msra.mxu0 0.0
  %190 = vmatprep.subr.mxu0 0.0
  %191 = vmatpush1.msra.mxu0 0.0
  %192 = vmatprep.subr.mxu0 0.0
  %193 = vmatpush1.msra.mxu0 0.0
  %194 = vmatprep.subr.mxu0 0.0
  %195 = vmatpush1.msra.mxu0 0.0
  %196 = vmatprep.subr.mxu0 0.0
  %197 = vmatpush1.msra.mxu0 0.0
  %198 = vmatprep.subr.mxu0 0.0
  %199 = vmatpush1.msra.mxu0 0.0
  %200 = vmatprep.subr.mxu0 0.0
  %201 = vmatpush1.msra.mxu0 0.0
  %202 = vmatprep.subr.mxu0 0.0
  %203 = vmatpush1.msra.mxu0 0.0
  %204 = vmatprep.subr.mxu0 0.0
  %205 = vmatpush1.msra.mxu0 0.0
  %206 = vmatprep.subr.mxu0 0.0
  %207 = vmatpush1.msra.mxu0 0.0
  %208 = vmatprep.subr.mxu0 0.0
  %209 = vmatpush1.msra.mxu0 0.0
  %210 = vmatprep.subr.mxu0 0.0
  %211 = vmatpush1.msra.mxu0 0.0
  %212 = vmatprep.subr.mxu0 0.0
  %213 = vmatpush1.msra.mxu0 0.0
  %214 = vmatprep.subr.mxu0 0.0
  %215 = vmatpush1.msra.mxu0 0.0
  %216 = vmatprep.subr.mxu0 0.0
  %217 = vmatpush1.msra.mxu0 0.0
  %218 = vmatprep.subr.mxu0 0.0
  %219 = vmatpush1.msra.mxu0 0.0
  %220 = vmatprep.subr.mxu0 0.0
  %221 = vmatpush1.msra.mxu0 0.0
  %222 = vmatprep.subr.mxu0 0.0
  %223 = vmatpush1.msra.mxu0 0.0
  %224 = vmatprep.subr.mxu0 0.0
  %225 = vmatpush1.msra.mxu0 0.0
  %226 = vmatprep.subr.mxu0 0.0
  %227 = vmatpush1.msra.mxu0 0.0
  %228 = vmatprep.subr.mxu0 0.0
  %229 = vmatpush1.msra.mxu0 0.0
  %230 = vmatprep.subr.mxu0 0.0
  %231 = vmatpush1.msra.mxu0 0.0
  %232 = vmatprep.mubr.f32.mxu0 0.0
  %233 = vmatmul.mubr.f32.gmra.mrb[0].mxu0 %v163
  %v234 = vpop.f32.mrb[0].mxu0
  %v235 = vadd.f32 0.0, %v234
  %v236 = vpop.f32.mrb[0].mxu0
  %237 = vmatprep.mubr.f32.mxu0 0.0
  %238 = vmatmul.mubr.f32.gmra.mrb[0].mxu0 %v166
  %v239 = vpop.f32.mrb[0].mxu0
  %v240 = vadd.f32 0.0, %v239
  %v241 = vpop.f32.mrb[0].mxu0
  %242 = vdwg.mxu0
  %v243 = vmul.f32 %v235, %v154
  %v244 = vmul.f32 %v240, %v155
  %v245 = vadd.f32 %v160, %v243
  %v246 = vadd.f32 %v161, %v244
  %249 = vrot.lane.b32.xlu0 %v152, 32
  %v250 = vpop.permute.xlu0 %249
  %251 = vrot.lane.b32.xlu0 %v153, 32
  %v252 = vpop.permute.xlu0 %251
  %v255 = vmul.f32 %v144, %v250
  %v256 = vmul.f32 %v149, %v252
  %257 = vrot.lane.b32.xlu0 %v144, 96
  %v258 = vpop.permute.xlu0 %257
  %259 = vrot.lane.b32.xlu0 %v149, 96
  %v260 = vpop.permute.xlu0 %259
  %vm261 = vcmask 130048
  %v262 = vsel %vm261, %v258, 0
  %v264 = vsel %vm261, %v260, 0
  %266 = vmatprep.subr.mxu0 0.0
  %267 = vmatpush1.msra.mxu0 %v156
  %268 = vmatprep.subr.mxu0 0.0
  %269 = vmatpush1.msra.mxu0 %v157
  %270 = vmatprep.subr.mxu0 0.0
  %271 = vmatpush1.msra.mxu0 0.0
  %272 = vmatprep.subr.mxu0 0.0
  %273 = vmatpush1.msra.mxu0 0.0
  %274 = vmatprep.subr.mxu0 0.0
  %275 = vmatpush1.msra.mxu0 0.0
  %276 = vmatprep.subr.mxu0 0.0
  %277 = vmatpush1.msra.mxu0 0.0
  %278 = vmatprep.subr.mxu0 0.0
  %279 = vmatpush1.msra.mxu0 0.0
  %280 = vmatprep.subr.mxu0 0.0
  %281 = vmatpush1.msra.mxu0 0.0
  %282 = vmatprep.subr.mxu0 0.0
  %283 = vmatpush1.msra.mxu0 0.0
  %284 = vmatprep.subr.mxu0 0.0
  %285 = vmatpush1.msra.mxu0 0.0
  %286 = vmatprep.subr.mxu0 0.0
  %287 = vmatpush1.msra.mxu0 0.0
  %288 = vmatprep.subr.mxu0 0.0
  %289 = vmatpush1.msra.mxu0 0.0
  %290 = vmatprep.subr.mxu0 0.0
  %291 = vmatpush1.msra.mxu0 0.0
  %292 = vmatprep.subr.mxu0 0.0
  %293 = vmatpush1.msra.mxu0 0.0
  %294 = vmatprep.subr.mxu0 0.0
  %295 = vmatpush1.msra.mxu0 0.0
  %296 = vmatprep.subr.mxu0 0.0
  %297 = vmatpush1.msra.mxu0 0.0
  %298 = vmatprep.subr.mxu0 0.0
  %299 = vmatpush1.msra.mxu0 0.0
  %300 = vmatprep.subr.mxu0 0.0
  %301 = vmatpush1.msra.mxu0 0.0
  %302 = vmatprep.subr.mxu0 0.0
  %303 = vmatpush1.msra.mxu0 0.0
  %304 = vmatprep.subr.mxu0 0.0
  %305 = vmatpush1.msra.mxu0 0.0
  %306 = vmatprep.subr.mxu0 0.0
  %307 = vmatpush1.msra.mxu0 0.0
  %308 = vmatprep.subr.mxu0 0.0
  %309 = vmatpush1.msra.mxu0 0.0
  %310 = vmatprep.subr.mxu0 0.0
  %311 = vmatpush1.msra.mxu0 0.0
  %312 = vmatprep.subr.mxu0 0.0
  %313 = vmatpush1.msra.mxu0 0.0
  %314 = vmatprep.subr.mxu0 0.0
  %315 = vmatpush1.msra.mxu0 0.0
  %316 = vmatprep.subr.mxu0 0.0
  %317 = vmatpush1.msra.mxu0 0.0
  %318 = vmatprep.subr.mxu0 0.0
  %319 = vmatpush1.msra.mxu0 0.0
  %320 = vmatprep.subr.mxu0 0.0
  %321 = vmatpush1.msra.mxu0 0.0
  %322 = vmatprep.subr.mxu0 0.0
  %323 = vmatpush1.msra.mxu0 0.0
  %324 = vmatprep.subr.mxu0 0.0
  %325 = vmatpush1.msra.mxu0 0.0
  %326 = vmatprep.subr.mxu0 0.0
  %327 = vmatpush1.msra.mxu0 0.0
  %328 = vmatprep.subr.mxu0 0.0
  %329 = vmatpush1.msra.mxu0 0.0
  %330 = vmatprep.mubr.f32.mxu0 0.0
  %331 = vmatmul.mubr.f32.gmra.mrb[0].mxu0 %v262
  %v332 = vpop.f32.mrb[0].mxu0
  %v333 = vadd.f32 0.0, %v332
  %v334 = vpop.f32.mrb[0].mxu0
  %335 = vmatprep.mubr.f32.mxu0 0.0
  %336 = vmatmul.mubr.f32.gmra.mrb[0].mxu0 %v264
  %v337 = vpop.f32.mrb[0].mxu0
  %v338 = vadd.f32 0.0, %v337
  %v339 = vpop.f32.mrb[0].mxu0
  %340 = vdwg.mxu0
  %v341 = vmul.f32 %v333, %v154
  %v342 = vmul.f32 %v338, %v155
  %345 = vrot.lane.b32.xlu0 %v341, 32
  %v346 = vpop.permute.xlu0 %345
  %347 = vrot.lane.b32.xlu0 %v342, 32
  %v348 = vpop.permute.xlu0 %347
  %v351 = vadd.f32 %v255, %v346
  %v352 = vadd.f32 %v256, %v348
  %v353 = vlaneseq
  %v354 = vshrl.u32 %v353, 7
  %v355 = vlaneseq
  %v356 = vand.u32 %v355, 127
  %vm357 = vcmp.le.s32.totalorder %v356, %v354
  %v358 = vsub.s32 %v354, %v356
  %vm359 = vcmp.lt.s32.totalorder %v358, 16
  %vm360 = vmand %vm357, %vm359
  %v361 = vld [vmem:[%s6] sm:$0xff]
  %v362 = vld [vmem:[%s6 + $0x8] sm:$0xff]
  %v363 = vld [vmem:[%s6 + $0x10] sm:$0xff]
  %v364 = vld [vmem:[%s6 + $0x18] sm:$0xff]
  %366 = vrot.lane.b32.xlu0 %v351, 96
  %v367 = vpop.permute.xlu0 %366
  %vm368 = vcmask 64512
  %v370 = vsel %vm368, %v245, 0
  %v372 = vsel %vm368, %v367, 0
  %374 = vmatprep.subr.mxu0 0.0
  %375 = vmatpush1.xpose.msra.mxu0 %v372
  %376 = vmatprep.subr.mxu0 0.0
  %377 = vmatpush1.xpose.msra.mxu0 0.0
  %378 = vmatprep.subr.mxu0 0.0
  %379 = vmatpush1.xpose.msra.mxu0 0.0
  %380 = vmatprep.subr.mxu0 0.0
  %381 = vmatpush1.xpose.msra.mxu0 0.0
  %382 = vmatprep.subr.mxu0 0.0
  %383 = vmatpush1.xpose.msra.mxu0 0.0
  %384 = vmatprep.subr.mxu0 0.0
  %385 = vmatpush1.xpose.msra.mxu0 0.0
  %386 = vmatprep.subr.mxu0 0.0
  %387 = vmatpush1.xpose.msra.mxu0 0.0
  %388 = vmatprep.subr.mxu0 0.0
  %389 = vmatpush1.xpose.msra.mxu0 0.0
  %390 = vmatprep.subr.mxu0 0.0
  %391 = vmatpush1.xpose.msra.mxu0 0.0
  %392 = vmatprep.subr.mxu0 0.0
  %393 = vmatpush1.xpose.msra.mxu0 0.0
  %394 = vmatprep.subr.mxu0 0.0
  %395 = vmatpush1.xpose.msra.mxu0 0.0
  %396 = vmatprep.subr.mxu0 0.0
  %397 = vmatpush1.xpose.msra.mxu0 0.0
  %398 = vmatprep.subr.mxu0 0.0
  %399 = vmatpush1.xpose.msra.mxu0 0.0
  %400 = vmatprep.subr.mxu0 0.0
  %401 = vmatpush1.xpose.msra.mxu0 0.0
  %402 = vmatprep.subr.mxu0 0.0
  %403 = vmatpush1.xpose.msra.mxu0 0.0
  %404 = vmatprep.subr.mxu0 0.0
  %405 = vmatpush1.xpose.msra.mxu0 0.0
  %406 = vmatprep.subr.mxu0 0.0
  %407 = vmatpush1.xpose.msra.mxu0 0.0
  %408 = vmatprep.subr.mxu0 0.0
  %409 = vmatpush1.xpose.msra.mxu0 0.0
  %410 = vmatprep.subr.mxu0 0.0
  %411 = vmatpush1.xpose.msra.mxu0 0.0
  %412 = vmatprep.subr.mxu0 0.0
  %413 = vmatpush1.xpose.msra.mxu0 0.0
  %414 = vmatprep.subr.mxu0 0.0
  %415 = vmatpush1.xpose.msra.mxu0 0.0
  %416 = vmatprep.subr.mxu0 0.0
  %417 = vmatpush1.xpose.msra.mxu0 0.0
  %418 = vmatprep.subr.mxu0 0.0
  %419 = vmatpush1.xpose.msra.mxu0 0.0
  %420 = vmatprep.subr.mxu0 0.0
  %421 = vmatpush1.xpose.msra.mxu0 0.0
  %422 = vmatprep.subr.mxu0 0.0
  %423 = vmatpush1.xpose.msra.mxu0 0.0
  %424 = vmatprep.subr.mxu0 0.0
  %425 = vmatpush1.xpose.msra.mxu0 0.0
  %426 = vmatprep.subr.mxu0 0.0
  %427 = vmatpush1.xpose.msra.mxu0 0.0
  %428 = vmatprep.subr.mxu0 0.0
  %429 = vmatpush1.xpose.msra.mxu0 0.0
  %430 = vmatprep.subr.mxu0 0.0
  %431 = vmatpush1.xpose.msra.mxu0 0.0
  %432 = vmatprep.subr.mxu0 0.0
  %433 = vmatpush1.xpose.msra.mxu0 0.0
  %434 = vmatprep.subr.mxu0 0.0
  %435 = vmatpush1.xpose.msra.mxu0 0.0
  %436 = vmatprep.subr.mxu0 0.0
  %437 = vmatpush1.xpose.msra.mxu0 0.0
  %438 = vmatprep.mubr.f32.mxu0 0.0
  %439 = vmatmul.mubr.f32.gmra.mrb[0].mxu0 %v370
  %v440 = vpop.f32.mrb[0].mxu0
  %v441 = vadd.f32 0.0, %v440
  %v442 = vpop.f32.mrb[0].mxu0
  %443 = vdwg.mxu0
  %v444 = vmul.f32 %v441, 0.35355338
  %v445 = vsel %vm360, %v444, -1e+30
  %v446 = vsel %vm368, %v445, -inf
  %447 = vmax.xlane.f32.xlu0 %v446
  %v448 = vpop.xlane.xlu0 %447
  %v449 = vsub.f32 %v445, %v448
  %v450 = vmul.f32 %v449, 1.442695
  %v451 = vpow.pop %v450
  %v452 = vsel %vm368, %v451, 0.0
  %453 = vadd.xlane.f32.xlu0 %v452
  %v454 = vpop.xlane.xlu0 %453
  %v455 = vrcp.pop %v454
  %v456 = vmul.f32 %v451, %v455
  %457 = vrot.lane.b32.xlu0 %v144, 80
  %v458 = vpop.permute.xlu0 %457
  %v461 = vsel %vm368, %v456, 0
  %463 = vmatprep.subr.mxu0 0.0
  %464 = vmatpush1.msra.mxu0 %v458
  %465 = vmatprep.subr.mxu0 0.0
  %466 = vmatpush1.msra.mxu0 0.0
  %467 = vmatprep.subr.mxu0 0.0
  %468 = vmatpush1.msra.mxu0 0.0
  %469 = vmatprep.subr.mxu0 0.0
  %470 = vmatpush1.msra.mxu0 0.0
  %471 = vmatprep.subr.mxu0 0.0
  %472 = vmatpush1.msra.mxu0 0.0
  %473 = vmatprep.subr.mxu0 0.0
  %474 = vmatpush1.msra.mxu0 0.0
  %475 = vmatprep.subr.mxu0 0.0
  %476 = vmatpush1.msra.mxu0 0.0
  %477 = vmatprep.subr.mxu0 0.0
  %478 = vmatpush1.msra.mxu0 0.0
  %479 = vmatprep.subr.mxu0 0.0
  %480 = vmatpush1.msra.mxu0 0.0
  %481 = vmatprep.subr.mxu0 0.0
  %482 = vmatpush1.msra.mxu0 0.0
  %483 = vmatprep.subr.mxu0 0.0
  %484 = vmatpush1.msra.mxu0 0.0
  %485 = vmatprep.subr.mxu0 0.0
  %486 = vmatpush1.msra.mxu0 0.0
  %487 = vmatprep.subr.mxu0 0.0
  %488 = vmatpush1.msra.mxu0 0.0
  %489 = vmatprep.subr.mxu0 0.0
  %490 = vmatpush1.msra.mxu0 0.0
  %491 = vmatprep.subr.mxu0 0.0
  %492 = vmatpush1.msra.mxu0 0.0
  %493 = vmatprep.subr.mxu0 0.0
  %494 = vmatpush1.msra.mxu0 0.0
  %495 = vmatprep.subr.mxu0 0.0
  %496 = vmatpush1.msra.mxu0 0.0
  %497 = vmatprep.subr.mxu0 0.0
  %498 = vmatpush1.msra.mxu0 0.0
  %499 = vmatprep.subr.mxu0 0.0
  %500 = vmatpush1.msra.mxu0 0.0
  %501 = vmatprep.subr.mxu0 0.0
  %502 = vmatpush1.msra.mxu0 0.0
  %503 = vmatprep.subr.mxu0 0.0
  %504 = vmatpush1.msra.mxu0 0.0
  %505 = vmatprep.subr.mxu0 0.0
  %506 = vmatpush1.msra.mxu0 0.0
  %507 = vmatprep.subr.mxu0 0.0
  %508 = vmatpush1.msra.mxu0 0.0
  %509 = vmatprep.subr.mxu0 0.0
  %510 = vmatpush1.msra.mxu0 0.0
  %511 = vmatprep.subr.mxu0 0.0
  %512 = vmatpush1.msra.mxu0 0.0
  %513 = vmatprep.subr.mxu0 0.0
  %514 = vmatpush1.msra.mxu0 0.0
  %515 = vmatprep.subr.mxu0 0.0
  %516 = vmatpush1.msra.mxu0 0.0
  %517 = vmatprep.subr.mxu0 0.0
  %518 = vmatpush1.msra.mxu0 0.0
  %519 = vmatprep.subr.mxu0 0.0
  %520 = vmatpush1.msra.mxu0 0.0
  %521 = vmatprep.subr.mxu0 0.0
  %522 = vmatpush1.msra.mxu0 0.0
  %523 = vmatprep.subr.mxu0 0.0
  %524 = vmatpush1.msra.mxu0 0.0
  %525 = vmatprep.subr.mxu0 0.0
  %526 = vmatpush1.msra.mxu0 0.0
  %527 = vmatprep.mubr.f32.mxu0 0.0
  %528 = vmatmul.mubr.f32.gmra.mrb[0].mxu0 %v461
  %v529 = vpop.f32.mrb[0].mxu0
  %v530 = vadd.f32 0.0, %v529
  %v531 = vpop.f32.mrb[0].mxu0
  %532 = vdwg.mxu0
  %533 = vrot.lane.b32.xlu0 %v245, 120
  %v534 = vpop.permute.xlu0 %533
  %v535 = vsel %vm368, %v534, 0
  %537 = vmatprep.subr.mxu0 0.0
  %538 = vmatpush1.xpose.msra.mxu0 %v372
  %539 = vmatprep.subr.mxu0 0.0
  %540 = vmatpush1.xpose.msra.mxu0 0.0
  %541 = vmatprep.subr.mxu0 0.0
  %542 = vmatpush1.xpose.msra.mxu0 0.0
  %543 = vmatprep.subr.mxu0 0.0
  %544 = vmatpush1.xpose.msra.mxu0 0.0
  %545 = vmatprep.subr.mxu0 0.0
  %546 = vmatpush1.xpose.msra.mxu0 0.0
  %547 = vmatprep.subr.mxu0 0.0
  %548 = vmatpush1.xpose.msra.mxu0 0.0
  %549 = vmatprep.subr.mxu0 0.0
  %550 = vmatpush1.xpose.msra.mxu0 0.0
  %551 = vmatprep.subr.mxu0 0.0
  %552 = vmatpush1.xpose.msra.mxu0 0.0
  %553 = vmatprep.subr.mxu0 0.0
  %554 = vmatpush1.xpose.msra.mxu0 0.0
  %555 = vmatprep.subr.mxu0 0.0
  %556 = vmatpush1.xpose.msra.mxu0 0.0
  %557 = vmatprep.subr.mxu0 0.0
  %558 = vmatpush1.xpose.msra.mxu0 0.0
  %559 = vmatprep.subr.mxu0 0.0
  %560 = vmatpush1.xpose.msra.mxu0 0.0
  %561 = vmatprep.subr.mxu0 0.0
  %562 = vmatpush1.xpose.msra.mxu0 0.0
  %563 = vmatprep.subr.mxu0 0.0
  %564 = vmatpush1.xpose.msra.mxu0 0.0
  %565 = vmatprep.subr.mxu0 0.0
  %566 = vmatpush1.xpose.msra.mxu0 0.0
  %567 = vmatprep.subr.mxu0 0.0
  %568 = vmatpush1.xpose.msra.mxu0 0.0
  %569 = vmatprep.subr.mxu0 0.0
  %570 = vmatpush1.xpose.msra.mxu0 0.0
  %571 = vmatprep.subr.mxu0 0.0
  %572 = vmatpush1.xpose.msra.mxu0 0.0
  %573 = vmatprep.subr.mxu0 0.0
  %574 = vmatpush1.xpose.msra.mxu0 0.0
  %575 = vmatprep.subr.mxu0 0.0
  %576 = vmatpush1.xpose.msra.mxu0 0.0
  %577 = vmatprep.subr.mxu0 0.0
  %578 = vmatpush1.xpose.msra.mxu0 0.0
  %579 = vmatprep.subr.mxu0 0.0
  %580 = vmatpush1.xpose.msra.mxu0 0.0
  %581 = vmatprep.subr.mxu0 0.0
  %582 = vmatpush1.xpose.msra.mxu0 0.0
  %583 = vmatprep.subr.mxu0 0.0
  %584 = vmatpush1.xpose.msra.mxu0 0.0
  %585 = vmatprep.subr.mxu0 0.0
  %586 = vmatpush1.xpose.msra.mxu0 0.0
  %587 = vmatprep.subr.mxu0 0.0
  %588 = vmatpush1.xpose.msra.mxu0 0.0
  %589 = vmatprep.subr.mxu0 0.0
  %590 = vmatpush1.xpose.msra.mxu0 0.0
  %591 = vmatprep.subr.mxu0 0.0
  %592 = vmatpush1.xpose.msra.mxu0 0.0
  %593 = vmatprep.subr.mxu0 0.0
  %594 = vmatpush1.xpose.msra.mxu0 0.0
  %595 = vmatprep.subr.mxu0 0.0
  %596 = vmatpush1.xpose.msra.mxu0 0.0
  %597 = vmatprep.subr.mxu0 0.0
  %598 = vmatpush1.xpose.msra.mxu0 0.0
  %599 = vmatprep.subr.mxu0 0.0
  %600 = vmatpush1.xpose.msra.mxu0 0.0
  %601 = vmatprep.mubr.f32.mxu0 0.0
  %602 = vmatmul.mubr.f32.gmra.mrb[0].mxu0 %v535
  %v603 = vpop.f32.mrb[0].mxu0
  %v604 = vadd.f32 0.0, %v603
  %v605 = vpop.f32.mrb[0].mxu0
  %606 = vdwg.mxu0
  %v607 = vmul.f32 %v604, 0.35355338
  %v608 = vsel %vm360, %v607, -1e+30
  %v609 = vsel %vm368, %v608, -inf
  %610 = vmax.xlane.f32.xlu0 %v609
  %v611 = vpop.xlane.xlu0 %610
  %v612 = vsub.f32 %v608, %v611
  %v613 = vmul.f32 %v612, 1.442695
  %v614 = vpow.pop %v613
  %v615 = vsel %vm368, %v614, 0.0
  %616 = vadd.xlane.f32.xlu0 %v615
  %v617 = vpop.xlane.xlu0 %616
  %v618 = vrcp.pop %v617
  %v619 = vmul.f32 %v614, %v618
  %v621 = vsel %vm368, %v619, 0
  %623 = vmatprep.subr.mxu0 0.0
  %624 = vmatpush1.msra.mxu0 %v458
  %625 = vmatprep.subr.mxu0 0.0
  %626 = vmatpush1.msra.mxu0 0.0
  %627 = vmatprep.subr.mxu0 0.0
  %628 = vmatpush1.msra.mxu0 0.0
  %629 = vmatprep.subr.mxu0 0.0
  %630 = vmatpush1.msra.mxu0 0.0
  %631 = vmatprep.subr.mxu0 0.0
  %632 = vmatpush1.msra.mxu0 0.0
  %633 = vmatprep.subr.mxu0 0.0
  %634 = vmatpush1.msra.mxu0 0.0
  %635 = vmatprep.subr.mxu0 0.0
  %636 = vmatpush1.msra.mxu0 0.0
  %637 = vmatprep.subr.mxu0 0.0
  %638 = vmatpush1.msra.mxu0 0.0
  %639 = vmatprep.subr.mxu0 0.0
  %640 = vmatpush1.msra.mxu0 0.0
  %641 = vmatprep.subr.mxu0 0.0
  %642 = vmatpush1.msra.mxu0 0.0
  %643 = vmatprep.subr.mxu0 0.0
  %644 = vmatpush1.msra.mxu0 0.0
  %645 = vmatprep.subr.mxu0 0.0
  %646 = vmatpush1.msra.mxu0 0.0
  %647 = vmatprep.subr.mxu0 0.0
  %648 = vmatpush1.msra.mxu0 0.0
  %649 = vmatprep.subr.mxu0 0.0
  %650 = vmatpush1.msra.mxu0 0.0
  %651 = vmatprep.subr.mxu0 0.0
  %652 = vmatpush1.msra.mxu0 0.0
  %653 = vmatprep.subr.mxu0 0.0
  %654 = vmatpush1.msra.mxu0 0.0
  %655 = vmatprep.subr.mxu0 0.0
  %656 = vmatpush1.msra.mxu0 0.0
  %657 = vmatprep.subr.mxu0 0.0
  %658 = vmatpush1.msra.mxu0 0.0
  %659 = vmatprep.subr.mxu0 0.0
  %660 = vmatpush1.msra.mxu0 0.0
  %661 = vmatprep.subr.mxu0 0.0
  %662 = vmatpush1.msra.mxu0 0.0
  %663 = vmatprep.subr.mxu0 0.0
  %664 = vmatpush1.msra.mxu0 0.0
  %665 = vmatprep.subr.mxu0 0.0
  %666 = vmatpush1.msra.mxu0 0.0
  %667 = vmatprep.subr.mxu0 0.0
  %668 = vmatpush1.msra.mxu0 0.0
  %669 = vmatprep.subr.mxu0 0.0
  %670 = vmatpush1.msra.mxu0 0.0
  %671 = vmatprep.subr.mxu0 0.0
  %672 = vmatpush1.msra.mxu0 0.0
  %673 = vmatprep.subr.mxu0 0.0
  %674 = vmatpush1.msra.mxu0 0.0
  %675 = vmatprep.subr.mxu0 0.0
  %676 = vmatpush1.msra.mxu0 0.0
  %677 = vmatprep.subr.mxu0 0.0
  %678 = vmatpush1.msra.mxu0 0.0
  %679 = vmatprep.subr.mxu0 0.0
  %680 = vmatpush1.msra.mxu0 0.0
  %681 = vmatprep.subr.mxu0 0.0
  %682 = vmatpush1.msra.mxu0 0.0
  %683 = vmatprep.subr.mxu0 0.0
  %684 = vmatpush1.msra.mxu0 0.0
  %685 = vmatprep.subr.mxu0 0.0
  %686 = vmatpush1.msra.mxu0 0.0
  %687 = vmatprep.mubr.f32.mxu0 0.0
  %688 = vmatmul.mubr.f32.gmra.mrb[0].mxu0 %v621
  %v689 = vpop.f32.mrb[0].mxu0
  %v690 = vadd.f32 0.0, %v689
  %v691 = vpop.f32.mrb[0].mxu0
  %692 = vdwg.mxu0
  %v694 = vsel %vm368, %v690, 0
  %696 = vmatprep.subr.mxu0 0.0
  %697 = vmatpush1.msra.mxu0 %v362
  %698 = vmatprep.subr.mxu0 0.0
  %699 = vmatpush1.msra.mxu0 0.0
  %700 = vmatprep.subr.mxu0 0.0
  %701 = vmatpush1.msra.mxu0 0.0
  %702 = vmatprep.subr.mxu0 0.0
  %703 = vmatpush1.msra.mxu0 0.0
  %704 = vmatprep.subr.mxu0 0.0
  %705 = vmatpush1.msra.mxu0 0.0
  %706 = vmatprep.subr.mxu0 0.0
  %707 = vmatpush1.msra.mxu0 0.0
  %708 = vmatprep.subr.mxu0 0.0
  %709 = vmatpush1.msra.mxu0 0.0
  %710 = vmatprep.subr.mxu0 0.0
  %711 = vmatpush1.msra.mxu0 0.0
  %712 = vmatprep.subr.mxu0 0.0
  %713 = vmatpush1.msra.mxu0 0.0
  %714 = vmatprep.subr.mxu0 0.0
  %715 = vmatpush1.msra.mxu0 0.0
  %716 = vmatprep.subr.mxu0 0.0
  %717 = vmatpush1.msra.mxu0 0.0
  %718 = vmatprep.subr.mxu0 0.0
  %719 = vmatpush1.msra.mxu0 0.0
  %720 = vmatprep.subr.mxu0 0.0
  %721 = vmatpush1.msra.mxu0 0.0
  %722 = vmatprep.subr.mxu0 0.0
  %723 = vmatpush1.msra.mxu0 0.0
  %724 = vmatprep.subr.mxu0 0.0
  %725 = vmatpush1.msra.mxu0 0.0
  %726 = vmatprep.subr.mxu0 0.0
  %727 = vmatpush1.msra.mxu0 0.0
  %728 = vmatprep.subr.mxu0 0.0
  %729 = vmatpush1.msra.mxu0 0.0
  %730 = vmatprep.subr.mxu0 0.0
  %731 = vmatpush1.msra.mxu0 0.0
  %732 = vmatprep.subr.mxu0 0.0
  %733 = vmatpush1.msra.mxu0 0.0
  %734 = vmatprep.subr.mxu0 0.0
  %735 = vmatpush1.msra.mxu0 0.0
  %736 = vmatprep.subr.mxu0 0.0
  %737 = vmatpush1.msra.mxu0 0.0
  %738 = vmatprep.subr.mxu0 0.0
  %739 = vmatpush1.msra.mxu0 0.0
  %740 = vmatprep.subr.mxu0 0.0
  %741 = vmatpush1.msra.mxu0 0.0
  %742 = vmatprep.subr.mxu0 0.0
  %743 = vmatpush1.msra.mxu0 0.0
  %744 = vmatprep.subr.mxu0 0.0
  %745 = vmatpush1.msra.mxu0 0.0
  %746 = vmatprep.subr.mxu0 0.0
  %747 = vmatpush1.msra.mxu0 0.0
  %748 = vmatprep.subr.mxu0 0.0
  %749 = vmatpush1.msra.mxu0 0.0
  %750 = vmatprep.subr.mxu0 0.0
  %751 = vmatpush1.msra.mxu0 0.0
  %752 = vmatprep.subr.mxu0 0.0
  %753 = vmatpush1.msra.mxu0 0.0
  %754 = vmatprep.subr.mxu0 0.0
  %755 = vmatpush1.msra.mxu0 0.0
  %756 = vmatprep.subr.mxu0 0.0
  %757 = vmatpush1.msra.mxu0 0.0
  %758 = vmatprep.subr.mxu0 0.0
  %759 = vmatpush1.msra.mxu0 0.0
  %760 = vmatprep.mubr.f32.mxu0 0.0
  %761 = vmatmul.mubr.f32.gmra.mrb[0].mxu0 %v694
  %v762 = vpop.f32.mrb[0].mxu0
  %v763 = vadd.f32 0.0, %v762
  %v764 = vpop.f32.mrb[0].mxu0
  %765 = vdwg.mxu0
  %v767 = vsel %vm368, %v530, 0
  %769 = vmatprep.subr.mxu0 0.0
  %770 = vmatpush1.msra.mxu0 %v361
  %771 = vmatprep.subr.mxu0 0.0
  %772 = vmatpush1.msra.mxu0 0.0
  %773 = vmatprep.subr.mxu0 0.0
  %774 = vmatpush1.msra.mxu0 0.0
  %775 = vmatprep.subr.mxu0 0.0
  %776 = vmatpush1.msra.mxu0 0.0
  %777 = vmatprep.subr.mxu0 0.0
  %778 = vmatpush1.msra.mxu0 0.0
  %779 = vmatprep.subr.mxu0 0.0
  %780 = vmatpush1.msra.mxu0 0.0
  %781 = vmatprep.subr.mxu0 0.0
  %782 = vmatpush1.msra.mxu0 0.0
  %783 = vmatprep.subr.mxu0 0.0
  %784 = vmatpush1.msra.mxu0 0.0
  %785 = vmatprep.subr.mxu0 0.0
  %786 = vmatpush1.msra.mxu0 0.0
  %787 = vmatprep.subr.mxu0 0.0
  %788 = vmatpush1.msra.mxu0 0.0
  %789 = vmatprep.subr.mxu0 0.0
  %790 = vmatpush1.msra.mxu0 0.0
  %791 = vmatprep.subr.mxu0 0.0
  %792 = vmatpush1.msra.mxu0 0.0
  %793 = vmatprep.subr.mxu0 0.0
  %794 = vmatpush1.msra.mxu0 0.0
  %795 = vmatprep.subr.mxu0 0.0
  %796 = vmatpush1.msra.mxu0 0.0
  %797 = vmatprep.subr.mxu0 0.0
  %798 = vmatpush1.msra.mxu0 0.0
  %799 = vmatprep.subr.mxu0 0.0
  %800 = vmatpush1.msra.mxu0 0.0
  %801 = vmatprep.subr.mxu0 0.0
  %802 = vmatpush1.msra.mxu0 0.0
  %803 = vmatprep.subr.mxu0 0.0
  %804 = vmatpush1.msra.mxu0 0.0
  %805 = vmatprep.subr.mxu0 0.0
  %806 = vmatpush1.msra.mxu0 0.0
  %807 = vmatprep.subr.mxu0 0.0
  %808 = vmatpush1.msra.mxu0 0.0
  %809 = vmatprep.subr.mxu0 0.0
  %810 = vmatpush1.msra.mxu0 0.0
  %811 = vmatprep.subr.mxu0 0.0
  %812 = vmatpush1.msra.mxu0 0.0
  %813 = vmatprep.subr.mxu0 0.0
  %814 = vmatpush1.msra.mxu0 0.0
  %815 = vmatprep.subr.mxu0 0.0
  %816 = vmatpush1.msra.mxu0 0.0
  %817 = vmatprep.subr.mxu0 0.0
  %818 = vmatpush1.msra.mxu0 0.0
  %819 = vmatprep.subr.mxu0 0.0
  %820 = vmatpush1.msra.mxu0 0.0
  %821 = vmatprep.subr.mxu0 0.0
  %822 = vmatpush1.msra.mxu0 0.0
  %823 = vmatprep.subr.mxu0 0.0
  %824 = vmatpush1.msra.mxu0 0.0
  %825 = vmatprep.subr.mxu0 0.0
  %826 = vmatpush1.msra.mxu0 0.0
  %827 = vmatprep.subr.mxu0 0.0
  %828 = vmatpush1.msra.mxu0 0.0
  %829 = vmatprep.subr.mxu0 0.0
  %830 = vmatpush1.msra.mxu0 0.0
  %831 = vmatprep.subr.mxu0 0.0
  %832 = vmatpush1.msra.mxu0 0.0
  %833 = vmatprep.mubr.f32.mxu0 0.0
  %834 = vmatmul.mubr.f32.gmra.mrb[0].mxu0 %v767
  %v835 = vpop.f32.mrb[0].mxu0
  %v836 = vadd.f32 %v763, %v835
  %v837 = vpop.f32.mrb[0].mxu0
  %838 = vdwg.mxu0
  %839 = vrot.lane.b32.xlu0 %v245, 112
  %v840 = vpop.permute.xlu0 %839
  %841 = vrot.lane.b32.xlu0 %v351, 88
  %v842 = vpop.permute.xlu0 %841
  %v843 = vsel %vm368, %v840, 0
  %v845 = vsel %vm368, %v842, 0
  %847 = vmatprep.subr.mxu0 0.0
  %848 = vmatpush1.xpose.msra.mxu0 %v845
  %849 = vmatprep.subr.mxu0 0.0
  %850 = vmatpush1.xpose.msra.mxu0 0.0
  %851 = vmatprep.subr.mxu0 0.0
  %852 = vmatpush1.xpose.msra.mxu0 0.0
  %853 = vmatprep.subr.mxu0 0.0
  %854 = vmatpush1.xpose.msra.mxu0 0.0
  %855 = vmatprep.subr.mxu0 0.0
  %856 = vmatpush1.xpose.msra.mxu0 0.0
  %857 = vmatprep.subr.mxu0 0.0
  %858 = vmatpush1.xpose.msra.mxu0 0.0
  %859 = vmatprep.subr.mxu0 0.0
  %860 = vmatpush1.xpose.msra.mxu0 0.0
  %861 = vmatprep.subr.mxu0 0.0
  %862 = vmatpush1.xpose.msra.mxu0 0.0
  %863 = vmatprep.subr.mxu0 0.0
  %864 = vmatpush1.xpose.msra.mxu0 0.0
  %865 = vmatprep.subr.mxu0 0.0
  %866 = vmatpush1.xpose.msra.mxu0 0.0
  %867 = vmatprep.subr.mxu0 0.0
  %868 = vmatpush1.xpose.msra.mxu0 0.0
  %869 = vmatprep.subr.mxu0 0.0
  %870 = vmatpush1.xpose.msra.mxu0 0.0
  %871 = vmatprep.subr.mxu0 0.0
  %872 = vmatpush1.xpose.msra.mxu0 0.0
  %873 = vmatprep.subr.mxu0 0.0
  %874 = vmatpush1.xpose.msra.mxu0 0.0
  %875 = vmatprep.subr.mxu0 0.0
  %876 = vmatpush1.xpose.msra.mxu0 0.0
  %877 = vmatprep.subr.mxu0 0.0
  %878 = vmatpush1.xpose.msra.mxu0 0.0
  %879 = vmatprep.subr.mxu0 0.0
  %880 = vmatpush1.xpose.msra.mxu0 0.0
  %881 = vmatprep.subr.mxu0 0.0
  %882 = vmatpush1.xpose.msra.mxu0 0.0
  %883 = vmatprep.subr.mxu0 0.0
  %884 = vmatpush1.xpose.msra.mxu0 0.0
  %885 = vmatprep.subr.mxu0 0.0
  %886 = vmatpush1.xpose.msra.mxu0 0.0
  %887 = vmatprep.subr.mxu0 0.0
  %888 = vmatpush1.xpose.msra.mxu0 0.0
  %889 = vmatprep.subr.mxu0 0.0
  %890 = vmatpush1.xpose.msra.mxu0 0.0
  %891 = vmatprep.subr.mxu0 0.0
  %892 = vmatpush1.xpose.msra.mxu0 0.0
  %893 = vmatprep.subr.mxu0 0.0
  %894 = vmatpush1.xpose.msra.mxu0 0.0
  %895 = vmatprep.subr.mxu0 0.0
  %896 = vmatpush1.xpose.msra.mxu0 0.0
  %897 = vmatprep.subr.mxu0 0.0
  %898 = vmatpush1.xpose.msra.mxu0 0.0
  %899 = vmatprep.subr.mxu0 0.0
  %900 = vmatpush1.xpose.msra.mxu0 0.0
  %901 = vmatprep.subr.mxu0 0.0
  %902 = vmatpush1.xpose.msra.mxu0 0.0
  %903 = vmatprep.subr.mxu0 0.0
  %904 = vmatpush1.xpose.msra.mxu0 0.0
  %905 = vmatprep.subr.mxu0 0.0
  %906 = vmatpush1.xpose.msra.mxu0 0.0
  %907 = vmatprep.subr.mxu0 0.0
  %908 = vmatpush1.xpose.msra.mxu0 0.0
  %909 = vmatprep.subr.mxu0 0.0
  %910 = vmatpush1.xpose.msra.mxu0 0.0
  %911 = vmatprep.mubr.f32.mxu0 0.0
  %912 = vmatmul.mubr.f32.gmra.mrb[0].mxu0 %v843
  %v913 = vpop.f32.mrb[0].mxu0
  %v914 = vadd.f32 0.0, %v913
  %v915 = vpop.f32.mrb[0].mxu0
  %916 = vdwg.mxu0
  %v917 = vmul.f32 %v914, 0.35355338
  %v918 = vsel %vm360, %v917, -1e+30
  %v919 = vsel %vm368, %v918, -inf
  %920 = vmax.xlane.f32.xlu0 %v919
  %v921 = vpop.xlane.xlu0 %920
  %v922 = vsub.f32 %v918, %v921
  %v923 = vmul.f32 %v922, 1.442695
  %v924 = vpow.pop %v923
  %v925 = vsel %vm368, %v924, 0.0
  %926 = vadd.xlane.f32.xlu0 %v925
  %v927 = vpop.xlane.xlu0 %926
  %v928 = vrcp.pop %v927
  %v929 = vmul.f32 %v924, %v928
  %930 = vrot.lane.b32.xlu0 %v144, 72
  %v931 = vpop.permute.xlu0 %930
  %v934 = vsel %vm368, %v929, 0
  %936 = vmatprep.subr.mxu0 0.0
  %937 = vmatpush1.msra.mxu0 %v931
  %938 = vmatprep.subr.mxu0 0.0
  %939 = vmatpush1.msra.mxu0 0.0
  %940 = vmatprep.subr.mxu0 0.0
  %941 = vmatpush1.msra.mxu0 0.0
  %942 = vmatprep.subr.mxu0 0.0
  %943 = vmatpush1.msra.mxu0 0.0
  %944 = vmatprep.subr.mxu0 0.0
  %945 = vmatpush1.msra.mxu0 0.0
  %946 = vmatprep.subr.mxu0 0.0
  %947 = vmatpush1.msra.mxu0 0.0
  %948 = vmatprep.subr.mxu0 0.0
  %949 = vmatpush1.msra.mxu0 0.0
  %950 = vmatprep.subr.mxu0 0.0
  %951 = vmatpush1.msra.mxu0 0.0
  %952 = vmatprep.subr.mxu0 0.0
  %953 = vmatpush1.msra.mxu0 0.0
  %954 = vmatprep.subr.mxu0 0.0
  %955 = vmatpush1.msra.mxu0 0.0
  %956 = vmatprep.subr.mxu0 0.0
  %957 = vmatpush1.msra.mxu0 0.0
  %958 = vmatprep.subr.mxu0 0.0
  %959 = vmatpush1.msra.mxu0 0.0
  %960 = vmatprep.subr.mxu0 0.0
  %961 = vmatpush1.msra.mxu0 0.0
  %962 = vmatprep.subr.mxu0 0.0
  %963 = vmatpush1.msra.mxu0 0.0
  %964 = vmatprep.subr.mxu0 0.0
  %965 = vmatpush1.msra.mxu0 0.0
  %966 = vmatprep.subr.mxu0 0.0
  %967 = vmatpush1.msra.mxu0 0.0
  %968 = vmatprep.subr.mxu0 0.0
  %969 = vmatpush1.msra.mxu0 0.0
  %970 = vmatprep.subr.mxu0 0.0
  %971 = vmatpush1.msra.mxu0 0.0
  %972 = vmatprep.subr.mxu0 0.0
  %973 = vmatpush1.msra.mxu0 0.0
  %974 = vmatprep.subr.mxu0 0.0
  %975 = vmatpush1.msra.mxu0 0.0
  %976 = vmatprep.subr.mxu0 0.0
  %977 = vmatpush1.msra.mxu0 0.0
  %978 = vmatprep.subr.mxu0 0.0
  %979 = vmatpush1.msra.mxu0 0.0
  %980 = vmatprep.subr.mxu0 0.0
  %981 = vmatpush1.msra.mxu0 0.0
  %982 = vmatprep.subr.mxu0 0.0
  %983 = vmatpush1.msra.mxu0 0.0
  %984 = vmatprep.subr.mxu0 0.0
  %985 = vmatpush1.msra.mxu0 0.0
  %986 = vmatprep.subr.mxu0 0.0
  %987 = vmatpush1.msra.mxu0 0.0
  %988 = vmatprep.subr.mxu0 0.0
  %989 = vmatpush1.msra.mxu0 0.0
  %990 = vmatprep.subr.mxu0 0.0
  %991 = vmatpush1.msra.mxu0 0.0
  %992 = vmatprep.subr.mxu0 0.0
  %993 = vmatpush1.msra.mxu0 0.0
  %994 = vmatprep.subr.mxu0 0.0
  %995 = vmatpush1.msra.mxu0 0.0
  %996 = vmatprep.subr.mxu0 0.0
  %997 = vmatpush1.msra.mxu0 0.0
  %998 = vmatprep.subr.mxu0 0.0
  %999 = vmatpush1.msra.mxu0 0.0
  %1000 = vmatprep.mubr.f32.mxu0 0.0
  %1001 = vmatmul.mubr.f32.gmra.mrb[0].mxu0 %v934
  %v1002 = vpop.f32.mrb[0].mxu0
  %v1003 = vadd.f32 0.0, %v1002
  %v1004 = vpop.f32.mrb[0].mxu0
  %1005 = vdwg.mxu0
  %v1007 = vsel %vm368, %v1003, 0
  %1009 = vmatprep.subr.mxu0 0.0
  %1010 = vmatpush1.msra.mxu0 %v363
  %1011 = vmatprep.subr.mxu0 0.0
  %1012 = vmatpush1.msra.mxu0 0.0
  %1013 = vmatprep.subr.mxu0 0.0
  %1014 = vmatpush1.msra.mxu0 0.0
  %1015 = vmatprep.subr.mxu0 0.0
  %1016 = vmatpush1.msra.mxu0 0.0
  %1017 = vmatprep.subr.mxu0 0.0
  %1018 = vmatpush1.msra.mxu0 0.0
  %1019 = vmatprep.subr.mxu0 0.0
  %1020 = vmatpush1.msra.mxu0 0.0
  %1021 = vmatprep.subr.mxu0 0.0
  %1022 = vmatpush1.msra.mxu0 0.0
  %1023 = vmatprep.subr.mxu0 0.0
  %1024 = vmatpush1.msra.mxu0 0.0
  %1025 = vmatprep.subr.mxu0 0.0
  %1026 = vmatpush1.msra.mxu0 0.0
  %1027 = vmatprep.subr.mxu0 0.0
  %1028 = vmatpush1.msra.mxu0 0.0
  %1029 = vmatprep.subr.mxu0 0.0
  %1030 = vmatpush1.msra.mxu0 0.0
  %1031 = vmatprep.subr.mxu0 0.0
  %1032 = vmatpush1.msra.mxu0 0.0
  %1033 = vmatprep.subr.mxu0 0.0
  %1034 = vmatpush1.msra.mxu0 0.0
  %1035 = vmatprep.subr.mxu0 0.0
  %1036 = vmatpush1.msra.mxu0 0.0
  %1037 = vmatprep.subr.mxu0 0.0
  %1038 = vmatpush1.msra.mxu0 0.0
  %1039 = vmatprep.subr.mxu0 0.0
  %1040 = vmatpush1.msra.mxu0 0.0
  %1041 = vmatprep.subr.mxu0 0.0
  %1042 = vmatpush1.msra.mxu0 0.0
  %1043 = vmatprep.subr.mxu0 0.0
  %1044 = vmatpush1.msra.mxu0 0.0
  %1045 = vmatprep.subr.mxu0 0.0
  %1046 = vmatpush1.msra.mxu0 0.0
  %1047 = vmatprep.subr.mxu0 0.0
  %1048 = vmatpush1.msra.mxu0 0.0
  %1049 = vmatprep.subr.mxu0 0.0
  %1050 = vmatpush1.msra.mxu0 0.0
  %1051 = vmatprep.subr.mxu0 0.0
  %1052 = vmatpush1.msra.mxu0 0.0
  %1053 = vmatprep.subr.mxu0 0.0
  %1054 = vmatpush1.msra.mxu0 0.0
  %1055 = vmatprep.subr.mxu0 0.0
  %1056 = vmatpush1.msra.mxu0 0.0
  %1057 = vmatprep.subr.mxu0 0.0
  %1058 = vmatpush1.msra.mxu0 0.0
  %1059 = vmatprep.subr.mxu0 0.0
  %1060 = vmatpush1.msra.mxu0 0.0
  %1061 = vmatprep.subr.mxu0 0.0
  %1062 = vmatpush1.msra.mxu0 0.0
  %1063 = vmatprep.subr.mxu0 0.0
  %1064 = vmatpush1.msra.mxu0 0.0
  %1065 = vmatprep.subr.mxu0 0.0
  %1066 = vmatpush1.msra.mxu0 0.0
  %1067 = vmatprep.subr.mxu0 0.0
  %1068 = vmatpush1.msra.mxu0 0.0
  %1069 = vmatprep.subr.mxu0 0.0
  %1070 = vmatpush1.msra.mxu0 0.0
  %1071 = vmatprep.subr.mxu0 0.0
  %1072 = vmatpush1.msra.mxu0 0.0
  %1073 = vmatprep.mubr.f32.mxu0 0.0
  %1074 = vmatmul.mubr.f32.gmra.mrb[0].mxu0 %v1007
  %v1075 = vpop.f32.mrb[0].mxu0
  %v1076 = vadd.f32 0.0, %v1075
  %v1077 = vpop.f32.mrb[0].mxu0
  %1078 = vdwg.mxu0
  %v1079 = vadd.f32 %v836, %v1076
  %1080 = vrot.lane.b32.xlu0 %v245, 104
  %v1081 = vpop.permute.xlu0 %1080
  %v1082 = vsel %vm368, %v1081, 0
  %1084 = vmatprep.subr.mxu0 0.0
  %1085 = vmatpush1.xpose.msra.mxu0 %v845
  %1086 = vmatprep.subr.mxu0 0.0
  %1087 = vmatpush1.xpose.msra.mxu0 0.0
  %1088 = vmatprep.subr.mxu0 0.0
  %1089 = vmatpush1.xpose.msra.mxu0 0.0
  %1090 = vmatprep.subr.mxu0 0.0
  %1091 = vmatpush1.xpose.msra.mxu0 0.0
  %1092 = vmatprep.subr.mxu0 0.0
  %1093 = vmatpush1.xpose.msra.mxu0 0.0
  %1094 = vmatprep.subr.mxu0 0.0
  %1095 = vmatpush1.xpose.msra.mxu0 0.0
  %1096 = vmatprep.subr.mxu0 0.0
  %1097 = vmatpush1.xpose.msra.mxu0 0.0
  %1098 = vmatprep.subr.mxu0 0.0
  %1099 = vmatpush1.xpose.msra.mxu0 0.0
  %1100 = vmatprep.subr.mxu0 0.0
  %1101 = vmatpush1.xpose.msra.mxu0 0.0
  %1102 = vmatprep.subr.mxu0 0.0
  %1103 = vmatpush1.xpose.msra.mxu0 0.0
  %1104 = vmatprep.subr.mxu0 0.0
  %1105 = vmatpush1.xpose.msra.mxu0 0.0
  %1106 = vmatprep.subr.mxu0 0.0
  %1107 = vmatpush1.xpose.msra.mxu0 0.0
  %1108 = vmatprep.subr.mxu0 0.0
  %1109 = vmatpush1.xpose.msra.mxu0 0.0
  %1110 = vmatprep.subr.mxu0 0.0
  %1111 = vmatpush1.xpose.msra.mxu0 0.0
  %1112 = vmatprep.subr.mxu0 0.0
  %1113 = vmatpush1.xpose.msra.mxu0 0.0
  %1114 = vmatprep.subr.mxu0 0.0
  %1115 = vmatpush1.xpose.msra.mxu0 0.0
  %1116 = vmatprep.subr.mxu0 0.0
  %1117 = vmatpush1.xpose.msra.mxu0 0.0
  %1118 = vmatprep.subr.mxu0 0.0
  %1119 = vmatpush1.xpose.msra.mxu0 0.0
  %1120 = vmatprep.subr.mxu0 0.0
  %1121 = vmatpush1.xpose.msra.mxu0 0.0
  %1122 = vmatprep.subr.mxu0 0.0
  %1123 = vmatpush1.xpose.msra.mxu0 0.0
  %1124 = vmatprep.subr.mxu0 0.0
  %1125 = vmatpush1.xpose.msra.mxu0 0.0
  %1126 = vmatprep.subr.mxu0 0.0
  %1127 = vmatpush1.xpose.msra.mxu0 0.0
  %1128 = vmatprep.subr.mxu0 0.0
  %1129 = vmatpush1.xpose.msra.mxu0 0.0
  %1130 = vmatprep.subr.mxu0 0.0
  %1131 = vmatpush1.xpose.msra.mxu0 0.0
  %1132 = vmatprep.subr.mxu0 0.0
  %1133 = vmatpush1.xpose.msra.mxu0 0.0
  %1134 = vmatprep.subr.mxu0 0.0
  %1135 = vmatpush1.xpose.msra.mxu0 0.0
  %1136 = vmatprep.subr.mxu0 0.0
  %1137 = vmatpush1.xpose.msra.mxu0 0.0
  %1138 = vmatprep.subr.mxu0 0.0
  %1139 = vmatpush1.xpose.msra.mxu0 0.0
  %1140 = vmatprep.subr.mxu0 0.0
  %1141 = vmatpush1.xpose.msra.mxu0 0.0
  %1142 = vmatprep.subr.mxu0 0.0
  %1143 = vmatpush1.xpose.msra.mxu0 0.0
  %1144 = vmatprep.subr.mxu0 0.0
  %1145 = vmatpush1.xpose.msra.mxu0 0.0
  %1146 = vmatprep.subr.mxu0 0.0
  %1147 = vmatpush1.xpose.msra.mxu0 0.0
  %1148 = vmatprep.mubr.f32.mxu0 0.0
  %1149 = vmatmul.mubr.f32.gmra.mrb[0].mxu0 %v1082
  %v1150 = vpop.f32.mrb[0].mxu0
  %v1151 = vadd.f32 0.0, %v1150
  %v1152 = vpop.f32.mrb[0].mxu0
  %1153 = vdwg.mxu0
  %v1154 = vmul.f32 %v1151, 0.35355338
  %v1155 = vsel %vm360, %v1154, -1e+30
  %v1156 = vsel %vm368, %v1155, -inf
  %1157 = vmax.xlane.f32.xlu0 %v1156
  %v1158 = vpop.xlane.xlu0 %1157
  %v1159 = vsub.f32 %v1155, %v1158
  %v1160 = vmul.f32 %v1159, 1.442695
  %v1161 = vpow.pop %v1160
  %v1162 = vsel %vm368, %v1161, 0.0
  %1163 = vadd.xlane.f32.xlu0 %v1162
  %v1164 = vpop.xlane.xlu0 %1163
  %v1165 = vrcp.pop %v1164
  %v1166 = vmul.f32 %v1161, %v1165
  %v1168 = vsel %vm368, %v1166, 0
  %1170 = vmatprep.subr.mxu0 0.0
  %1171 = vmatpush1.msra.mxu0 %v931
  %1172 = vmatprep.subr.mxu0 0.0
  %1173 = vmatpush1.msra.mxu0 0.0
  %1174 = vmatprep.subr.mxu0 0.0
  %1175 = vmatpush1.msra.mxu0 0.0
  %1176 = vmatprep.subr.mxu0 0.0
  %1177 = vmatpush1.msra.mxu0 0.0
  %1178 = vmatprep.subr.mxu0 0.0
  %1179 = vmatpush1.msra.mxu0 0.0
  %1180 = vmatprep.subr.mxu0 0.0
  %1181 = vmatpush1.msra.mxu0 0.0
  %1182 = vmatprep.subr.mxu0 0.0
  %1183 = vmatpush1.msra.mxu0 0.0
  %1184 = vmatprep.subr.mxu0 0.0
  %1185 = vmatpush1.msra.mxu0 0.0
  %1186 = vmatprep.subr.mxu0 0.0
  %1187 = vmatpush1.msra.mxu0 0.0
  %1188 = vmatprep.subr.mxu0 0.0
  %1189 = vmatpush1.msra.mxu0 0.0
  %1190 = vmatprep.subr.mxu0 0.0
  %1191 = vmatpush1.msra.mxu0 0.0
  %1192 = vmatprep.subr.mxu0 0.0
  %1193 = vmatpush1.msra.mxu0 0.0
  %1194 = vmatprep.subr.mxu0 0.0
  %1195 = vmatpush1.msra.mxu0 0.0
  %1196 = vmatprep.subr.mxu0 0.0
  %1197 = vmatpush1.msra.mxu0 0.0
  %1198 = vmatprep.subr.mxu0 0.0
  %1199 = vmatpush1.msra.mxu0 0.0
  %1200 = vmatprep.subr.mxu0 0.0
  %1201 = vmatpush1.msra.mxu0 0.0
  %1202 = vmatprep.subr.mxu0 0.0
  %1203 = vmatpush1.msra.mxu0 0.0
  %1204 = vmatprep.subr.mxu0 0.0
  %1205 = vmatpush1.msra.mxu0 0.0
  %1206 = vmatprep.subr.mxu0 0.0
  %1207 = vmatpush1.msra.mxu0 0.0
  %1208 = vmatprep.subr.mxu0 0.0
  %1209 = vmatpush1.msra.mxu0 0.0
  %1210 = vmatprep.subr.mxu0 0.0
  %1211 = vmatpush1.msra.mxu0 0.0
  %1212 = vmatprep.subr.mxu0 0.0
  %1213 = vmatpush1.msra.mxu0 0.0
  %1214 = vmatprep.subr.mxu0 0.0
  %1215 = vmatpush1.msra.mxu0 0.0
  %1216 = vmatprep.subr.mxu0 0.0
  %1217 = vmatpush1.msra.mxu0 0.0
  %1218 = vmatprep.subr.mxu0 0.0
  %1219 = vmatpush1.msra.mxu0 0.0
  %1220 = vmatprep.subr.mxu0 0.0
  %1221 = vmatpush1.msra.mxu0 0.0
  %1222 = vmatprep.subr.mxu0 0.0
  %1223 = vmatpush1.msra.mxu0 0.0
  %1224 = vmatprep.subr.mxu0 0.0
  %1225 = vmatpush1.msra.mxu0 0.0
  %1226 = vmatprep.subr.mxu0 0.0
  %1227 = vmatpush1.msra.mxu0 0.0
  %1228 = vmatprep.subr.mxu0 0.0
  %1229 = vmatpush1.msra.mxu0 0.0
  %1230 = vmatprep.subr.mxu0 0.0
  %1231 = vmatpush1.msra.mxu0 0.0
  %1232 = vmatprep.subr.mxu0 0.0
  %1233 = vmatpush1.msra.mxu0 0.0
  %1234 = vmatprep.mubr.f32.mxu0 0.0
  %1235 = vmatmul.mubr.f32.gmra.mrb[0].mxu0 %v1168
  %v1236 = vpop.f32.mrb[0].mxu0
  %v1237 = vadd.f32 0.0, %v1236
  %v1238 = vpop.f32.mrb[0].mxu0
  %1239 = vdwg.mxu0
  %v1241 = vsel %vm368, %v1237, 0
  %1243 = vmatprep.subr.mxu0 0.0
  %1244 = vmatpush1.msra.mxu0 %v364
  %1245 = vmatprep.subr.mxu0 0.0
  %1246 = vmatpush1.msra.mxu0 0.0
  %1247 = vmatprep.subr.mxu0 0.0
  %1248 = vmatpush1.msra.mxu0 0.0
  %1249 = vmatprep.subr.mxu0 0.0
  %1250 = vmatpush1.msra.mxu0 0.0
  %1251 = vmatprep.subr.mxu0 0.0
  %1252 = vmatpush1.msra.mxu0 0.0
  %1253 = vmatprep.subr.mxu0 0.0
  %1254 = vmatpush1.msra.mxu0 0.0
  %1255 = vmatprep.subr.mxu0 0.0
  %1256 = vmatpush1.msra.mxu0 0.0
  %1257 = vmatprep.subr.mxu0 0.0
  %1258 = vmatpush1.msra.mxu0 0.0
  %1259 = vmatprep.subr.mxu0 0.0
  %1260 = vmatpush1.msra.mxu0 0.0
  %1261 = vmatprep.subr.mxu0 0.0
  %1262 = vmatpush1.msra.mxu0 0.0
  %1263 = vmatprep.subr.mxu0 0.0
  %1264 = vmatpush1.msra.mxu0 0.0
  %1265 = vmatprep.subr.mxu0 0.0
  %1266 = vmatpush1.msra.mxu0 0.0
  %1267 = vmatprep.subr.mxu0 0.0
  %1268 = vmatpush1.msra.mxu0 0.0
  %1269 = vmatprep.subr.mxu0 0.0
  %1270 = vmatpush1.msra.mxu0 0.0
  %1271 = vmatprep.subr.mxu0 0.0
  %1272 = vmatpush1.msra.mxu0 0.0
  %1273 = vmatprep.subr.mxu0 0.0
  %1274 = vmatpush1.msra.mxu0 0.0
  %1275 = vmatprep.subr.mxu0 0.0
  %1276 = vmatpush1.msra.mxu0 0.0
  %1277 = vmatprep.subr.mxu0 0.0
  %1278 = vmatpush1.msra.mxu0 0.0
  %1279 = vmatprep.subr.mxu0 0.0
  %1280 = vmatpush1.msra.mxu0 0.0
  %1281 = vmatprep.subr.mxu0 0.0
  %1282 = vmatpush1.msra.mxu0 0.0
  %1283 = vmatprep.subr.mxu0 0.0
  %1284 = vmatpush1.msra.mxu0 0.0
  %1285 = vmatprep.subr.mxu0 0.0
  %1286 = vmatpush1.msra.mxu0 0.0
  %1287 = vmatprep.subr.mxu0 0.0
  %1288 = vmatpush1.msra.mxu0 0.0
  %1289 = vmatprep.subr.mxu0 0.0
  %1290 = vmatpush1.msra.mxu0 0.0
  %1291 = vmatprep.subr.mxu0 0.0
  %1292 = vmatpush1.msra.mxu0 0.0
  %1293 = vmatprep.subr.mxu0 0.0
  %1294 = vmatpush1.msra.mxu0 0.0
  %1295 = vmatprep.subr.mxu0 0.0
  %1296 = vmatpush1.msra.mxu0 0.0
  %1297 = vmatprep.subr.mxu0 0.0
  %1298 = vmatpush1.msra.mxu0 0.0
  %1299 = vmatprep.subr.mxu0 0.0
  %1300 = vmatpush1.msra.mxu0 0.0
  %1301 = vmatprep.subr.mxu0 0.0
  %1302 = vmatpush1.msra.mxu0 0.0
  %1303 = vmatprep.subr.mxu0 0.0
  %1304 = vmatpush1.msra.mxu0 0.0
  %1305 = vmatprep.subr.mxu0 0.0
  %1306 = vmatpush1.msra.mxu0 0.0
  %1307 = vmatprep.mubr.f32.mxu0 0.0
  %1308 = vmatmul.mubr.f32.gmra.mrb[0].mxu0 %v1241
  %v1309 = vpop.f32.mrb[0].mxu0
  %v1310 = vadd.f32 0.0, %v1309
  %v1311 = vpop.f32.mrb[0].mxu0
  %1312 = vdwg.mxu0
  %v1313 = vadd.f32 %v1079, %v1310
  %1314 = vst.msk [vmem:[%s11] sm:$0xff] %vm42, %v1313
  %1316 = vrot.lane.b32.xlu0 %v352, 96
  %v1317 = vpop.permute.xlu0 %1316
  %v1319 = vsel %vm368, %v246, 0
  %v1321 = vsel %vm368, %v1317, 0
  %1323 = vmatprep.subr.mxu0 0.0
  %1324 = vmatpush1.xpose.msra.mxu0 %v1321
  %1325 = vmatprep.subr.mxu0 0.0
  %1326 = vmatpush1.xpose.msra.mxu0 0.0
  %1327 = vmatprep.subr.mxu0 0.0
  %1328 = vmatpush1.xpose.msra.mxu0 0.0
  %1329 = vmatprep.subr.mxu0 0.0
  %1330 = vmatpush1.xpose.msra.mxu0 0.0
  %1331 = vmatprep.subr.mxu0 0.0
  %1332 = vmatpush1.xpose.msra.mxu0 0.0
  %1333 = vmatprep.subr.mxu0 0.0
  %1334 = vmatpush1.xpose.msra.mxu0 0.0
  %1335 = vmatprep.subr.mxu0 0.0
  %1336 = vmatpush1.xpose.msra.mxu0 0.0
  %1337 = vmatprep.subr.mxu0 0.0
  %1338 = vmatpush1.xpose.msra.mxu0 0.0
  %1339 = vmatprep.subr.mxu0 0.0
  %1340 = vmatpush1.xpose.msra.mxu0 0.0
  %1341 = vmatprep.subr.mxu0 0.0
  %1342 = vmatpush1.xpose.msra.mxu0 0.0
  %1343 = vmatprep.subr.mxu0 0.0
  %1344 = vmatpush1.xpose.msra.mxu0 0.0
  %1345 = vmatprep.subr.mxu0 0.0
  %1346 = vmatpush1.xpose.msra.mxu0 0.0
  %1347 = vmatprep.subr.mxu0 0.0
  %1348 = vmatpush1.xpose.msra.mxu0 0.0
  %1349 = vmatprep.subr.mxu0 0.0
  %1350 = vmatpush1.xpose.msra.mxu0 0.0
  %1351 = vmatprep.subr.mxu0 0.0
  %1352 = vmatpush1.xpose.msra.mxu0 0.0
  %1353 = vmatprep.subr.mxu0 0.0
  %1354 = vmatpush1.xpose.msra.mxu0 0.0
  %1355 = vmatprep.subr.mxu0 0.0
  %1356 = vmatpush1.xpose.msra.mxu0 0.0
  %1357 = vmatprep.subr.mxu0 0.0
  %1358 = vmatpush1.xpose.msra.mxu0 0.0
  %1359 = vmatprep.subr.mxu0 0.0
  %1360 = vmatpush1.xpose.msra.mxu0 0.0
  %1361 = vmatprep.subr.mxu0 0.0
  %1362 = vmatpush1.xpose.msra.mxu0 0.0
  %1363 = vmatprep.subr.mxu0 0.0
  %1364 = vmatpush1.xpose.msra.mxu0 0.0
  %1365 = vmatprep.subr.mxu0 0.0
  %1366 = vmatpush1.xpose.msra.mxu0 0.0
  %1367 = vmatprep.subr.mxu0 0.0
  %1368 = vmatpush1.xpose.msra.mxu0 0.0
  %1369 = vmatprep.subr.mxu0 0.0
  %1370 = vmatpush1.xpose.msra.mxu0 0.0
  %1371 = vmatprep.subr.mxu0 0.0
  %1372 = vmatpush1.xpose.msra.mxu0 0.0
  %1373 = vmatprep.subr.mxu0 0.0
  %1374 = vmatpush1.xpose.msra.mxu0 0.0
  %1375 = vmatprep.subr.mxu0 0.0
  %1376 = vmatpush1.xpose.msra.mxu0 0.0
  %1377 = vmatprep.subr.mxu0 0.0
  %1378 = vmatpush1.xpose.msra.mxu0 0.0
  %1379 = vmatprep.subr.mxu0 0.0
  %1380 = vmatpush1.xpose.msra.mxu0 0.0
  %1381 = vmatprep.subr.mxu0 0.0
  %1382 = vmatpush1.xpose.msra.mxu0 0.0
  %1383 = vmatprep.subr.mxu0 0.0
  %1384 = vmatpush1.xpose.msra.mxu0 0.0
  %1385 = vmatprep.subr.mxu0 0.0
  %1386 = vmatpush1.xpose.msra.mxu0 0.0
  %1387 = vmatprep.mubr.f32.mxu0 0.0
  %1388 = vmatmul.mubr.f32.gmra.mrb[0].mxu0 %v1319
  %v1389 = vpop.f32.mrb[0].mxu0
  %v1390 = vadd.f32 0.0, %v1389
  %v1391 = vpop.f32.mrb[0].mxu0
  %1392 = vdwg.mxu0
  %v1393 = vmul.f32 %v1390, 0.35355338
  %v1394 = vsel %vm360, %v1393, -1e+30
  %v1395 = vsel %vm368, %v1394, -inf
  %1396 = vmax.xlane.f32.xlu0 %v1395
  %v1397 = vpop.xlane.xlu0 %1396
  %v1398 = vsub.f32 %v1394, %v1397
  %v1399 = vmul.f32 %v1398, 1.442695
  %v1400 = vpow.pop %v1399
  %v1401 = vsel %vm368, %v1400, 0.0
  %1402 = vadd.xlane.f32.xlu0 %v1401
  %v1403 = vpop.xlane.xlu0 %1402
  %v1404 = vrcp.pop %v1403
  %v1405 = vmul.f32 %v1400, %v1404
  %1406 = vrot.lane.b32.xlu0 %v149, 80
  %v1407 = vpop.permute.xlu0 %1406
  %v1410 = vsel %vm368, %v1405, 0
  %1412 = vmatprep.subr.mxu0 0.0
  %1413 = vmatpush1.msra.mxu0 %v1407
  %1414 = vmatprep.subr.mxu0 0.0
  %1415 = vmatpush1.msra.mxu0 0.0
  %1416 = vmatprep.subr.mxu0 0.0
  %1417 = vmatpush1.msra.mxu0 0.0
  %1418 = vmatprep.subr.mxu0 0.0
  %1419 = vmatpush1.msra.mxu0 0.0
  %1420 = vmatprep.subr.mxu0 0.0
  %1421 = vmatpush1.msra.mxu0 0.0
  %1422 = vmatprep.subr.mxu0 0.0
  %1423 = vmatpush1.msra.mxu0 0.0
  %1424 = vmatprep.subr.mxu0 0.0
  %1425 = vmatpush1.msra.mxu0 0.0
  %1426 = vmatprep.subr.mxu0 0.0
  %1427 = vmatpush1.msra.mxu0 0.0
  %1428 = vmatprep.subr.mxu0 0.0
  %1429 = vmatpush1.msra.mxu0 0.0
  %1430 = vmatprep.subr.mxu0 0.0
  %1431 = vmatpush1.msra.mxu0 0.0
  %1432 = vmatprep.subr.mxu0 0.0
  %1433 = vmatpush1.msra.mxu0 0.0
  %1434 = vmatprep.subr.mxu0 0.0
  %1435 = vmatpush1.msra.mxu0 0.0
  %1436 = vmatprep.subr.mxu0 0.0
  %1437 = vmatpush1.msra.mxu0 0.0
  %1438 = vmatprep.subr.mxu0 0.0
  %1439 = vmatpush1.msra.mxu0 0.0
  %1440 = vmatprep.subr.mxu0 0.0
  %1441 = vmatpush1.msra.mxu0 0.0
  %1442 = vmatprep.subr.mxu0 0.0
  %1443 = vmatpush1.msra.mxu0 0.0
  %1444 = vmatprep.subr.mxu0 0.0
  %1445 = vmatpush1.msra.mxu0 0.0
  %1446 = vmatprep.subr.mxu0 0.0
  %1447 = vmatpush1.msra.mxu0 0.0
  %1448 = vmatprep.subr.mxu0 0.0
  %1449 = vmatpush1.msra.mxu0 0.0
  %1450 = vmatprep.subr.mxu0 0.0
  %1451 = vmatpush1.msra.mxu0 0.0
  %1452 = vmatprep.subr.mxu0 0.0
  %1453 = vmatpush1.msra.mxu0 0.0
  %1454 = vmatprep.subr.mxu0 0.0
  %1455 = vmatpush1.msra.mxu0 0.0
  %1456 = vmatprep.subr.mxu0 0.0
  %1457 = vmatpush1.msra.mxu0 0.0
  %1458 = vmatprep.subr.mxu0 0.0
  %1459 = vmatpush1.msra.mxu0 0.0
  %1460 = vmatprep.subr.mxu0 0.0
  %1461 = vmatpush1.msra.mxu0 0.0
  %1462 = vmatprep.subr.mxu0 0.0
  %1463 = vmatpush1.msra.mxu0 0.0
  %1464 = vmatprep.subr.mxu0 0.0
  %1465 = vmatpush1.msra.mxu0 0.0
  %1466 = vmatprep.subr.mxu0 0.0
  %1467 = vmatpush1.msra.mxu0 0.0
  %1468 = vmatprep.subr.mxu0 0.0
  %1469 = vmatpush1.msra.mxu0 0.0
  %1470 = vmatprep.subr.mxu0 0.0
  %1471 = vmatpush1.msra.mxu0 0.0
  %1472 = vmatprep.subr.mxu0 0.0
  %1473 = vmatpush1.msra.mxu0 0.0
  %1474 = vmatprep.subr.mxu0 0.0
  %1475 = vmatpush1.msra.mxu0 0.0
  %1476 = vmatprep.mubr.f32.mxu0 0.0
  %1477 = vmatmul.mubr.f32.gmra.mrb[0].mxu0 %v1410
  %v1478 = vpop.f32.mrb[0].mxu0
  %v1479 = vadd.f32 0.0, %v1478
  %v1480 = vpop.f32.mrb[0].mxu0
  %1481 = vdwg.mxu0
  %1482 = vrot.lane.b32.xlu0 %v246, 120
  %v1483 = vpop.permute.xlu0 %1482
  %v1484 = vsel %vm368, %v1483, 0
  %1486 = vmatprep.subr.mxu0 0.0
  %1487 = vmatpush1.xpose.msra.mxu0 %v1321
  %1488 = vmatprep.subr.mxu0 0.0
  %1489 = vmatpush1.xpose.msra.mxu0 0.0
  %1490 = vmatprep.subr.mxu0 0.0
  %1491 = vmatpush1.xpose.msra.mxu0 0.0
  %1492 = vmatprep.subr.mxu0 0.0
  %1493 = vmatpush1.xpose.msra.mxu0 0.0
  %1494 = vmatprep.subr.mxu0 0.0
  %1495 = vmatpush1.xpose.msra.mxu0 0.0
  %1496 = vmatprep.subr.mxu0 0.0
  %1497 = vmatpush1.xpose.msra.mxu0 0.0
  %1498 = vmatprep.subr.mxu0 0.0
  %1499 = vmatpush1.xpose.msra.mxu0 0.0
  %1500 = vmatprep.subr.mxu0 0.0
  %1501 = vmatpush1.xpose.msra.mxu0 0.0
  %1502 = vmatprep.subr.mxu0 0.0
  %1503 = vmatpush1.xpose.msra.mxu0 0.0
  %1504 = vmatprep.subr.mxu0 0.0
  %1505 = vmatpush1.xpose.msra.mxu0 0.0
  %1506 = vmatprep.subr.mxu0 0.0
  %1507 = vmatpush1.xpose.msra.mxu0 0.0
  %1508 = vmatprep.subr.mxu0 0.0
  %1509 = vmatpush1.xpose.msra.mxu0 0.0
  %1510 = vmatprep.subr.mxu0 0.0
  %1511 = vmatpush1.xpose.msra.mxu0 0.0
  %1512 = vmatprep.subr.mxu0 0.0
  %1513 = vmatpush1.xpose.msra.mxu0 0.0
  %1514 = vmatprep.subr.mxu0 0.0
  %1515 = vmatpush1.xpose.msra.mxu0 0.0
  %1516 = vmatprep.subr.mxu0 0.0
  %1517 = vmatpush1.xpose.msra.mxu0 0.0
  %1518 = vmatprep.subr.mxu0 0.0
  %1519 = vmatpush1.xpose.msra.mxu0 0.0
  %1520 = vmatprep.subr.mxu0 0.0
  %1521 = vmatpush1.xpose.msra.mxu0 0.0
  %1522 = vmatprep.subr.mxu0 0.0
  %1523 = vmatpush1.xpose.msra.mxu0 0.0
  %1524 = vmatprep.subr.mxu0 0.0
  %1525 = vmatpush1.xpose.msra.mxu0 0.0
  %1526 = vmatprep.subr.mxu0 0.0
  %1527 = vmatpush1.xpose.msra.mxu0 0.0
  %1528 = vmatprep.subr.mxu0 0.0
  %1529 = vmatpush1.xpose.msra.mxu0 0.0
  %1530 = vmatprep.subr.mxu0 0.0
  %1531 = vmatpush1.xpose.msra.mxu0 0.0
  %1532 = vmatprep.subr.mxu0 0.0
  %1533 = vmatpush1.xpose.msra.mxu0 0.0
  %1534 = vmatprep.subr.mxu0 0.0
  %1535 = vmatpush1.xpose.msra.mxu0 0.0
  %1536 = vmatprep.subr.mxu0 0.0
  %1537 = vmatpush1.xpose.msra.mxu0 0.0
  %1538 = vmatprep.subr.mxu0 0.0
  %1539 = vmatpush1.xpose.msra.mxu0 0.0
  %1540 = vmatprep.subr.mxu0 0.0
  %1541 = vmatpush1.xpose.msra.mxu0 0.0
  %1542 = vmatprep.subr.mxu0 0.0
  %1543 = vmatpush1.xpose.msra.mxu0 0.0
  %1544 = vmatprep.subr.mxu0 0.0
  %1545 = vmatpush1.xpose.msra.mxu0 0.0
  %1546 = vmatprep.subr.mxu0 0.0
  %1547 = vmatpush1.xpose.msra.mxu0 0.0
  %1548 = vmatprep.subr.mxu0 0.0
  %1549 = vmatpush1.xpose.msra.mxu0 0.0
  %1550 = vmatprep.mubr.f32.mxu0 0.0
  %1551 = vmatmul.mubr.f32.gmra.mrb[0].mxu0 %v1484
  %v1552 = vpop.f32.mrb[0].mxu0
  %v1553 = vadd.f32 0.0, %v1552
  %v1554 = vpop.f32.mrb[0].mxu0
  %1555 = vdwg.mxu0
  %v1556 = vmul.f32 %v1553, 0.35355338
  %v1557 = vsel %vm360, %v1556, -1e+30
  %v1558 = vsel %vm368, %v1557, -inf
  %1559 = vmax.xlane.f32.xlu0 %v1558
  %v1560 = vpop.xlane.xlu0 %1559
  %v1561 = vsub.f32 %v1557, %v1560
  %v1562 = vmul.f32 %v1561, 1.442695
  %v1563 = vpow.pop %v1562
  %v1564 = vsel %vm368, %v1563, 0.0
  %1565 = vadd.xlane.f32.xlu0 %v1564
  %v1566 = vpop.xlane.xlu0 %1565
  %v1567 = vrcp.pop %v1566
  %v1568 = vmul.f32 %v1563, %v1567
  %v1570 = vsel %vm368, %v1568, 0
  %1572 = vmatprep.subr.mxu0 0.0
  %1573 = vmatpush1.msra.mxu0 %v1407
  %1574 = vmatprep.subr.mxu0 0.0
  %1575 = vmatpush1.msra.mxu0 0.0
  %1576 = vmatprep.subr.mxu0 0.0
  %1577 = vmatpush1.msra.mxu0 0.0
  %1578 = vmatprep.subr.mxu0 0.0
  %1579 = vmatpush1.msra.mxu0 0.0
  %1580 = vmatprep.subr.mxu0 0.0
  %1581 = vmatpush1.msra.mxu0 0.0
  %1582 = vmatprep.subr.mxu0 0.0
  %1583 = vmatpush1.msra.mxu0 0.0
  %1584 = vmatprep.subr.mxu0 0.0
  %1585 = vmatpush1.msra.mxu0 0.0
  %1586 = vmatprep.subr.mxu0 0.0
  %1587 = vmatpush1.msra.mxu0 0.0
  %1588 = vmatprep.subr.mxu0 0.0
  %1589 = vmatpush1.msra.mxu0 0.0
  %1590 = vmatprep.subr.mxu0 0.0
  %1591 = vmatpush1.msra.mxu0 0.0
  %1592 = vmatprep.subr.mxu0 0.0
  %1593 = vmatpush1.msra.mxu0 0.0
  %1594 = vmatprep.subr.mxu0 0.0
  %1595 = vmatpush1.msra.mxu0 0.0
  %1596 = vmatprep.subr.mxu0 0.0
  %1597 = vmatpush1.msra.mxu0 0.0
  %1598 = vmatprep.subr.mxu0 0.0
  %1599 = vmatpush1.msra.mxu0 0.0
  %1600 = vmatprep.subr.mxu0 0.0
  %1601 = vmatpush1.msra.mxu0 0.0
  %1602 = vmatprep.subr.mxu0 0.0
  %1603 = vmatpush1.msra.mxu0 0.0
  %1604 = vmatprep.subr.mxu0 0.0
  %1605 = vmatpush1.msra.mxu0 0.0
  %1606 = vmatprep.subr.mxu0 0.0
  %1607 = vmatpush1.msra.mxu0 0.0
  %1608 = vmatprep.subr.mxu0 0.0
  %1609 = vmatpush1.msra.mxu0 0.0
  %1610 = vmatprep.subr.mxu0 0.0
  %1611 = vmatpush1.msra.mxu0 0.0
  %1612 = vmatprep.subr.mxu0 0.0
  %1613 = vmatpush1.msra.mxu0 0.0
  %1614 = vmatprep.subr.mxu0 0.0
  %1615 = vmatpush1.msra.mxu0 0.0
  %1616 = vmatprep.subr.mxu0 0.0
  %1617 = vmatpush1.msra.mxu0 0.0
  %1618 = vmatprep.subr.mxu0 0.0
  %1619 = vmatpush1.msra.mxu0 0.0
  %1620 = vmatprep.subr.mxu0 0.0
  %1621 = vmatpush1.msra.mxu0 0.0
  %1622 = vmatprep.subr.mxu0 0.0
  %1623 = vmatpush1.msra.mxu0 0.0
  %1624 = vmatprep.subr.mxu0 0.0
  %1625 = vmatpush1.msra.mxu0 0.0
  %1626 = vmatprep.subr.mxu0 0.0
  %1627 = vmatpush1.msra.mxu0 0.0
  %1628 = vmatprep.subr.mxu0 0.0
  %1629 = vmatpush1.msra.mxu0 0.0
  %1630 = vmatprep.subr.mxu0 0.0
  %1631 = vmatpush1.msra.mxu0 0.0
  %1632 = vmatprep.subr.mxu0 0.0
  %1633 = vmatpush1.msra.mxu0 0.0
  %1634 = vmatprep.subr.mxu0 0.0
  %1635 = vmatpush1.msra.mxu0 0.0
  %1636 = vmatprep.mubr.f32.mxu0 0.0
  %1637 = vmatmul.mubr.f32.gmra.mrb[0].mxu0 %v1570
  %v1638 = vpop.f32.mrb[0].mxu0
  %v1639 = vadd.f32 0.0, %v1638
  %v1640 = vpop.f32.mrb[0].mxu0
  %1641 = vdwg.mxu0
  %v1643 = vsel %vm368, %v1639, 0
  %1645 = vmatprep.subr.mxu0 0.0
  %1646 = vmatpush1.msra.mxu0 %v362
  %1647 = vmatprep.subr.mxu0 0.0
  %1648 = vmatpush1.msra.mxu0 0.0
  %1649 = vmatprep.subr.mxu0 0.0
  %1650 = vmatpush1.msra.mxu0 0.0
  %1651 = vmatprep.subr.mxu0 0.0
  %1652 = vmatpush1.msra.mxu0 0.0
  %1653 = vmatprep.subr.mxu0 0.0
  %1654 = vmatpush1.msra.mxu0 0.0
  %1655 = vmatprep.subr.mxu0 0.0
  %1656 = vmatpush1.msra.mxu0 0.0
  %1657 = vmatprep.subr.mxu0 0.0
  %1658 = vmatpush1.msra.mxu0 0.0
  %1659 = vmatprep.subr.mxu0 0.0
  %1660 = vmatpush1.msra.mxu0 0.0
  %1661 = vmatprep.subr.mxu0 0.0
  %1662 = vmatpush1.msra.mxu0 0.0
  %1663 = vmatprep.subr.mxu0 0.0
  %1664 = vmatpush1.msra.mxu0 0.0
  %1665 = vmatprep.subr.mxu0 0.0
  %1666 = vmatpush1.msra.mxu0 0.0
  %1667 = vmatprep.subr.mxu0 0.0
  %1668 = vmatpush1.msra.mxu0 0.0
  %1669 = vmatprep.subr.mxu0 0.0
  %1670 = vmatpush1.msra.mxu0 0.0
  %1671 = vmatprep.subr.mxu0 0.0
  %1672 = vmatpush1.msra.mxu0 0.0
  %1673 = vmatprep.subr.mxu0 0.0
  %1674 = vmatpush1.msra.mxu0 0.0
  %1675 = vmatprep.subr.mxu0 0.0
  %1676 = vmatpush1.msra.mxu0 0.0
  %1677 = vmatprep.subr.mxu0 0.0
  %1678 = vmatpush1.msra.mxu0 0.0
  %1679 = vmatprep.subr.mxu0 0.0
  %1680 = vmatpush1.msra.mxu0 0.0
  %1681 = vmatprep.subr.mxu0 0.0
  %1682 = vmatpush1.msra.mxu0 0.0
  %1683 = vmatprep.subr.mxu0 0.0
  %1684 = vmatpush1.msra.mxu0 0.0
  %1685 = vmatprep.subr.mxu0 0.0
  %1686 = vmatpush1.msra.mxu0 0.0
  %1687 = vmatprep.subr.mxu0 0.0
  %1688 = vmatpush1.msra.mxu0 0.0
  %1689 = vmatprep.subr.mxu0 0.0
  %1690 = vmatpush1.msra.mxu0 0.0
  %1691 = vmatprep.subr.mxu0 0.0
  %1692 = vmatpush1.msra.mxu0 0.0
  %1693 = vmatprep.subr.mxu0 0.0
  %1694 = vmatpush1.msra.mxu0 0.0
  %1695 = vmatprep.subr.mxu0 0.0
  %1696 = vmatpush1.msra.mxu0 0.0
  %1697 = vmatprep.subr.mxu0 0.0
  %1698 = vmatpush1.msra.mxu0 0.0
  %1699 = vmatprep.subr.mxu0 0.0
  %1700 = vmatpush1.msra.mxu0 0.0
  %1701 = vmatprep.subr.mxu0 0.0
  %1702 = vmatpush1.msra.mxu0 0.0
  %1703 = vmatprep.subr.mxu0 0.0
  %1704 = vmatpush1.msra.mxu0 0.0
  %1705 = vmatprep.subr.mxu0 0.0
  %1706 = vmatpush1.msra.mxu0 0.0
  %1707 = vmatprep.subr.mxu0 0.0
  %1708 = vmatpush1.msra.mxu0 0.0
  %1709 = vmatprep.mubr.f32.mxu0 0.0
  %1710 = vmatmul.mubr.f32.gmra.mrb[0].mxu0 %v1643
  %v1711 = vpop.f32.mrb[0].mxu0
  %v1712 = vadd.f32 0.0, %v1711
  %v1713 = vpop.f32.mrb[0].mxu0
  %1714 = vdwg.mxu0
  %v1716 = vsel %vm368, %v1479, 0
  %1718 = vmatprep.subr.mxu0 0.0
  %1719 = vmatpush1.msra.mxu0 %v361
  %1720 = vmatprep.subr.mxu0 0.0
  %1721 = vmatpush1.msra.mxu0 0.0
  %1722 = vmatprep.subr.mxu0 0.0
  %1723 = vmatpush1.msra.mxu0 0.0
  %1724 = vmatprep.subr.mxu0 0.0
  %1725 = vmatpush1.msra.mxu0 0.0
  %1726 = vmatprep.subr.mxu0 0.0
  %1727 = vmatpush1.msra.mxu0 0.0
  %1728 = vmatprep.subr.mxu0 0.0
  %1729 = vmatpush1.msra.mxu0 0.0
  %1730 = vmatprep.subr.mxu0 0.0
  %1731 = vmatpush1.msra.mxu0 0.0
  %1732 = vmatprep.subr.mxu0 0.0
  %1733 = vmatpush1.msra.mxu0 0.0
  %1734 = vmatprep.subr.mxu0 0.0
  %1735 = vmatpush1.msra.mxu0 0.0
  %1736 = vmatprep.subr.mxu0 0.0
  %1737 = vmatpush1.msra.mxu0 0.0
  %1738 = vmatprep.subr.mxu0 0.0
  %1739 = vmatpush1.msra.mxu0 0.0
  %1740 = vmatprep.subr.mxu0 0.0
  %1741 = vmatpush1.msra.mxu0 0.0
  %1742 = vmatprep.subr.mxu0 0.0
  %1743 = vmatpush1.msra.mxu0 0.0
  %1744 = vmatprep.subr.mxu0 0.0
  %1745 = vmatpush1.msra.mxu0 0.0
  %1746 = vmatprep.subr.mxu0 0.0
  %1747 = vmatpush1.msra.mxu0 0.0
  %1748 = vmatprep.subr.mxu0 0.0
  %1749 = vmatpush1.msra.mxu0 0.0
  %1750 = vmatprep.subr.mxu0 0.0
  %1751 = vmatpush1.msra.mxu0 0.0
  %1752 = vmatprep.subr.mxu0 0.0
  %1753 = vmatpush1.msra.mxu0 0.0
  %1754 = vmatprep.subr.mxu0 0.0
  %1755 = vmatpush1.msra.mxu0 0.0
  %1756 = vmatprep.subr.mxu0 0.0
  %1757 = vmatpush1.msra.mxu0 0.0
  %1758 = vmatprep.subr.mxu0 0.0
  %1759 = vmatpush1.msra.mxu0 0.0
  %1760 = vmatprep.subr.mxu0 0.0
  %1761 = vmatpush1.msra.mxu0 0.0
  %1762 = vmatprep.subr.mxu0 0.0
  %1763 = vmatpush1.msra.mxu0 0.0
  %1764 = vmatprep.subr.mxu0 0.0
  %1765 = vmatpush1.msra.mxu0 0.0
  %1766 = vmatprep.subr.mxu0 0.0
  %1767 = vmatpush1.msra.mxu0 0.0
  %1768 = vmatprep.subr.mxu0 0.0
  %1769 = vmatpush1.msra.mxu0 0.0
  %1770 = vmatprep.subr.mxu0 0.0
  %1771 = vmatpush1.msra.mxu0 0.0
  %1772 = vmatprep.subr.mxu0 0.0
  %1773 = vmatpush1.msra.mxu0 0.0
  %1774 = vmatprep.subr.mxu0 0.0
  %1775 = vmatpush1.msra.mxu0 0.0
  %1776 = vmatprep.subr.mxu0 0.0
  %1777 = vmatpush1.msra.mxu0 0.0
  %1778 = vmatprep.subr.mxu0 0.0
  %1779 = vmatpush1.msra.mxu0 0.0
  %1780 = vmatprep.subr.mxu0 0.0
  %1781 = vmatpush1.msra.mxu0 0.0
  %1782 = vmatprep.mubr.f32.mxu0 0.0
  %1783 = vmatmul.mubr.f32.gmra.mrb[0].mxu0 %v1716
  %v1784 = vpop.f32.mrb[0].mxu0
  %v1785 = vadd.f32 %v1712, %v1784
  %v1786 = vpop.f32.mrb[0].mxu0
  %1787 = vdwg.mxu0
  %1788 = vrot.lane.b32.xlu0 %v246, 112
  %v1789 = vpop.permute.xlu0 %1788
  %1790 = vrot.lane.b32.xlu0 %v352, 88
  %v1791 = vpop.permute.xlu0 %1790
  %v1792 = vsel %vm368, %v1789, 0
  %v1794 = vsel %vm368, %v1791, 0
  %1796 = vmatprep.subr.mxu0 0.0
  %1797 = vmatpush1.xpose.msra.mxu0 %v1794
  %1798 = vmatprep.subr.mxu0 0.0
  %1799 = vmatpush1.xpose.msra.mxu0 0.0
  %1800 = vmatprep.subr.mxu0 0.0
  %1801 = vmatpush1.xpose.msra.mxu0 0.0
  %1802 = vmatprep.subr.mxu0 0.0
  %1803 = vmatpush1.xpose.msra.mxu0 0.0
  %1804 = vmatprep.subr.mxu0 0.0
  %1805 = vmatpush1.xpose.msra.mxu0 0.0
  %1806 = vmatprep.subr.mxu0 0.0
  %1807 = vmatpush1.xpose.msra.mxu0 0.0
  %1808 = vmatprep.subr.mxu0 0.0
  %1809 = vmatpush1.xpose.msra.mxu0 0.0
  %1810 = vmatprep.subr.mxu0 0.0
  %1811 = vmatpush1.xpose.msra.mxu0 0.0
  %1812 = vmatprep.subr.mxu0 0.0
  %1813 = vmatpush1.xpose.msra.mxu0 0.0
  %1814 = vmatprep.subr.mxu0 0.0
  %1815 = vmatpush1.xpose.msra.mxu0 0.0
  %1816 = vmatprep.subr.mxu0 0.0
  %1817 = vmatpush1.xpose.msra.mxu0 0.0
  %1818 = vmatprep.subr.mxu0 0.0
  %1819 = vmatpush1.xpose.msra.mxu0 0.0
  %1820 = vmatprep.subr.mxu0 0.0
  %1821 = vmatpush1.xpose.msra.mxu0 0.0
  %1822 = vmatprep.subr.mxu0 0.0
  %1823 = vmatpush1.xpose.msra.mxu0 0.0
  %1824 = vmatprep.subr.mxu0 0.0
  %1825 = vmatpush1.xpose.msra.mxu0 0.0
  %1826 = vmatprep.subr.mxu0 0.0
  %1827 = vmatpush1.xpose.msra.mxu0 0.0
  %1828 = vmatprep.subr.mxu0 0.0
  %1829 = vmatpush1.xpose.msra.mxu0 0.0
  %1830 = vmatprep.subr.mxu0 0.0
  %1831 = vmatpush1.xpose.msra.mxu0 0.0
  %1832 = vmatprep.subr.mxu0 0.0
  %1833 = vmatpush1.xpose.msra.mxu0 0.0
  %1834 = vmatprep.subr.mxu0 0.0
  %1835 = vmatpush1.xpose.msra.mxu0 0.0
  %1836 = vmatprep.subr.mxu0 0.0
  %1837 = vmatpush1.xpose.msra.mxu0 0.0
  %1838 = vmatprep.subr.mxu0 0.0
  %1839 = vmatpush1.xpose.msra.mxu0 0.0
  %1840 = vmatprep.subr.mxu0 0.0
  %1841 = vmatpush1.xpose.msra.mxu0 0.0
  %1842 = vmatprep.subr.mxu0 0.0
  %1843 = vmatpush1.xpose.msra.mxu0 0.0
  %1844 = vmatprep.subr.mxu0 0.0
  %1845 = vmatpush1.xpose.msra.mxu0 0.0
  %1846 = vmatprep.subr.mxu0 0.0
  %1847 = vmatpush1.xpose.msra.mxu0 0.0
  %1848 = vmatprep.subr.mxu0 0.0
  %1849 = vmatpush1.xpose.msra.mxu0 0.0
  %1850 = vmatprep.subr.mxu0 0.0
  %1851 = vmatpush1.xpose.msra.mxu0 0.0
  %1852 = vmatprep.subr.mxu0 0.0
  %1853 = vmatpush1.xpose.msra.mxu0 0.0
  %1854 = vmatprep.subr.mxu0 0.0
  %1855 = vmatpush1.xpose.msra.mxu0 0.0
  %1856 = vmatprep.subr.mxu0 0.0
  %1857 = vmatpush1.xpose.msra.mxu0 0.0
  %1858 = vmatprep.subr.mxu0 0.0
  %1859 = vmatpush1.xpose.msra.mxu0 0.0
  %1860 = vmatprep.mubr.f32.mxu0 0.0
  %1861 = vmatmul.mubr.f32.gmra.mrb[0].mxu0 %v1792
  %v1862 = vpop.f32.mrb[0].mxu0
  %v1863 = vadd.f32 0.0, %v1862
  %v1864 = vpop.f32.mrb[0].mxu0
  %1865 = vdwg.mxu0
  %v1866 = vmul.f32 %v1863, 0.35355338
  %v1867 = vsel %vm360, %v1866, -1e+30
  %v1868 = vsel %vm368, %v1867, -inf
  %1869 = vmax.xlane.f32.xlu0 %v1868
  %v1870 = vpop.xlane.xlu0 %1869
  %v1871 = vsub.f32 %v1867, %v1870
  %v1872 = vmul.f32 %v1871, 1.442695
  %v1873 = vpow.pop %v1872
  %v1874 = vsel %vm368, %v1873, 0.0
  %1875 = vadd.xlane.f32.xlu0 %v1874
  %v1876 = vpop.xlane.xlu0 %1875
  %v1877 = vrcp.pop %v1876
  %v1878 = vmul.f32 %v1873, %v1877
  %1879 = vrot.lane.b32.xlu0 %v149, 72
  %v1880 = vpop.permute.xlu0 %1879
  %v1883 = vsel %vm368, %v1878, 0
  %1885 = vmatprep.subr.mxu0 0.0
  %1886 = vmatpush1.msra.mxu0 %v1880
  %1887 = vmatprep.subr.mxu0 0.0
  %1888 = vmatpush1.msra.mxu0 0.0
  %1889 = vmatprep.subr.mxu0 0.0
  %1890 = vmatpush1.msra.mxu0 0.0
  %1891 = vmatprep.subr.mxu0 0.0
  %1892 = vmatpush1.msra.mxu0 0.0
  %1893 = vmatprep.subr.mxu0 0.0
  %1894 = vmatpush1.msra.mxu0 0.0
  %1895 = vmatprep.subr.mxu0 0.0
  %1896 = vmatpush1.msra.mxu0 0.0
  %1897 = vmatprep.subr.mxu0 0.0
  %1898 = vmatpush1.msra.mxu0 0.0
  %1899 = vmatprep.subr.mxu0 0.0
  %1900 = vmatpush1.msra.mxu0 0.0
  %1901 = vmatprep.subr.mxu0 0.0
  %1902 = vmatpush1.msra.mxu0 0.0
  %1903 = vmatprep.subr.mxu0 0.0
  %1904 = vmatpush1.msra.mxu0 0.0
  %1905 = vmatprep.subr.mxu0 0.0
  %1906 = vmatpush1.msra.mxu0 0.0
  %1907 = vmatprep.subr.mxu0 0.0
  %1908 = vmatpush1.msra.mxu0 0.0
  %1909 = vmatprep.subr.mxu0 0.0
  %1910 = vmatpush1.msra.mxu0 0.0
  %1911 = vmatprep.subr.mxu0 0.0
  %1912 = vmatpush1.msra.mxu0 0.0
  %1913 = vmatprep.subr.mxu0 0.0
  %1914 = vmatpush1.msra.mxu0 0.0
  %1915 = vmatprep.subr.mxu0 0.0
  %1916 = vmatpush1.msra.mxu0 0.0
  %1917 = vmatprep.subr.mxu0 0.0
  %1918 = vmatpush1.msra.mxu0 0.0
  %1919 = vmatprep.subr.mxu0 0.0
  %1920 = vmatpush1.msra.mxu0 0.0
  %1921 = vmatprep.subr.mxu0 0.0
  %1922 = vmatpush1.msra.mxu0 0.0
  %1923 = vmatprep.subr.mxu0 0.0
  %1924 = vmatpush1.msra.mxu0 0.0
  %1925 = vmatprep.subr.mxu0 0.0
  %1926 = vmatpush1.msra.mxu0 0.0
  %1927 = vmatprep.subr.mxu0 0.0
  %1928 = vmatpush1.msra.mxu0 0.0
  %1929 = vmatprep.subr.mxu0 0.0
  %1930 = vmatpush1.msra.mxu0 0.0
  %1931 = vmatprep.subr.mxu0 0.0
  %1932 = vmatpush1.msra.mxu0 0.0
  %1933 = vmatprep.subr.mxu0 0.0
  %1934 = vmatpush1.msra.mxu0 0.0
  %1935 = vmatprep.subr.mxu0 0.0
  %1936 = vmatpush1.msra.mxu0 0.0
  %1937 = vmatprep.subr.mxu0 0.0
  %1938 = vmatpush1.msra.mxu0 0.0
  %1939 = vmatprep.subr.mxu0 0.0
  %1940 = vmatpush1.msra.mxu0 0.0
  %1941 = vmatprep.subr.mxu0 0.0
  %1942 = vmatpush1.msra.mxu0 0.0
  %1943 = vmatprep.subr.mxu0 0.0
  %1944 = vmatpush1.msra.mxu0 0.0
  %1945 = vmatprep.subr.mxu0 0.0
  %1946 = vmatpush1.msra.mxu0 0.0
  %1947 = vmatprep.subr.mxu0 0.0
  %1948 = vmatpush1.msra.mxu0 0.0
  %1949 = vmatprep.mubr.f32.mxu0 0.0
  %1950 = vmatmul.mubr.f32.gmra.mrb[0].mxu0 %v1883
  %v1951 = vpop.f32.mrb[0].mxu0
  %v1952 = vadd.f32 0.0, %v1951
  %v1953 = vpop.f32.mrb[0].mxu0
  %1954 = vdwg.mxu0
  %v1956 = vsel %vm368, %v1952, 0
  %1958 = vmatprep.subr.mxu0 0.0
  %1959 = vmatpush1.msra.mxu0 %v363
  %1960 = vmatprep.subr.mxu0 0.0
  %1961 = vmatpush1.msra.mxu0 0.0
  %1962 = vmatprep.subr.mxu0 0.0
  %1963 = vmatpush1.msra.mxu0 0.0
  %1964 = vmatprep.subr.mxu0 0.0
  %1965 = vmatpush1.msra.mxu0 0.0
  %1966 = vmatprep.subr.mxu0 0.0
  %1967 = vmatpush1.msra.mxu0 0.0
  %1968 = vmatprep.subr.mxu0 0.0
  %1969 = vmatpush1.msra.mxu0 0.0
  %1970 = vmatprep.subr.mxu0 0.0
  %1971 = vmatpush1.msra.mxu0 0.0
  %1972 = vmatprep.subr.mxu0 0.0
  %1973 = vmatpush1.msra.mxu0 0.0
  %1974 = vmatprep.subr.mxu0 0.0
  %1975 = vmatpush1.msra.mxu0 0.0
  %1976 = vmatprep.subr.mxu0 0.0
  %1977 = vmatpush1.msra.mxu0 0.0
  %1978 = vmatprep.subr.mxu0 0.0
  %1979 = vmatpush1.msra.mxu0 0.0
  %1980 = vmatprep.subr.mxu0 0.0
  %1981 = vmatpush1.msra.mxu0 0.0
  %1982 = vmatprep.subr.mxu0 0.0
  %1983 = vmatpush1.msra.mxu0 0.0
  %1984 = vmatprep.subr.mxu0 0.0
  %1985 = vmatpush1.msra.mxu0 0.0
  %1986 = vmatprep.subr.mxu0 0.0
  %1987 = vmatpush1.msra.mxu0 0.0
  %1988 = vmatprep.subr.mxu0 0.0
  %1989 = vmatpush1.msra.mxu0 0.0
  %1990 = vmatprep.subr.mxu0 0.0
  %1991 = vmatpush1.msra.mxu0 0.0
  %1992 = vmatprep.subr.mxu0 0.0
  %1993 = vmatpush1.msra.mxu0 0.0
  %1994 = vmatprep.subr.mxu0 0.0
  %1995 = vmatpush1.msra.mxu0 0.0
  %1996 = vmatprep.subr.mxu0 0.0
  %1997 = vmatpush1.msra.mxu0 0.0
  %1998 = vmatprep.subr.mxu0 0.0
  %1999 = vmatpush1.msra.mxu0 0.0
  %2000 = vmatprep.subr.mxu0 0.0
  %2001 = vmatpush1.msra.mxu0 0.0
  %2002 = vmatprep.subr.mxu0 0.0
  %2003 = vmatpush1.msra.mxu0 0.0
  %2004 = vmatprep.subr.mxu0 0.0
  %2005 = vmatpush1.msra.mxu0 0.0
  %2006 = vmatprep.subr.mxu0 0.0
  %2007 = vmatpush1.msra.mxu0 0.0
  %2008 = vmatprep.subr.mxu0 0.0
  %2009 = vmatpush1.msra.mxu0 0.0
  %2010 = vmatprep.subr.mxu0 0.0
  %2011 = vmatpush1.msra.mxu0 0.0
  %2012 = vmatprep.subr.mxu0 0.0
  %2013 = vmatpush1.msra.mxu0 0.0
  %2014 = vmatprep.subr.mxu0 0.0
  %2015 = vmatpush1.msra.mxu0 0.0
  %2016 = vmatprep.subr.mxu0 0.0
  %2017 = vmatpush1.msra.mxu0 0.0
  %2018 = vmatprep.subr.mxu0 0.0
  %2019 = vmatpush1.msra.mxu0 0.0
  %2020 = vmatprep.subr.mxu0 0.0
  %2021 = vmatpush1.msra.mxu0 0.0
  %2022 = vmatprep.mubr.f32.mxu0 0.0
  %2023 = vmatmul.mubr.f32.gmra.mrb[0].mxu0 %v1956
  %v2024 = vpop.f32.mrb[0].mxu0
  %v2025 = vadd.f32 0.0, %v2024
  %v2026 = vpop.f32.mrb[0].mxu0
  %2027 = vdwg.mxu0
  %v2028 = vadd.f32 %v1785, %v2025
  %2029 = vrot.lane.b32.xlu0 %v246, 104
  %v2030 = vpop.permute.xlu0 %2029
  %v2031 = vsel %vm368, %v2030, 0
  %2033 = vmatprep.subr.mxu0 0.0
  %2034 = vmatpush1.xpose.msra.mxu0 %v1794
  %2035 = vmatprep.subr.mxu0 0.0
  %2036 = vmatpush1.xpose.msra.mxu0 0.0
  %2037 = vmatprep.subr.mxu0 0.0
  %2038 = vmatpush1.xpose.msra.mxu0 0.0
  %2039 = vmatprep.subr.mxu0 0.0
  %2040 = vmatpush1.xpose.msra.mxu0 0.0
  %2041 = vmatprep.subr.mxu0 0.0
  %2042 = vmatpush1.xpose.msra.mxu0 0.0
  %2043 = vmatprep.subr.mxu0 0.0
  %2044 = vmatpush1.xpose.msra.mxu0 0.0
  %2045 = vmatprep.subr.mxu0 0.0
  %2046 = vmatpush1.xpose.msra.mxu0 0.0
  %2047 = vmatprep.subr.mxu0 0.0
  %2048 = vmatpush1.xpose.msra.mxu0 0.0
  %2049 = vmatprep.subr.mxu0 0.0
  %2050 = vmatpush1.xpose.msra.mxu0 0.0
  %2051 = vmatprep.subr.mxu0 0.0
  %2052 = vmatpush1.xpose.msra.mxu0 0.0
  %2053 = vmatprep.subr.mxu0 0.0
  %2054 = vmatpush1.xpose.msra.mxu0 0.0
  %2055 = vmatprep.subr.mxu0 0.0
  %2056 = vmatpush1.xpose.msra.mxu0 0.0
  %2057 = vmatprep.subr.mxu0 0.0
  %2058 = vmatpush1.xpose.msra.mxu0 0.0
  %2059 = vmatprep.subr.mxu0 0.0
  %2060 = vmatpush1.xpose.msra.mxu0 0.0
  %2061 = vmatprep.subr.mxu0 0.0
  %2062 = vmatpush1.xpose.msra.mxu0 0.0
  %2063 = vmatprep.subr.mxu0 0.0
  %2064 = vmatpush1.xpose.msra.mxu0 0.0
  %2065 = vmatprep.subr.mxu0 0.0
  %2066 = vmatpush1.xpose.msra.mxu0 0.0
  %2067 = vmatprep.subr.mxu0 0.0
  %2068 = vmatpush1.xpose.msra.mxu0 0.0
  %2069 = vmatprep.subr.mxu0 0.0
  %2070 = vmatpush1.xpose.msra.mxu0 0.0
  %2071 = vmatprep.subr.mxu0 0.0
  %2072 = vmatpush1.xpose.msra.mxu0 0.0
  %2073 = vmatprep.subr.mxu0 0.0
  %2074 = vmatpush1.xpose.msra.mxu0 0.0
  %2075 = vmatprep.subr.mxu0 0.0
  %2076 = vmatpush1.xpose.msra.mxu0 0.0
  %2077 = vmatprep.subr.mxu0 0.0
  %2078 = vmatpush1.xpose.msra.mxu0 0.0
  %2079 = vmatprep.subr.mxu0 0.0
  %2080 = vmatpush1.xpose.msra.mxu0 0.0
  %2081 = vmatprep.subr.mxu0 0.0
  %2082 = vmatpush1.xpose.msra.mxu0 0.0
  %2083 = vmatprep.subr.mxu0 0.0
  %2084 = vmatpush1.xpose.msra.mxu0 0.0
  %2085 = vmatprep.subr.mxu0 0.0
  %2086 = vmatpush1.xpose.msra.mxu0 0.0
  %2087 = vmatprep.subr.mxu0 0.0
  %2088 = vmatpush1.xpose.msra.mxu0 0.0
  %2089 = vmatprep.subr.mxu0 0.0
  %2090 = vmatpush1.xpose.msra.mxu0 0.0
  %2091 = vmatprep.subr.mxu0 0.0
  %2092 = vmatpush1.xpose.msra.mxu0 0.0
  %2093 = vmatprep.subr.mxu0 0.0
  %2094 = vmatpush1.xpose.msra.mxu0 0.0
  %2095 = vmatprep.subr.mxu0 0.0
  %2096 = vmatpush1.xpose.msra.mxu0 0.0
  %2097 = vmatprep.mubr.f32.mxu0 0.0
  %2098 = vmatmul.mubr.f32.gmra.mrb[0].mxu0 %v2031
  %v2099 = vpop.f32.mrb[0].mxu0
  %v2100 = vadd.f32 0.0, %v2099
  %v2101 = vpop.f32.mrb[0].mxu0
  %2102 = vdwg.mxu0
  %v2103 = vmul.f32 %v2100, 0.35355338
  %v2104 = vsel %vm360, %v2103, -1e+30
  %v2105 = vsel %vm368, %v2104, -inf
  %2106 = vmax.xlane.f32.xlu0 %v2105
  %v2107 = vpop.xlane.xlu0 %2106
  %v2108 = vsub.f32 %v2104, %v2107
  %v2109 = vmul.f32 %v2108, 1.442695
  %v2110 = vpow.pop %v2109
  %v2111 = vsel %vm368, %v2110, 0.0
  %2112 = vadd.xlane.f32.xlu0 %v2111
  %v2113 = vpop.xlane.xlu0 %2112
  %v2114 = vrcp.pop %v2113
  %v2115 = vmul.f32 %v2110, %v2114
  %v2117 = vsel %vm368, %v2115, 0
  %2119 = vmatprep.subr.mxu0 0.0
  %2120 = vmatpush1.msra.mxu0 %v1880
  %2121 = vmatprep.subr.mxu0 0.0
  %2122 = vmatpush1.msra.mxu0 0.0
  %2123 = vmatprep.subr.mxu0 0.0
  %2124 = vmatpush1.msra.mxu0 0.0
  %2125 = vmatprep.subr.mxu0 0.0
  %2126 = vmatpush1.msra.mxu0 0.0
  %2127 = vmatprep.subr.mxu0 0.0
  %2128 = vmatpush1.msra.mxu0 0.0
  %2129 = vmatprep.subr.mxu0 0.0
  %2130 = vmatpush1.msra.mxu0 0.0
  %2131 = vmatprep.subr.mxu0 0.0
  %2132 = vmatpush1.msra.mxu0 0.0
  %2133 = vmatprep.subr.mxu0 0.0
  %2134 = vmatpush1.msra.mxu0 0.0
  %2135 = vmatprep.subr.mxu0 0.0
  %2136 = vmatpush1.msra.mxu0 0.0
  %2137 = vmatprep.subr.mxu0 0.0
  %2138 = vmatpush1.msra.mxu0 0.0
  %2139 = vmatprep.subr.mxu0 0.0
  %2140 = vmatpush1.msra.mxu0 0.0
  %2141 = vmatprep.subr.mxu0 0.0
  %2142 = vmatpush1.msra.mxu0 0.0
  %2143 = vmatprep.subr.mxu0 0.0
  %2144 = vmatpush1.msra.mxu0 0.0
  %2145 = vmatprep.subr.mxu0 0.0
  %2146 = vmatpush1.msra.mxu0 0.0
  %2147 = vmatprep.subr.mxu0 0.0
  %2148 = vmatpush1.msra.mxu0 0.0
  %2149 = vmatprep.subr.mxu0 0.0
  %2150 = vmatpush1.msra.mxu0 0.0
  %2151 = vmatprep.subr.mxu0 0.0
  %2152 = vmatpush1.msra.mxu0 0.0
  %2153 = vmatprep.subr.mxu0 0.0
  %2154 = vmatpush1.msra.mxu0 0.0
  %2155 = vmatprep.subr.mxu0 0.0
  %2156 = vmatpush1.msra.mxu0 0.0
  %2157 = vmatprep.subr.mxu0 0.0
  %2158 = vmatpush1.msra.mxu0 0.0
  %2159 = vmatprep.subr.mxu0 0.0
  %2160 = vmatpush1.msra.mxu0 0.0
  %2161 = vmatprep.subr.mxu0 0.0
  %2162 = vmatpush1.msra.mxu0 0.0
  %2163 = vmatprep.subr.mxu0 0.0
  %2164 = vmatpush1.msra.mxu0 0.0
  %2165 = vmatprep.subr.mxu0 0.0
  %2166 = vmatpush1.msra.mxu0 0.0
  %2167 = vmatprep.subr.mxu0 0.0
  %2168 = vmatpush1.msra.mxu0 0.0
  %2169 = vmatprep.subr.mxu0 0.0
  %2170 = vmatpush1.msra.mxu0 0.0
  %2171 = vmatprep.subr.mxu0 0.0
  %2172 = vmatpush1.msra.mxu0 0.0
  %2173 = vmatprep.subr.mxu0 0.0
  %2174 = vmatpush1.msra.mxu0 0.0
  %2175 = vmatprep.subr.mxu0 0.0
  %2176 = vmatpush1.msra.mxu0 0.0
  %2177 = vmatprep.subr.mxu0 0.0
  %2178 = vmatpush1.msra.mxu0 0.0
  %2179 = vmatprep.subr.mxu0 0.0
  %2180 = vmatpush1.msra.mxu0 0.0
  %2181 = vmatprep.subr.mxu0 0.0
  %2182 = vmatpush1.msra.mxu0 0.0
  %2183 = vmatprep.mubr.f32.mxu0 0.0
  %2184 = vmatmul.mubr.f32.gmra.mrb[0].mxu0 %v2117
  %v2185 = vpop.f32.mrb[0].mxu0
  %v2186 = vadd.f32 0.0, %v2185
  %v2187 = vpop.f32.mrb[0].mxu0
  %2188 = vdwg.mxu0
  %v2190 = vsel %vm368, %v2186, 0
  %2192 = vmatprep.subr.mxu0 0.0
  %2193 = vmatpush1.msra.mxu0 %v364
  %2194 = vmatprep.subr.mxu0 0.0
  %2195 = vmatpush1.msra.mxu0 0.0
  %2196 = vmatprep.subr.mxu0 0.0
  %2197 = vmatpush1.msra.mxu0 0.0
  %2198 = vmatprep.subr.mxu0 0.0
  %2199 = vmatpush1.msra.mxu0 0.0
  %2200 = vmatprep.subr.mxu0 0.0
  %2201 = vmatpush1.msra.mxu0 0.0
  %2202 = vmatprep.subr.mxu0 0.0
  %2203 = vmatpush1.msra.mxu0 0.0
  %2204 = vmatprep.subr.mxu0 0.0
  %2205 = vmatpush1.msra.mxu0 0.0
  %2206 = vmatprep.subr.mxu0 0.0
  %2207 = vmatpush1.msra.mxu0 0.0
  %2208 = vmatprep.subr.mxu0 0.0
  %2209 = vmatpush1.msra.mxu0 0.0
  %2210 = vmatprep.subr.mxu0 0.0
  %2211 = vmatpush1.msra.mxu0 0.0
  %2212 = vmatprep.subr.mxu0 0.0
  %2213 = vmatpush1.msra.mxu0 0.0
  %2214 = vmatprep.subr.mxu0 0.0
  %2215 = vmatpush1.msra.mxu0 0.0
  %2216 = vmatprep.subr.mxu0 0.0
  %2217 = vmatpush1.msra.mxu0 0.0
  %2218 = vmatprep.subr.mxu0 0.0
  %2219 = vmatpush1.msra.mxu0 0.0
  %2220 = vmatprep.subr.mxu0 0.0
  %2221 = vmatpush1.msra.mxu0 0.0
  %2222 = vmatprep.subr.mxu0 0.0
  %2223 = vmatpush1.msra.mxu0 0.0
  %2224 = vmatprep.subr.mxu0 0.0
  %2225 = vmatpush1.msra.mxu0 0.0
  %2226 = vmatprep.subr.mxu0 0.0
  %2227 = vmatpush1.msra.mxu0 0.0
  %2228 = vmatprep.subr.mxu0 0.0
  %2229 = vmatpush1.msra.mxu0 0.0
  %2230 = vmatprep.subr.mxu0 0.0
  %2231 = vmatpush1.msra.mxu0 0.0
  %2232 = vmatprep.subr.mxu0 0.0
  %2233 = vmatpush1.msra.mxu0 0.0
  %2234 = vmatprep.subr.mxu0 0.0
  %2235 = vmatpush1.msra.mxu0 0.0
  %2236 = vmatprep.subr.mxu0 0.0
  %2237 = vmatpush1.msra.mxu0 0.0
  %2238 = vmatprep.subr.mxu0 0.0
  %2239 = vmatpush1.msra.mxu0 0.0
  %2240 = vmatprep.subr.mxu0 0.0
  %2241 = vmatpush1.msra.mxu0 0.0
  %2242 = vmatprep.subr.mxu0 0.0
  %2243 = vmatpush1.msra.mxu0 0.0
  %2244 = vmatprep.subr.mxu0 0.0
  %2245 = vmatpush1.msra.mxu0 0.0
  %2246 = vmatprep.subr.mxu0 0.0
  %2247 = vmatpush1.msra.mxu0 0.0
  %2248 = vmatprep.subr.mxu0 0.0
  %2249 = vmatpush1.msra.mxu0 0.0
  %2250 = vmatprep.subr.mxu0 0.0
  %2251 = vmatpush1.msra.mxu0 0.0
  %2252 = vmatprep.subr.mxu0 0.0
  %2253 = vmatpush1.msra.mxu0 0.0
  %2254 = vmatprep.subr.mxu0 0.0
  %2255 = vmatpush1.msra.mxu0 0.0
  %2256 = vmatprep.mubr.f32.mxu0 0.0
  %2257 = vmatmul.mubr.f32.gmra.mrb[0].mxu0 %v2190
  %v2258 = vpop.f32.mrb[0].mxu0
  %v2259 = vadd.f32 0.0, %v2258
  %v2260 = vpop.f32.mrb[0].mxu0
  %2261 = vdwg.mxu0
  %v2262 = vadd.f32 %v2028, %v2259
  %2263 = vst.msk [vmem:[%s11 + $0x8] sm:$0xff] %vm42, %v2262
  %v2264 = vld [vmem:[%s11] sm:$0xff]
  %v2265 = vld [vmem:[%s11 + $0x8] sm:$0xff]
  %v2266 = vadd.f32 %v38, %v2264
  %v2267 = vadd.f32 %v39, %v2265
  %v2268 = vmul.f32 %v2266, %v2266
  %v2269 = vmul.f32 %v2267, %v2267
  %v2270 = vsel %vm42, %v2268, 0.0
  %2271 = vadd.xlane.f32.xlu0 %v2270
  %v2272 = vpop.xlane.xlu0 %2271
  %v2273 = vsel %vm42, %v2269, 0.0
  %2274 = vadd.xlane.f32.xlu0 %v2273
  %v2275 = vpop.xlane.xlu0 %2274
  %v2276 = vmul.f32 %v2272, %v49
  %v2277 = vmul.f32 %v2275, %v49
  %v2278 = vadd.f32 %v2276, 1e-05
  %v2279 = vadd.f32 %v2277, 1e-05
  %v2280 = vrsqrt.pop %v2278
  %v2281 = vrsqrt.pop %v2279
  %v2282 = vmul.f32 %v2266, %v2280
  %v2283 = vmul.f32 %v2267, %v2281
  %v2284 = vld [vmem:[%s7] sm:$0x1]
  %v2286 = vlaneseq
  %v2287 = vshrl.u32 %v2286, 7
  %v2288 = vsub.s32 0, %v2287
  %v2289 = vrot.slane %v2284, %v2288
  %v2291 = vmul.f32 %v2282, %v2289
  %v2292 = vmul.f32 %v2283, %v2289
  %v2293 = vld [vmem:[%s8] sm:$0xff]
  %v2294 = vld [vmem:[%s8 + $0x8] sm:$0xff]
  %v2295 = vld [vmem:[%s8 + $0x10] sm:$0xff]
  %v2296 = vld [vmem:[%s8 + $0x18] sm:$0xff]
  %v2298 = vsel %vm42, %v2291, 0
  %v2301 = vsel %vm42, %v2292, 0
  %2303 = vmatprep.subr.mxu0 0.0
  %2304 = vmatpush1.msra.mxu0 %v2293
  %2305 = vmatprep.subr.mxu0 0.0
  %2306 = vmatpush1.msra.mxu0 %v2294
  %2307 = vmatprep.subr.mxu0 0.0
  %2308 = vmatpush1.msra.mxu0 %v2295
  %2309 = vmatprep.subr.mxu0 0.0
  %2310 = vmatpush1.msra.mxu0 %v2296
  %2311 = vmatprep.subr.mxu0 0.0
  %2312 = vmatpush1.msra.mxu0 0.0
  %2313 = vmatprep.subr.mxu0 0.0
  %2314 = vmatpush1.msra.mxu0 0.0
  %2315 = vmatprep.subr.mxu0 0.0
  %2316 = vmatpush1.msra.mxu0 0.0
  %2317 = vmatprep.subr.mxu0 0.0
  %2318 = vmatpush1.msra.mxu0 0.0
  %2319 = vmatprep.subr.mxu0 0.0
  %2320 = vmatpush1.msra.mxu0 0.0
  %2321 = vmatprep.subr.mxu0 0.0
  %2322 = vmatpush1.msra.mxu0 0.0
  %2323 = vmatprep.subr.mxu0 0.0
  %2324 = vmatpush1.msra.mxu0 0.0
  %2325 = vmatprep.subr.mxu0 0.0
  %2326 = vmatpush1.msra.mxu0 0.0
  %2327 = vmatprep.subr.mxu0 0.0
  %2328 = vmatpush1.msra.mxu0 0.0
  %2329 = vmatprep.subr.mxu0 0.0
  %2330 = vmatpush1.msra.mxu0 0.0
  %2331 = vmatprep.subr.mxu0 0.0
  %2332 = vmatpush1.msra.mxu0 0.0
  %2333 = vmatprep.subr.mxu0 0.0
  %2334 = vmatpush1.msra.mxu0 0.0
  %2335 = vmatprep.subr.mxu0 0.0
  %2336 = vmatpush1.msra.mxu0 0.0
  %2337 = vmatprep.subr.mxu0 0.0
  %2338 = vmatpush1.msra.mxu0 0.0
  %2339 = vmatprep.subr.mxu0 0.0
  %2340 = vmatpush1.msra.mxu0 0.0
  %2341 = vmatprep.subr.mxu0 0.0
  %2342 = vmatpush1.msra.mxu0 0.0
  %2343 = vmatprep.subr.mxu0 0.0
  %2344 = vmatpush1.msra.mxu0 0.0
  %2345 = vmatprep.subr.mxu0 0.0
  %2346 = vmatpush1.msra.mxu0 0.0
  %2347 = vmatprep.subr.mxu0 0.0
  %2348 = vmatpush1.msra.mxu0 0.0
  %2349 = vmatprep.subr.mxu0 0.0
  %2350 = vmatpush1.msra.mxu0 0.0
  %2351 = vmatprep.subr.mxu0 0.0
  %2352 = vmatpush1.msra.mxu0 0.0
  %2353 = vmatprep.subr.mxu0 0.0
  %2354 = vmatpush1.msra.mxu0 0.0
  %2355 = vmatprep.subr.mxu0 0.0
  %2356 = vmatpush1.msra.mxu0 0.0
  %2357 = vmatprep.subr.mxu0 0.0
  %2358 = vmatpush1.msra.mxu0 0.0
  %2359 = vmatprep.subr.mxu0 0.0
  %2360 = vmatpush1.msra.mxu0 0.0
  %2361 = vmatprep.subr.mxu0 0.0
  %2362 = vmatpush1.msra.mxu0 0.0
  %2363 = vmatprep.subr.mxu0 0.0
  %2364 = vmatpush1.msra.mxu0 0.0
  %2365 = vmatprep.subr.mxu0 0.0
  %2366 = vmatpush1.msra.mxu0 0.0
  %2367 = vmatprep.mubr.f32.mxu0 0.0
  %2368 = vmatmul.mubr.f32.gmra.mrb[0].mxu0 %v2298
  %v2369 = vpop.f32.mrb[0].mxu0
  %v2370 = vadd.f32 0.0, %v2369
  %v2371 = vpop.f32.mrb[0].mxu0
  %2372 = vmatprep.mubr.f32.mxu0 0.0
  %2373 = vmatmul.mubr.f32.gmra.mrb[0].mxu0 %v2301
  %v2374 = vpop.f32.mrb[0].mxu0
  %v2375 = vadd.f32 0.0, %v2374
  %v2376 = vpop.f32.mrb[0].mxu0
  %2377 = vdwg.mxu0
  %vm2378 = vcmask 31744
  %v2379 = vsel %vm2378, %v2370, -inf
  %2380 = vmax.xlane.f32.xlu0 %v2379
  %v2381 = vpop.xlane.xlu0 %2380
  %v2382 = vsel %vm2378, %v2375, -inf
  %2383 = vmax.xlane.f32.xlu0 %v2382
  %v2384 = vpop.xlane.xlu0 %2383
  %v2385 = vsub.f32 %v2370, %v2381
  %v2386 = vsub.f32 %v2375, %v2384
  %v2387 = vmul.f32 %v2385, 1.442695
  %v2388 = vpow.pop %v2387
  %v2389 = vmul.f32 %v2386, 1.442695
  %v2390 = vpow.pop %v2389
  %v2391 = vsel %vm2378, %v2388, 0.0
  %2392 = vadd.xlane.f32.xlu0 %v2391
  %v2393 = vpop.xlane.xlu0 %2392
  %v2394 = vsel %vm2378, %v2390, 0.0
  %2395 = vadd.xlane.f32.xlu0 %v2394
  %v2396 = vpop.xlane.xlu0 %2395
  %v2397 = vrcp.pop %v2393
  %v2398 = vmul.f32 %v2388, %v2397
  %v2399 = vrcp.pop %v2396
  %v2400 = vmul.f32 %v2390, %v2399
  %v2401 = vsel %vm2378, %v2398, -inf
  %2402 = vmax.xlane.f32.xlu0 %v2401
  %v2403 = vpop.xlane.xlu0 %2402
  %v2404 = vsel %vm2378, %v2400, -inf
  %2405 = vmax.xlane.f32.xlu0 %v2404
  %v2406 = vpop.xlane.xlu0 %2405
  %vm2407 = vcmp.ge.f32.partialorder %v2398, %v2403
  %vm2408 = vcmp.ge.f32.partialorder %v2400, %v2406
  %v2409 = vsel %vm2407, %v356, 4
  %v2410 = vsel %vm2408, %v356, 4
  %v2411 = vsel %vm2378, %v2409, 2147483647
  %v2412 = vand.u32 %v2411, 65535
  %v2413 = vshra.s32 %v2411, 16
  %v2414 = vcvt.s32.f32 %v2412
  %v2415 = vcvt.s32.f32 %v2413
  %2416 = vmin.xlane.f32.xlu0 %v2415
  %v2417 = vpop.xlane.xlu0 %2416
  %vm2418 = vcmp.eq.f32.partialorder %v2415, %v2417
  %v2419 = vsel %vm2418, %v2414, inf
  %2420 = vmin.xlane.f32.xlu0 %v2419
  %v2421 = vpop.xlane.xlu0 %2420
  %v2422 = vcvt.f32.s32 %v2421
  %v2423 = vcvt.f32.s32 %v2417
  %v2424 = vshll.u32 %v2423, 16
  %v2425 = vadd.s32 %v2424, %v2422
  %v2426 = vsel %vm2378, %v2410, 2147483647
  %v2427 = vand.u32 %v2426, 65535
  %v2428 = vshra.s32 %v2426, 16
  %v2429 = vcvt.s32.f32 %v2427
  %v2430 = vcvt.s32.f32 %v2428
  %2431 = vmin.xlane.f32.xlu0 %v2430
  %v2432 = vpop.xlane.xlu0 %2431
  %vm2433 = vcmp.eq.f32.partialorder %v2430, %v2432
  %v2434 = vsel %vm2433, %v2429, inf
  %2435 = vmin.xlane.f32.xlu0 %v2434
  %v2436 = vpop.xlane.xlu0 %2435
  %v2437 = vcvt.f32.s32 %v2436
  %v2438 = vcvt.f32.s32 %v2432
  %v2439 = vshll.u32 %v2438, 16
  %v2440 = vadd.s32 %v2439, %v2437
  %vm2441 = vcmp.eq.s32.totalorder %v356, %v2425
  %vm2442 = vcmp.eq.s32.totalorder %v356, %v2440
  %v2443 = vsel %vm2441, -1.0, %v2398
  %v2444 = vsel %vm2442, -1.0, %v2400
  %v2445 = vsel %vm2378, %v2443, -inf
  %2446 = vmax.xlane.f32.xlu0 %v2445
  %v2447 = vpop.xlane.xlu0 %2446
  %v2448 = vsel %vm2378, %v2444, -inf
  %2449 = vmax.xlane.f32.xlu0 %v2448
  %v2450 = vpop.xlane.xlu0 %2449
  %vm2451 = vcmp.ge.f32.partialorder %v2443, %v2447
  %vm2452 = vcmp.ge.f32.partialorder %v2444, %v2450
  %v2453 = vsel %vm2451, %v356, 4
  %v2454 = vsel %vm2452, %v356, 4
  %v2455 = vsel %vm2378, %v2453, 2147483647
  %v2456 = vand.u32 %v2455, 65535
  %v2457 = vshra.s32 %v2455, 16
  %v2458 = vcvt.s32.f32 %v2456
  %v2459 = vcvt.s32.f32 %v2457
  %2460 = vmin.xlane.f32.xlu0 %v2459
  %v2461 = vpop.xlane.xlu0 %2460
  %vm2462 = vcmp.eq.f32.partialorder %v2459, %v2461
  %v2463 = vsel %vm2462, %v2458, inf
  %2464 = vmin.xlane.f32.xlu0 %v2463
  %v2465 = vpop.xlane.xlu0 %2464
  %v2466 = vcvt.f32.s32 %v2465
  %v2467 = vcvt.f32.s32 %v2461
  %v2468 = vshll.u32 %v2467, 16
  %v2469 = vadd.s32 %v2468, %v2466
  %v2470 = vsel %vm2378, %v2454, 2147483647
  %v2471 = vand.u32 %v2470, 65535
  %v2472 = vshra.s32 %v2470, 16
  %v2473 = vcvt.s32.f32 %v2471
  %v2474 = vcvt.s32.f32 %v2472
  %2475 = vmin.xlane.f32.xlu0 %v2474
  %v2476 = vpop.xlane.xlu0 %2475
  %vm2477 = vcmp.eq.f32.partialorder %v2474, %v2476
  %v2478 = vsel %vm2477, %v2473, inf
  %2479 = vmin.xlane.f32.xlu0 %v2478
  %v2480 = vpop.xlane.xlu0 %2479
  %v2481 = vcvt.f32.s32 %v2480
  %v2482 = vcvt.f32.s32 %v2476
  %v2483 = vshll.u32 %v2482, 16
  %v2484 = vadd.s32 %v2483, %v2481
  %vm2485 = vcmp.eq.s32.totalorder %v356, %v2469
  %vm2486 = vcmp.eq.s32.totalorder %v356, %v2484
  %v2487 = vsel %vm2441, %v2403, 0.0
  %v2488 = vsel %vm2442, %v2406, 0.0
  %v2489 = vsel %vm2485, %v2447, 0.0
  %v2490 = vsel %vm2486, %v2450, 0.0
  %v2491 = vadd.f32 %v2487, %v2489
  %v2492 = vadd.f32 %v2488, %v2490
  %v2493 = vadd.f32 %v2403, %v2447
  %v2494 = vadd.f32 %v2406, %v2450
  %v2495 = vrcp.pop %v2493
  %v2496 = vmul.f32 %v2491, %v2495
  %v2497 = vrcp.pop %v2494
  %v2498 = vmul.f32 %v2492, %v2497
  %v2499 = vld [vmem:[%s9] sm:$0xff]
  %v2500 = vld [vmem:[%s9 + $0x8] sm:$0xff]
  %v2501 = vld [vmem:[%s9 + $0x10] sm:$0xff]
  %v2502 = vld [vmem:[%s9 + $0x18] sm:$0xff]
  %2503 = vmatprep.subr.mxu0 0.0
  %2504 = vmatpush1.msra.mxu0 %v2499
  %2505 = vmatprep.subr.mxu0 0.0
  %2506 = vmatpush1.msra.mxu0 %v2500
  %2507 = vmatprep.subr.mxu0 0.0
  %2508 = vmatpush1.msra.mxu0 %v2501
  %2509 = vmatprep.subr.mxu0 0.0
  %2510 = vmatpush1.msra.mxu0 %v2502
  %2511 = vmatprep.subr.mxu0 0.0
  %2512 = vmatpush1.msra.mxu0 0.0
  %2513 = vmatprep.subr.mxu0 0.0
  %2514 = vmatpush1.msra.mxu0 0.0
  %2515 = vmatprep.subr.mxu0 0.0
  %2516 = vmatpush1.msra.mxu0 0.0
  %2517 = vmatprep.subr.mxu0 0.0
  %2518 = vmatpush1.msra.mxu0 0.0
  %2519 = vmatprep.subr.mxu0 0.0
  %2520 = vmatpush1.msra.mxu0 0.0
  %2521 = vmatprep.subr.mxu0 0.0
  %2522 = vmatpush1.msra.mxu0 0.0
  %2523 = vmatprep.subr.mxu0 0.0
  %2524 = vmatpush1.msra.mxu0 0.0
  %2525 = vmatprep.subr.mxu0 0.0
  %2526 = vmatpush1.msra.mxu0 0.0
  %2527 = vmatprep.subr.mxu0 0.0
  %2528 = vmatpush1.msra.mxu0 0.0
  %2529 = vmatprep.subr.mxu0 0.0
  %2530 = vmatpush1.msra.mxu0 0.0
  %2531 = vmatprep.subr.mxu0 0.0
  %2532 = vmatpush1.msra.mxu0 0.0
  %2533 = vmatprep.subr.mxu0 0.0
  %2534 = vmatpush1.msra.mxu0 0.0
  %2535 = vmatprep.subr.mxu0 0.0
  %2536 = vmatpush1.msra.mxu0 0.0
  %2537 = vmatprep.subr.mxu0 0.0
  %2538 = vmatpush1.msra.mxu0 0.0
  %2539 = vmatprep.subr.mxu0 0.0
  %2540 = vmatpush1.msra.mxu0 0.0
  %2541 = vmatprep.subr.mxu0 0.0
  %2542 = vmatpush1.msra.mxu0 0.0
  %2543 = vmatprep.subr.mxu0 0.0
  %2544 = vmatpush1.msra.mxu0 0.0
  %2545 = vmatprep.subr.mxu0 0.0
  %2546 = vmatpush1.msra.mxu0 0.0
  %2547 = vmatprep.subr.mxu0 0.0
  %2548 = vmatpush1.msra.mxu0 0.0
  %2549 = vmatprep.subr.mxu0 0.0
  %2550 = vmatpush1.msra.mxu0 0.0
  %2551 = vmatprep.subr.mxu0 0.0
  %2552 = vmatpush1.msra.mxu0 0.0
  %2553 = vmatprep.subr.mxu0 0.0
  %2554 = vmatpush1.msra.mxu0 0.0
  %2555 = vmatprep.subr.mxu0 0.0
  %2556 = vmatpush1.msra.mxu0 0.0
  %2557 = vmatprep.subr.mxu0 0.0
  %2558 = vmatpush1.msra.mxu0 0.0
  %2559 = vmatprep.subr.mxu0 0.0
  %2560 = vmatpush1.msra.mxu0 0.0
  %2561 = vmatprep.subr.mxu0 0.0
  %2562 = vmatpush1.msra.mxu0 0.0
  %2563 = vmatprep.subr.mxu0 0.0
  %2564 = vmatpush1.msra.mxu0 0.0
  %2565 = vmatprep.subr.mxu0 0.0
  %2566 = vmatpush1.msra.mxu0 0.0
  %2567 = vmatprep.mubr.f32.mxu0 0.0
  %2568 = vmatmul.mubr.f32.gmra.mrb[0].mxu0 %v2298
  %v2569 = vpop.f32.mrb[0].mxu0
  %v2570 = vadd.f32 0.0, %v2569
  %v2571 = vpop.f32.mrb[0].mxu0
  %2572 = vmatprep.mubr.f32.mxu0 0.0
  %2573 = vmatmul.mubr.f32.gmra.mrb[0].mxu0 %v2301
  %v2574 = vpop.f32.mrb[0].mxu0
  %v2575 = vadd.f32 0.0, %v2574
  %v2576 = vpop.f32.mrb[0].mxu0
  %2577 = vdwg.mxu0
  %v2578 = vxor.u32 %v2570, 2147483648
  %v2579 = vxor.u32 %v2575, 2147483648
  %v2580 = vmul.f32 %v2578, 1.442695
  %v2581 = vpow.pop %v2580
  %v2582 = vmul.f32 %v2579, 1.442695
  %v2583 = vpow.pop %v2582
  %v2584 = vadd.f32 %v2581, 1.0
  %v2585 = vadd.f32 %v2583, 1.0
  %v2586 = vrcp.pop %v2584
  %v2587 = vmul.f32 1.0, %v2586
  %v2588 = vrcp.pop %v2585
  %v2589 = vmul.f32 1.0, %v2588
  %v2590 = vmul.f32 %v2570, %v2587
  %v2591 = vmul.f32 %v2575, %v2589
  %2594 = vrot.lane.b32.xlu0 %v2570, 64
  %v2595 = vpop.permute.xlu0 %2594
  %2596 = vrot.lane.b32.xlu0 %v2575, 64
  %v2597 = vpop.permute.xlu0 %2596
  %v2600 = vmul.f32 %v2590, %v2595
  %v2601 = vmul.f32 %v2591, %v2597
  %v2602 = vld [vmem:[%s10] sm:$0xff]
  %v2603 = vld [vmem:[%s10 + $0x8] sm:$0xff]
  %v2604 = vld [vmem:[%s10 + $0x10] sm:$0xff]
  %v2605 = vld [vmem:[%s10 + $0x18] sm:$0xff]
  %v2606 = vld [vmem:[%s10 + $0x20] sm:$0xff]
  %v2607 = vld [vmem:[%s10 + $0x28] sm:$0xff]
  %v2608 = vld [vmem:[%s10 + $0x30] sm:$0xff]
  %v2609 = vld [vmem:[%s10 + $0x38] sm:$0xff]
  %vm2610 = vcmask 523264
  %v2612 = vsel %vm2610, %v2600, 0
  %v2615 = vsel %vm2610, %v2601, 0
  %2617 = vmatprep.subr.mxu0 0.0
  %2618 = vmatpush1.msra.mxu0 %v2602
  %2619 = vmatprep.subr.mxu0 0.0
  %2620 = vmatpush1.msra.mxu0 %v2603
  %2621 = vmatprep.subr.mxu0 0.0
  %2622 = vmatpush1.msra.mxu0 %v2604
  %2623 = vmatprep.subr.mxu0 0.0
  %2624 = vmatpush1.msra.mxu0 %v2605
  %2625 = vmatprep.subr.mxu0 0.0
  %2626 = vmatpush1.msra.mxu0 %v2606
  %2627 = vmatprep.subr.mxu0 0.0
  %2628 = vmatpush1.msra.mxu0 %v2607
  %2629 = vmatprep.subr.mxu0 0.0
  %2630 = vmatpush1.msra.mxu0 %v2608
  %2631 = vmatprep.subr.mxu0 0.0
  %2632 = vmatpush1.msra.mxu0 %v2609
  %2633 = vmatprep.subr.mxu0 0.0
  %2634 = vmatpush1.msra.mxu0 0.0
  %2635 = vmatprep.subr.mxu0 0.0
  %2636 = vmatpush1.msra.mxu0 0.0
  %2637 = vmatprep.subr.mxu0 0.0
  %2638 = vmatpush1.msra.mxu0 0.0
  %2639 = vmatprep.subr.mxu0 0.0
  %2640 = vmatpush1.msra.mxu0 0.0
  %2641 = vmatprep.subr.mxu0 0.0
  %2642 = vmatpush1.msra.mxu0 0.0
  %2643 = vmatprep.subr.mxu0 0.0
  %2644 = vmatpush1.msra.mxu0 0.0
  %2645 = vmatprep.subr.mxu0 0.0
  %2646 = vmatpush1.msra.mxu0 0.0
  %2647 = vmatprep.subr.mxu0 0.0
  %2648 = vmatpush1.msra.mxu0 0.0
  %2649 = vmatprep.subr.mxu0 0.0
  %2650 = vmatpush1.msra.mxu0 0.0
  %2651 = vmatprep.subr.mxu0 0.0
  %2652 = vmatpush1.msra.mxu0 0.0
  %2653 = vmatprep.subr.mxu0 0.0
  %2654 = vmatpush1.msra.mxu0 0.0
  %2655 = vmatprep.subr.mxu0 0.0
  %2656 = vmatpush1.msra.mxu0 0.0
  %2657 = vmatprep.subr.mxu0 0.0
  %2658 = vmatpush1.msra.mxu0 0.0
  %2659 = vmatprep.subr.mxu0 0.0
  %2660 = vmatpush1.msra.mxu0 0.0
  %2661 = vmatprep.subr.mxu0 0.0
  %2662 = vmatpush1.msra.mxu0 0.0
  %2663 = vmatprep.subr.mxu0 0.0
  %2664 = vmatpush1.msra.mxu0 0.0
  %2665 = vmatprep.subr.mxu0 0.0
  %2666 = vmatpush1.msra.mxu0 0.0
  %2667 = vmatprep.subr.mxu0 0.0
  %2668 = vmatpush1.msra.mxu0 0.0
  %2669 = vmatprep.subr.mxu0 0.0
  %2670 = vmatpush1.msra.mxu0 0.0
  %2671 = vmatprep.subr.mxu0 0.0
  %2672 = vmatpush1.msra.mxu0 0.0
  %2673 = vmatprep.subr.mxu0 0.0
  %2674 = vmatpush1.msra.mxu0 0.0
  %2675 = vmatprep.subr.mxu0 0.0
  %2676 = vmatpush1.msra.mxu0 0.0
  %2677 = vmatprep.subr.mxu0 0.0
  %2678 = vmatpush1.msra.mxu0 0.0
  %2679 = vmatprep.subr.mxu0 0.0
  %2680 = vmatpush1.msra.mxu0 0.0
  %2681 = vmatprep.mubr.f32.mxu0 0.0
  %2682 = vmatmul.mubr.f32.gmra.mrb[0].mxu0 %v2612
  %v2683 = vpop.f32.mrb[0].mxu0
  %v2684 = vadd.f32 0.0, %v2683
  %v2685 = vpop.f32.mrb[0].mxu0
  %2686 = vmatprep.mubr.f32.mxu0 0.0
  %2687 = vmatmul.mubr.f32.gmra.mrb[0].mxu0 %v2615
  %v2688 = vpop.f32.mrb[0].mxu0
  %v2689 = vadd.f32 0.0, %v2688
  %v2690 = vpop.f32.mrb[0].mxu0
  %2691 = vdwg.mxu0
  %2693 = vset.pattern.permute.xlu0 0
  %2694 = vperm.xlu0 %2693, %v2496
  %v2695 = vpop.permute.xlu0 %2694
  %2698 = vset.pattern.permute.xlu0 0
  %2699 = vperm.xlu0 %2698, %v2498
  %v2700 = vpop.permute.xlu0 %2699
  %v2702 = vmul.f32 %v2684, %v2695
  %v2703 = vmul.f32 %v2689, %v2700
  %v2704 = vadd.f32 %v2702, 0.0
  %v2705 = vadd.f32 %v2703, 0.0
  %s2706 = scalar_lea.vmem %s9, 32
  %v2707 = vld [vmem:[%s2706] sm:$0xff]
  %v2708 = vld [vmem:[%s2706 + $0x8] sm:$0xff]
  %v2709 = vld [vmem:[%s2706 + $0x10] sm:$0xff]
  %v2710 = vld [vmem:[%s2706 + $0x18] sm:$0xff]
  %2711 = vmatprep.subr.mxu0 0.0
  %2712 = vmatpush1.msra.mxu0 %v2707
  %2713 = vmatprep.subr.mxu0 0.0
  %2714 = vmatpush1.msra.mxu0 %v2708
  %2715 = vmatprep.subr.mxu0 0.0
  %2716 = vmatpush1.msra.mxu0 %v2709
  %2717 = vmatprep.subr.mxu0 0.0
  %2718 = vmatpush1.msra.mxu0 %v2710
  %2719 = vmatprep.subr.mxu0 0.0
  %2720 = vmatpush1.msra.mxu0 0.0
  %2721 = vmatprep.subr.mxu0 0.0
  %2722 = vmatpush1.msra.mxu0 0.0
  %2723 = vmatprep.subr.mxu0 0.0
  %2724 = vmatpush1.msra.mxu0 0.0
  %2725 = vmatprep.subr.mxu0 0.0
  %2726 = vmatpush1.msra.mxu0 0.0
  %2727 = vmatprep.subr.mxu0 0.0
  %2728 = vmatpush1.msra.mxu0 0.0
  %2729 = vmatprep.subr.mxu0 0.0
  %2730 = vmatpush1.msra.mxu0 0.0
  %2731 = vmatprep.subr.mxu0 0.0
  %2732 = vmatpush1.msra.mxu0 0.0
  %2733 = vmatprep.subr.mxu0 0.0
  %2734 = vmatpush1.msra.mxu0 0.0
  %2735 = vmatprep.subr.mxu0 0.0
  %2736 = vmatpush1.msra.mxu0 0.0
  %2737 = vmatprep.subr.mxu0 0.0
  %2738 = vmatpush1.msra.mxu0 0.0
  %2739 = vmatprep.subr.mxu0 0.0
  %2740 = vmatpush1.msra.mxu0 0.0
  %2741 = vmatprep.subr.mxu0 0.0
  %2742 = vmatpush1.msra.mxu0 0.0
  %2743 = vmatprep.subr.mxu0 0.0
  %2744 = vmatpush1.msra.mxu0 0.0
  %2745 = vmatprep.subr.mxu0 0.0
  %2746 = vmatpush1.msra.mxu0 0.0
  %2747 = vmatprep.subr.mxu0 0.0
  %2748 = vmatpush1.msra.mxu0 0.0
  %2749 = vmatprep.subr.mxu0 0.0
  %2750 = vmatpush1.msra.mxu0 0.0
  %2751 = vmatprep.subr.mxu0 0.0
  %2752 = vmatpush1.msra.mxu0 0.0
  %2753 = vmatprep.subr.mxu0 0.0
  %2754 = vmatpush1.msra.mxu0 0.0
  %2755 = vmatprep.subr.mxu0 0.0
  %2756 = vmatpush1.msra.mxu0 0.0
  %2757 = vmatprep.subr.mxu0 0.0
  %2758 = vmatpush1.msra.mxu0 0.0
  %2759 = vmatprep.subr.mxu0 0.0
  %2760 = vmatpush1.msra.mxu0 0.0
  %2761 = vmatprep.subr.mxu0 0.0
  %2762 = vmatpush1.msra.mxu0 0.0
  %2763 = vmatprep.subr.mxu0 0.0
  %2764 = vmatpush1.msra.mxu0 0.0
  %2765 = vmatprep.subr.mxu0 0.0
  %2766 = vmatpush1.msra.mxu0 0.0
  %2767 = vmatprep.subr.mxu0 0.0
  %2768 = vmatpush1.msra.mxu0 0.0
  %2769 = vmatprep.subr.mxu0 0.0
  %2770 = vmatpush1.msra.mxu0 0.0
  %2771 = vmatprep.subr.mxu0 0.0
  %2772 = vmatpush1.msra.mxu0 0.0
  %2773 = vmatprep.subr.mxu0 0.0
  %2774 = vmatpush1.msra.mxu0 0.0
  %2775 = vmatprep.mubr.f32.mxu0 0.0
  %2776 = vmatmul.mubr.f32.gmra.mrb[0].mxu0 %v2298
  %v2777 = vpop.f32.mrb[0].mxu0
  %v2778 = vadd.f32 0.0, %v2777
  %v2779 = vpop.f32.mrb[0].mxu0
  %2780 = vmatprep.mubr.f32.mxu0 0.0
  %2781 = vmatmul.mubr.f32.gmra.mrb[0].mxu0 %v2301
  %v2782 = vpop.f32.mrb[0].mxu0
  %v2783 = vadd.f32 0.0, %v2782
  %v2784 = vpop.f32.mrb[0].mxu0
  %2785 = vdwg.mxu0
  %v2786 = vxor.u32 %v2778, 2147483648
  %v2787 = vxor.u32 %v2783, 2147483648
  %v2788 = vmul.f32 %v2786, 1.442695
  %v2789 = vpow.pop %v2788
  %v2790 = vmul.f32 %v2787, 1.442695
  %v2791 = vpow.pop %v2790
  %v2792 = vadd.f32 %v2789, 1.0
  %v2793 = vadd.f32 %v2791, 1.0
  %v2794 = vrcp.pop %v2792
  %v2795 = vmul.f32 1.0, %v2794
  %v2796 = vrcp.pop %v2793
  %v2797 = vmul.f32 1.0, %v2796
  %v2798 = vmul.f32 %v2778, %v2795
  %v2799 = vmul.f32 %v2783, %v2797
  %2802 = vrot.lane.b32.xlu0 %v2778, 64
  %v2803 = vpop.permute.xlu0 %2802
  %2804 = vrot.lane.b32.xlu0 %v2783, 64
  %v2805 = vpop.permute.xlu0 %2804
  %v2808 = vmul.f32 %v2798, %v2803
  %v2809 = vmul.f32 %v2799, %v2805
  %s2810 = scalar_lea.vmem %s10, 64
  %v2811 = vld [vmem:[%s2810] sm:$0xff]
  %v2812 = vld [vmem:[%s2810 + $0x8] sm:$0xff]
  %v2813 = vld [vmem:[%s2810 + $0x10] sm:$0xff]
  %v2814 = vld [vmem:[%s2810 + $0x18] sm:$0xff]
  %v2815 = vld [vmem:[%s2810 + $0x20] sm:$0xff]
  %v2816 = vld [vmem:[%s2810 + $0x28] sm:$0xff]
  %v2817 = vld [vmem:[%s2810 + $0x30] sm:$0xff]
  %v2818 = vld [vmem:[%s2810 + $0x38] sm:$0xff]
  %v2820 = vsel %vm2610, %v2808, 0
  %v2823 = vsel %vm2610, %v2809, 0
  %2825 = vmatprep.subr.mxu0 0.0
  %2826 = vmatpush1.msra.mxu0 %v2811
  %2827 = vmatprep.subr.mxu0 0.0
  %2828 = vmatpush1.msra.mxu0 %v2812
  %2829 = vmatprep.subr.mxu0 0.0
  %2830 = vmatpush1.msra.mxu0 %v2813
  %2831 = vmatprep.subr.mxu0 0.0
  %2832 = vmatpush1.msra.mxu0 %v2814
  %2833 = vmatprep.subr.mxu0 0.0
  %2834 = vmatpush1.msra.mxu0 %v2815
  %2835 = vmatprep.subr.mxu0 0.0
  %2836 = vmatpush1.msra.mxu0 %v2816
  %2837 = vmatprep.subr.mxu0 0.0
  %2838 = vmatpush1.msra.mxu0 %v2817
  %2839 = vmatprep.subr.mxu0 0.0
  %2840 = vmatpush1.msra.mxu0 %v2818
  %2841 = vmatprep.subr.mxu0 0.0
  %2842 = vmatpush1.msra.mxu0 0.0
  %2843 = vmatprep.subr.mxu0 0.0
  %2844 = vmatpush1.msra.mxu0 0.0
  %2845 = vmatprep.subr.mxu0 0.0
  %2846 = vmatpush1.msra.mxu0 0.0
  %2847 = vmatprep.subr.mxu0 0.0
  %2848 = vmatpush1.msra.mxu0 0.0
  %2849 = vmatprep.subr.mxu0 0.0
  %2850 = vmatpush1.msra.mxu0 0.0
  %2851 = vmatprep.subr.mxu0 0.0
  %2852 = vmatpush1.msra.mxu0 0.0
  %2853 = vmatprep.subr.mxu0 0.0
  %2854 = vmatpush1.msra.mxu0 0.0
  %2855 = vmatprep.subr.mxu0 0.0
  %2856 = vmatpush1.msra.mxu0 0.0
  %2857 = vmatprep.subr.mxu0 0.0
  %2858 = vmatpush1.msra.mxu0 0.0
  %2859 = vmatprep.subr.mxu0 0.0
  %2860 = vmatpush1.msra.mxu0 0.0
  %2861 = vmatprep.subr.mxu0 0.0
  %2862 = vmatpush1.msra.mxu0 0.0
  %2863 = vmatprep.subr.mxu0 0.0
  %2864 = vmatpush1.msra.mxu0 0.0
  %2865 = vmatprep.subr.mxu0 0.0
  %2866 = vmatpush1.msra.mxu0 0.0
  %2867 = vmatprep.subr.mxu0 0.0
  %2868 = vmatpush1.msra.mxu0 0.0
  %2869 = vmatprep.subr.mxu0 0.0
  %2870 = vmatpush1.msra.mxu0 0.0
  %2871 = vmatprep.subr.mxu0 0.0
  %2872 = vmatpush1.msra.mxu0 0.0
  %2873 = vmatprep.subr.mxu0 0.0
  %2874 = vmatpush1.msra.mxu0 0.0
  %2875 = vmatprep.subr.mxu0 0.0
  %2876 = vmatpush1.msra.mxu0 0.0
  %2877 = vmatprep.subr.mxu0 0.0
  %2878 = vmatpush1.msra.mxu0 0.0
  %2879 = vmatprep.subr.mxu0 0.0
  %2880 = vmatpush1.msra.mxu0 0.0
  %2881 = vmatprep.subr.mxu0 0.0
  %2882 = vmatpush1.msra.mxu0 0.0
  %2883 = vmatprep.subr.mxu0 0.0
  %2884 = vmatpush1.msra.mxu0 0.0
  %2885 = vmatprep.subr.mxu0 0.0
  %2886 = vmatpush1.msra.mxu0 0.0
  %2887 = vmatprep.subr.mxu0 0.0
  %2888 = vmatpush1.msra.mxu0 0.0
  %2889 = vmatprep.mubr.f32.mxu0 0.0
  %2890 = vmatmul.mubr.f32.gmra.mrb[0].mxu0 %v2820
  %v2891 = vpop.f32.mrb[0].mxu0
  %v2892 = vadd.f32 0.0, %v2891
  %v2893 = vpop.f32.mrb[0].mxu0
  %2894 = vmatprep.mubr.f32.mxu0 0.0
  %2895 = vmatmul.mubr.f32.gmra.mrb[0].mxu0 %v2823
  %v2896 = vpop.f32.mrb[0].mxu0
  %v2897 = vadd.f32 0.0, %v2896
  %v2898 = vpop.f32.mrb[0].mxu0
  %2899 = vdwg.mxu0
  %2900 = vset.pattern.permute.xlu0 1
  %2901 = vperm.xlu0 %2900, %v2496
  %v2902 = vpop.permute.xlu0 %2901
  %2904 = vset.pattern.permute.xlu0 1
  %2905 = vperm.xlu0 %2904, %v2498
  %v2906 = vpop.permute.xlu0 %2905
  %v2908 = vmul.f32 %v2892, %v2902
  %v2909 = vmul.f32 %v2897, %v2906
  %v2910 = vadd.f32 %v2704, %v2908
  %v2911 = vadd.f32 %v2705, %v2909
  %s2912 = scalar_lea.vmem %s9, 64
  %v2913 = vld [vmem:[%s2912] sm:$0xff]
  %v2914 = vld [vmem:[%s2912 + $0x8] sm:$0xff]
  %v2915 = vld [vmem:[%s2912 + $0x10] sm:$0xff]
  %v2916 = vld [vmem:[%s2912 + $0x18] sm:$0xff]
  %2917 = vmatprep.subr.mxu0 0.0
  %2918 = vmatpush1.msra.mxu0 %v2913
  %2919 = vmatprep.subr.mxu0 0.0
  %2920 = vmatpush1.msra.mxu0 %v2914
  %2921 = vmatprep.subr.mxu0 0.0
  %2922 = vmatpush1.msra.mxu0 %v2915
  %2923 = vmatprep.subr.mxu0 0.0
  %2924 = vmatpush1.msra.mxu0 %v2916
  %2925 = vmatprep.subr.mxu0 0.0
  %2926 = vmatpush1.msra.mxu0 0.0
  %2927 = vmatprep.subr.mxu0 0.0
  %2928 = vmatpush1.msra.mxu0 0.0
  %2929 = vmatprep.subr.mxu0 0.0
  %2930 = vmatpush1.msra.mxu0 0.0
  %2931 = vmatprep.subr.mxu0 0.0
  %2932 = vmatpush1.msra.mxu0 0.0
  %2933 = vmatprep.subr.mxu0 0.0
  %2934 = vmatpush1.msra.mxu0 0.0
  %2935 = vmatprep.subr.mxu0 0.0
  %2936 = vmatpush1.msra.mxu0 0.0
  %2937 = vmatprep.subr.mxu0 0.0
  %2938 = vmatpush1.msra.mxu0 0.0
  %2939 = vmatprep.subr.mxu0 0.0
  %2940 = vmatpush1.msra.mxu0 0.0
  %2941 = vmatprep.subr.mxu0 0.0
  %2942 = vmatpush1.msra.mxu0 0.0
  %2943 = vmatprep.subr.mxu0 0.0
  %2944 = vmatpush1.msra.mxu0 0.0
  %2945 = vmatprep.subr.mxu0 0.0
  %2946 = vmatpush1.msra.mxu0 0.0
  %2947 = vmatprep.subr.mxu0 0.0
  %2948 = vmatpush1.msra.mxu0 0.0
  %2949 = vmatprep.subr.mxu0 0.0
  %2950 = vmatpush1.msra.mxu0 0.0
  %2951 = vmatprep.subr.mxu0 0.0
  %2952 = vmatpush1.msra.mxu0 0.0
  %2953 = vmatprep.subr.mxu0 0.0
  %2954 = vmatpush1.msra.mxu0 0.0
  %2955 = vmatprep.subr.mxu0 0.0
  %2956 = vmatpush1.msra.mxu0 0.0
  %2957 = vmatprep.subr.mxu0 0.0
  %2958 = vmatpush1.msra.mxu0 0.0
  %2959 = vmatprep.subr.mxu0 0.0
  %2960 = vmatpush1.msra.mxu0 0.0
  %2961 = vmatprep.subr.mxu0 0.0
  %2962 = vmatpush1.msra.mxu0 0.0
  %2963 = vmatprep.subr.mxu0 0.0
  %2964 = vmatpush1.msra.mxu0 0.0
  %2965 = vmatprep.subr.mxu0 0.0
  %2966 = vmatpush1.msra.mxu0 0.0
  %2967 = vmatprep.subr.mxu0 0.0
  %2968 = vmatpush1.msra.mxu0 0.0
  %2969 = vmatprep.subr.mxu0 0.0
  %2970 = vmatpush1.msra.mxu0 0.0
  %2971 = vmatprep.subr.mxu0 0.0
  %2972 = vmatpush1.msra.mxu0 0.0
  %2973 = vmatprep.subr.mxu0 0.0
  %2974 = vmatpush1.msra.mxu0 0.0
  %2975 = vmatprep.subr.mxu0 0.0
  %2976 = vmatpush1.msra.mxu0 0.0
  %2977 = vmatprep.subr.mxu0 0.0
  %2978 = vmatpush1.msra.mxu0 0.0
  %2979 = vmatprep.subr.mxu0 0.0
  %2980 = vmatpush1.msra.mxu0 0.0
  %2981 = vmatprep.mubr.f32.mxu0 0.0
  %2982 = vmatmul.mubr.f32.gmra.mrb[0].mxu0 %v2298
  %v2983 = vpop.f32.mrb[0].mxu0
  %v2984 = vadd.f32 0.0, %v2983
  %v2985 = vpop.f32.mrb[0].mxu0
  %2986 = vmatprep.mubr.f32.mxu0 0.0
  %2987 = vmatmul.mubr.f32.gmra.mrb[0].mxu0 %v2301
  %v2988 = vpop.f32.mrb[0].mxu0
  %v2989 = vadd.f32 0.0, %v2988
  %v2990 = vpop.f32.mrb[0].mxu0
  %2991 = vdwg.mxu0
  %v2992 = vxor.u32 %v2984, 2147483648
  %v2993 = vxor.u32 %v2989, 2147483648
  %v2994 = vmul.f32 %v2992, 1.442695
  %v2995 = vpow.pop %v2994
  %v2996 = vmul.f32 %v2993, 1.442695
  %v2997 = vpow.pop %v2996
  %v2998 = vadd.f32 %v2995, 1.0
  %v2999 = vadd.f32 %v2997, 1.0
  %v3000 = vrcp.pop %v2998
  %v3001 = vmul.f32 1.0, %v3000
  %v3002 = vrcp.pop %v2999
  %v3003 = vmul.f32 1.0, %v3002
  %v3004 = vmul.f32 %v2984, %v3001
  %v3005 = vmul.f32 %v2989, %v3003
  %3008 = vrot.lane.b32.xlu0 %v2984, 64
  %v3009 = vpop.permute.xlu0 %3008
  %3010 = vrot.lane.b32.xlu0 %v2989, 64
  %v3011 = vpop.permute.xlu0 %3010
  %v3014 = vmul.f32 %v3004, %v3009
  %v3015 = vmul.f32 %v3005, %v3011
  %s3016 = scalar_lea.vmem %s10, 128
  %v3017 = vld [vmem:[%s3016] sm:$0xff]
  %v3018 = vld [vmem:[%s3016 + $0x8] sm:$0xff]
  %v3019 = vld [vmem:[%s3016 + $0x10] sm:$0xff]
  %v3020 = vld [vmem:[%s3016 + $0x18] sm:$0xff]
  %v3021 = vld [vmem:[%s3016 + $0x20] sm:$0xff]
  %v3022 = vld [vmem:[%s3016 + $0x28] sm:$0xff]
  %v3023 = vld [vmem:[%s3016 + $0x30] sm:$0xff]
  %v3024 = vld [vmem:[%s3016 + $0x38] sm:$0xff]
  %v3026 = vsel %vm2610, %v3014, 0
  %v3029 = vsel %vm2610, %v3015, 0
  %3031 = vmatprep.subr.mxu0 0.0
  %3032 = vmatpush1.msra.mxu0 %v3017
  %3033 = vmatprep.subr.mxu0 0.0
  %3034 = vmatpush1.msra.mxu0 %v3018
  %3035 = vmatprep.subr.mxu0 0.0
  %3036 = vmatpush1.msra.mxu0 %v3019
  %3037 = vmatprep.subr.mxu0 0.0
  %3038 = vmatpush1.msra.mxu0 %v3020
  %3039 = vmatprep.subr.mxu0 0.0
  %3040 = vmatpush1.msra.mxu0 %v3021
  %3041 = vmatprep.subr.mxu0 0.0
  %3042 = vmatpush1.msra.mxu0 %v3022
  %3043 = vmatprep.subr.mxu0 0.0
  %3044 = vmatpush1.msra.mxu0 %v3023
  %3045 = vmatprep.subr.mxu0 0.0
  %3046 = vmatpush1.msra.mxu0 %v3024
  %3047 = vmatprep.subr.mxu0 0.0
  %3048 = vmatpush1.msra.mxu0 0.0
  %3049 = vmatprep.subr.mxu0 0.0
  %3050 = vmatpush1.msra.mxu0 0.0
  %3051 = vmatprep.subr.mxu0 0.0
  %3052 = vmatpush1.msra.mxu0 0.0
  %3053 = vmatprep.subr.mxu0 0.0
  %3054 = vmatpush1.msra.mxu0 0.0
  %3055 = vmatprep.subr.mxu0 0.0
  %3056 = vmatpush1.msra.mxu0 0.0
  %3057 = vmatprep.subr.mxu0 0.0
  %3058 = vmatpush1.msra.mxu0 0.0
  %3059 = vmatprep.subr.mxu0 0.0
  %3060 = vmatpush1.msra.mxu0 0.0
  %3061 = vmatprep.subr.mxu0 0.0
  %3062 = vmatpush1.msra.mxu0 0.0
  %3063 = vmatprep.subr.mxu0 0.0
  %3064 = vmatpush1.msra.mxu0 0.0
  %3065 = vmatprep.subr.mxu0 0.0
  %3066 = vmatpush1.msra.mxu0 0.0
  %3067 = vmatprep.subr.mxu0 0.0
  %3068 = vmatpush1.msra.mxu0 0.0
  %3069 = vmatprep.subr.mxu0 0.0
  %3070 = vmatpush1.msra.mxu0 0.0
  %3071 = vmatprep.subr.mxu0 0.0
  %3072 = vmatpush1.msra.mxu0 0.0
  %3073 = vmatprep.subr.mxu0 0.0
  %3074 = vmatpush1.msra.mxu0 0.0
  %3075 = vmatprep.subr.mxu0 0.0
  %3076 = vmatpush1.msra.mxu0 0.0
  %3077 = vmatprep.subr.mxu0 0.0
  %3078 = vmatpush1.msra.mxu0 0.0
  %3079 = vmatprep.subr.mxu0 0.0
  %3080 = vmatpush1.msra.mxu0 0.0
  %3081 = vmatprep.subr.mxu0 0.0
  %3082 = vmatpush1.msra.mxu0 0.0
  %3083 = vmatprep.subr.mxu0 0.0
  %3084 = vmatpush1.msra.mxu0 0.0
  %3085 = vmatprep.subr.mxu0 0.0
  %3086 = vmatpush1.msra.mxu0 0.0
  %3087 = vmatprep.subr.mxu0 0.0
  %3088 = vmatpush1.msra.mxu0 0.0
  %3089 = vmatprep.subr.mxu0 0.0
  %3090 = vmatpush1.msra.mxu0 0.0
  %3091 = vmatprep.subr.mxu0 0.0
  %3092 = vmatpush1.msra.mxu0 0.0
  %3093 = vmatprep.subr.mxu0 0.0
  %3094 = vmatpush1.msra.mxu0 0.0
  %3095 = vmatprep.mubr.f32.mxu0 0.0
  %3096 = vmatmul.mubr.f32.gmra.mrb[0].mxu0 %v3026
  %v3097 = vpop.f32.mrb[0].mxu0
  %v3098 = vadd.f32 0.0, %v3097
  %v3099 = vpop.f32.mrb[0].mxu0
  %3100 = vmatprep.mubr.f32.mxu0 0.0
  %3101 = vmatmul.mubr.f32.gmra.mrb[0].mxu0 %v3029
  %v3102 = vpop.f32.mrb[0].mxu0
  %v3103 = vadd.f32 0.0, %v3102
  %v3104 = vpop.f32.mrb[0].mxu0
  %3105 = vdwg.mxu0
  %3106 = vset.pattern.permute.xlu0 2
  %3107 = vperm.xlu0 %3106, %v2496
  %v3108 = vpop.permute.xlu0 %3107
  %3110 = vset.pattern.permute.xlu0 2
  %3111 = vperm.xlu0 %3110, %v2498
  %v3112 = vpop.permute.xlu0 %3111
  %v3114 = vmul.f32 %v3098, %v3108
  %v3115 = vmul.f32 %v3103, %v3112
  %v3116 = vadd.f32 %v2910, %v3114
  %v3117 = vadd.f32 %v2911, %v3115
  %s3118 = scalar_lea.vmem %s9, 96
  %v3119 = vld [vmem:[%s3118] sm:$0xff]
  %v3120 = vld [vmem:[%s3118 + $0x8] sm:$0xff]
  %v3121 = vld [vmem:[%s3118 + $0x10] sm:$0xff]
  %v3122 = vld [vmem:[%s3118 + $0x18] sm:$0xff]
  %3123 = vmatprep.subr.mxu0 0.0
  %3124 = vmatpush1.msra.mxu0 %v3119
  %3125 = vmatprep.subr.mxu0 0.0
  %3126 = vmatpush1.msra.mxu0 %v3120
  %3127 = vmatprep.subr.mxu0 0.0
  %3128 = vmatpush1.msra.mxu0 %v3121
  %3129 = vmatprep.subr.mxu0 0.0
  %3130 = vmatpush1.msra.mxu0 %v3122
  %3131 = vmatprep.subr.mxu0 0.0
  %3132 = vmatpush1.msra.mxu0 0.0
  %3133 = vmatprep.subr.mxu0 0.0
  %3134 = vmatpush1.msra.mxu0 0.0
  %3135 = vmatprep.subr.mxu0 0.0
  %3136 = vmatpush1.msra.mxu0 0.0
  %3137 = vmatprep.subr.mxu0 0.0
  %3138 = vmatpush1.msra.mxu0 0.0
  %3139 = vmatprep.subr.mxu0 0.0
  %3140 = vmatpush1.msra.mxu0 0.0
  %3141 = vmatprep.subr.mxu0 0.0
  %3142 = vmatpush1.msra.mxu0 0.0
  %3143 = vmatprep.subr.mxu0 0.0
  %3144 = vmatpush1.msra.mxu0 0.0
  %3145 = vmatprep.subr.mxu0 0.0
  %3146 = vmatpush1.msra.mxu0 0.0
  %3147 = vmatprep.subr.mxu0 0.0
  %3148 = vmatpush1.msra.mxu0 0.0
  %3149 = vmatprep.subr.mxu0 0.0
  %3150 = vmatpush1.msra.mxu0 0.0
  %3151 = vmatprep.subr.mxu0 0.0
  %3152 = vmatpush1.msra.mxu0 0.0
  %3153 = vmatprep.subr.mxu0 0.0
  %3154 = vmatpush1.msra.mxu0 0.0
  %3155 = vmatprep.subr.mxu0 0.0
  %3156 = vmatpush1.msra.mxu0 0.0
  %3157 = vmatprep.subr.mxu0 0.0
  %3158 = vmatpush1.msra.mxu0 0.0
  %3159 = vmatprep.subr.mxu0 0.0
  %3160 = vmatpush1.msra.mxu0 0.0
  %3161 = vmatprep.subr.mxu0 0.0
  %3162 = vmatpush1.msra.mxu0 0.0
  %3163 = vmatprep.subr.mxu0 0.0
  %3164 = vmatpush1.msra.mxu0 0.0
  %3165 = vmatprep.subr.mxu0 0.0
  %3166 = vmatpush1.msra.mxu0 0.0
  %3167 = vmatprep.subr.mxu0 0.0
  %3168 = vmatpush1.msra.mxu0 0.0
  %3169 = vmatprep.subr.mxu0 0.0
  %3170 = vmatpush1.msra.mxu0 0.0
  %3171 = vmatprep.subr.mxu0 0.0
  %3172 = vmatpush1.msra.mxu0 0.0
  %3173 = vmatprep.subr.mxu0 0.0
  %3174 = vmatpush1.msra.mxu0 0.0
  %3175 = vmatprep.subr.mxu0 0.0
  %3176 = vmatpush1.msra.mxu0 0.0
  %3177 = vmatprep.subr.mxu0 0.0
  %3178 = vmatpush1.msra.mxu0 0.0
  %3179 = vmatprep.subr.mxu0 0.0
  %3180 = vmatpush1.msra.mxu0 0.0
  %3181 = vmatprep.subr.mxu0 0.0
  %3182 = vmatpush1.msra.mxu0 0.0
  %3183 = vmatprep.subr.mxu0 0.0
  %3184 = vmatpush1.msra.mxu0 0.0
  %3185 = vmatprep.subr.mxu0 0.0
  %3186 = vmatpush1.msra.mxu0 0.0
  %3187 = vmatprep.mubr.f32.mxu0 0.0
  %3188 = vmatmul.mubr.f32.gmra.mrb[0].mxu0 %v2298
  %v3189 = vpop.f32.mrb[0].mxu0
  %v3190 = vadd.f32 0.0, %v3189
  %v3191 = vpop.f32.mrb[0].mxu0
  %3192 = vmatprep.mubr.f32.mxu0 0.0
  %3193 = vmatmul.mubr.f32.gmra.mrb[0].mxu0 %v2301
  %v3194 = vpop.f32.mrb[0].mxu0
  %v3195 = vadd.f32 0.0, %v3194
  %v3196 = vpop.f32.mrb[0].mxu0
  %3197 = vdwg.mxu0
  %v3198 = vxor.u32 %v3190, 2147483648
  %v3199 = vxor.u32 %v3195, 2147483648
  %v3200 = vmul.f32 %v3198, 1.442695
  %v3201 = vpow.pop %v3200
  %v3202 = vmul.f32 %v3199, 1.442695
  %v3203 = vpow.pop %v3202
  %v3204 = vadd.f32 %v3201, 1.0
  %v3205 = vadd.f32 %v3203, 1.0
  %v3206 = vrcp.pop %v3204
  %v3207 = vmul.f32 1.0, %v3206
  %v3208 = vrcp.pop %v3205
  %v3209 = vmul.f32 1.0, %v3208
  %v3210 = vmul.f32 %v3190, %v3207
  %v3211 = vmul.f32 %v3195, %v3209
  %3214 = vrot.lane.b32.xlu0 %v3190, 64
  %v3215 = vpop.permute.xlu0 %3214
  %3216 = vrot.lane.b32.xlu0 %v3195, 64
  %v3217 = vpop.permute.xlu0 %3216
  %v3220 = vmul.f32 %v3210, %v3215
  %v3221 = vmul.f32 %v3211, %v3217
  %s3222 = scalar_lea.vmem %s10, 192
  %v3223 = vld [vmem:[%s3222] sm:$0xff]
  %v3224 = vld [vmem:[%s3222 + $0x8] sm:$0xff]
  %v3225 = vld [vmem:[%s3222 + $0x10] sm:$0xff]
  %v3226 = vld [vmem:[%s3222 + $0x18] sm:$0xff]
  %v3227 = vld [vmem:[%s3222 + $0x20] sm:$0xff]
  %v3228 = vld [vmem:[%s3222 + $0x28] sm:$0xff]
  %v3229 = vld [vmem:[%s3222 + $0x30] sm:$0xff]
  %v3230 = vld [vmem:[%s3222 + $0x38] sm:$0xff]
  %v3232 = vsel %vm2610, %v3220, 0
  %v3235 = vsel %vm2610, %v3221, 0
  %3237 = vmatprep.subr.mxu0 0.0
  %3238 = vmatpush1.msra.mxu0 %v3223
  %3239 = vmatprep.subr.mxu0 0.0
  %3240 = vmatpush1.msra.mxu0 %v3224
  %3241 = vmatprep.subr.mxu0 0.0
  %3242 = vmatpush1.msra.mxu0 %v3225
  %3243 = vmatprep.subr.mxu0 0.0
  %3244 = vmatpush1.msra.mxu0 %v3226
  %3245 = vmatprep.subr.mxu0 0.0
  %3246 = vmatpush1.msra.mxu0 %v3227
  %3247 = vmatprep.subr.mxu0 0.0
  %3248 = vmatpush1.msra.mxu0 %v3228
  %3249 = vmatprep.subr.mxu0 0.0
  %3250 = vmatpush1.msra.mxu0 %v3229
  %3251 = vmatprep.subr.mxu0 0.0
  %3252 = vmatpush1.msra.mxu0 %v3230
  %3253 = vmatprep.subr.mxu0 0.0
  %3254 = vmatpush1.msra.mxu0 0.0
  %3255 = vmatprep.subr.mxu0 0.0
  %3256 = vmatpush1.msra.mxu0 0.0
  %3257 = vmatprep.subr.mxu0 0.0
  %3258 = vmatpush1.msra.mxu0 0.0
  %3259 = vmatprep.subr.mxu0 0.0
  %3260 = vmatpush1.msra.mxu0 0.0
  %3261 = vmatprep.subr.mxu0 0.0
  %3262 = vmatpush1.msra.mxu0 0.0
  %3263 = vmatprep.subr.mxu0 0.0
  %3264 = vmatpush1.msra.mxu0 0.0
  %3265 = vmatprep.subr.mxu0 0.0
  %3266 = vmatpush1.msra.mxu0 0.0
  %3267 = vmatprep.subr.mxu0 0.0
  %3268 = vmatpush1.msra.mxu0 0.0
  %3269 = vmatprep.subr.mxu0 0.0
  %3270 = vmatpush1.msra.mxu0 0.0
  %3271 = vmatprep.subr.mxu0 0.0
  %3272 = vmatpush1.msra.mxu0 0.0
  %3273 = vmatprep.subr.mxu0 0.0
  %3274 = vmatpush1.msra.mxu0 0.0
  %3275 = vmatprep.subr.mxu0 0.0
  %3276 = vmatpush1.msra.mxu0 0.0
  %3277 = vmatprep.subr.mxu0 0.0
  %3278 = vmatpush1.msra.mxu0 0.0
  %3279 = vmatprep.subr.mxu0 0.0
  %3280 = vmatpush1.msra.mxu0 0.0
  %3281 = vmatprep.subr.mxu0 0.0
  %3282 = vmatpush1.msra.mxu0 0.0
  %3283 = vmatprep.subr.mxu0 0.0
  %3284 = vmatpush1.msra.mxu0 0.0
  %3285 = vmatprep.subr.mxu0 0.0
  %3286 = vmatpush1.msra.mxu0 0.0
  %3287 = vmatprep.subr.mxu0 0.0
  %3288 = vmatpush1.msra.mxu0 0.0
  %3289 = vmatprep.subr.mxu0 0.0
  %3290 = vmatpush1.msra.mxu0 0.0
  %3291 = vmatprep.subr.mxu0 0.0
  %3292 = vmatpush1.msra.mxu0 0.0
  %3293 = vmatprep.subr.mxu0 0.0
  %3294 = vmatpush1.msra.mxu0 0.0
  %3295 = vmatprep.subr.mxu0 0.0
  %3296 = vmatpush1.msra.mxu0 0.0
  %3297 = vmatprep.subr.mxu0 0.0
  %3298 = vmatpush1.msra.mxu0 0.0
  %3299 = vmatprep.subr.mxu0 0.0
  %3300 = vmatpush1.msra.mxu0 0.0
  %3301 = vmatprep.mubr.f32.mxu0 0.0
  %3302 = vmatmul.mubr.f32.gmra.mrb[0].mxu0 %v3232
  %v3303 = vpop.f32.mrb[0].mxu0
  %v3304 = vadd.f32 0.0, %v3303
  %v3305 = vpop.f32.mrb[0].mxu0
  %3306 = vmatprep.mubr.f32.mxu0 0.0
  %3307 = vmatmul.mubr.f32.gmra.mrb[0].mxu0 %v3235
  %v3308 = vpop.f32.mrb[0].mxu0
  %v3309 = vadd.f32 0.0, %v3308
  %v3310 = vpop.f32.mrb[0].mxu0
  %3311 = vdwg.mxu0
  %3312 = vset.pattern.permute.xlu0 3
  %3313 = vperm.xlu0 %3312, %v2496
  %v3314 = vpop.permute.xlu0 %3313
  %3316 = vset.pattern.permute.xlu0 3
  %3317 = vperm.xlu0 %3316, %v2498
  %v3318 = vpop.permute.xlu0 %3317
  %v3320 = vmul.f32 %v3304, %v3314
  %v3321 = vmul.f32 %v3309, %v3318
  %v3322 = vadd.f32 %v3116, %v3320
  %v3323 = vadd.f32 %v3117, %v3321
  %v3324 = vadd.f32 %v2266, %v3322
  %v3325 = vadd.f32 %v2267, %v3323
  %3326 = vst.msk [vmem:[%s11] sm:$0xff] %vm42, %v3324
  %3327 = vst.msk [vmem:[%s11 + $0x8] sm:$0xff] %vm42, %v3325
  // Predicated region
  $region46: #{tiny_mixtral_forward.3} parent=0 // pred_check
    _
  $region47: #{tiny_mixtral_forward.3} parent=0 // pred_check_branch
    %3329 = sbr.rel (0) target = $region49
  $region48: #{tiny_mixtral_forward.3} parent=0 // pred_region
    _
  $region49: #{tiny_mixtral_forward.3} parent=0 // pred_fallthru
    _
  // Predicated region
  $region50: #{tiny_mixtral_forward.3} parent=0 // pred_check
    _
  $region51: #{tiny_mixtral_forward.3} parent=0 // pred_check_branch
    %3331 = sbr.rel (0) target = $region53
  $region52: #{tiny_mixtral_forward.3} parent=0 // pred_region
    _
  $region53: #{tiny_mixtral_forward.3} parent=0 // pred_fallthru
    _

</llo_original>
